<compile_context>
chip_gen: v5e
topology: v5e:2x2
jax: 0.10.0
libtpu: 0.0.40
codegen_flags: <defaults>
</compile_context>

<pallas_src>
import jax
import jax.numpy as jnp
from jax import lax
from jax.experimental import pallas as pl
from jax.experimental.pallas import tpu as pltpu


def _bilstm_attention_kernel(
    x_ref,       # (T, B, D)    embedded tokens (batch tile)
    m_ref,       # (T, B, 1)    float mask, 1.0 for valid tokens
    wih_ref,     # (D, 8H)      [W_ih_fwd.T | W_ih_bwd.T]
    whh_ref,     # (2H, 8H)     blockdiag(W_hh_fwd.T, W_hh_bwd.T)
    b_ref,       # (1, 8H)      [b_fwd | b_bwd] (b_ih + b_hh per direction)
    w1f_ref,     # (H, A)       attention W1, forward-hidden half
    w1b_ref,     # (H, A)       attention W1, backward-hidden half
    b1_ref,      # (1, 1, A)    attention bias
    w2_ref,      # (1, 1, A)    attention scoring vector v
    wmf_ref,     # (H, M)       mlp weights, forward half
    wmb_ref,     # (H, M)       mlp weights, backward half
    bm_ref,      # (1, M)
    wc_ref,      # (M, Cp)      classifier weights (class dim padded to 128)
    bc_ref,      # (1, Cp)
    logits_ref,  # out (B, Cp)
    alpha_ref,   # out (B, T)
    xproj_ref,   # scratch (T, B, 8H)  hoisted input projections (both dirs)
    hf_ref,      # scratch (T, B, H)   forward hidden states
    hb_ref,      # scratch (T, B, H)   backward hidden states
):
    T, B, D = x_ref.shape
    H = hf_ref.shape[2]
    H4 = 4 * H
    A = w1f_ref.shape[1]

    # ---- hoisted input projections: one MXU contraction for both dirs ----
    x_flat = x_ref[...].reshape(T * B, D)
    xproj_ref[...] = jnp.dot(
        x_flat, wih_ref[...], preferred_element_type=jnp.float32
    ).reshape(T, B, 8 * H)

    whh = whh_ref[...]          # (2H, 8H)
    b_cat = b_ref[...]          # (1, 8H)

    def lstm_cell(gates, c):
        i_g = jax.nn.sigmoid(gates[:, 0:H])
        f_g = jax.nn.sigmoid(gates[:, H:2 * H])
        g_g = jnp.tanh(gates[:, 2 * H:3 * H])
        o_g = jax.nn.sigmoid(gates[:, 3 * H:4 * H])
        c_new = f_g * c + i_g * g_g
        h_new = o_g * jnp.tanh(c_new)
        return h_new, c_new

    def step(t, carry):
        h_cat, c_f, c_b = carry             # (B,2H), (B,H), (B,H)
        tb = T - 1 - t
        # fused recurrent matmul for both directions
        rec = jnp.dot(h_cat, whh, preferred_element_type=jnp.float32) + b_cat
        gf = xproj_ref[t][:, 0:H4] + rec[:, 0:H4]          # fwd gates @ t
        gb = xproj_ref[tb][:, H4:2 * H4] + rec[:, H4:2 * H4]  # bwd gates @ T-1-t

        hf_new, cf_new = lstm_cell(gf, c_f)
        hb_new, cb_new = lstm_cell(gb, c_b)

        mf_on = m_ref[t] > 0.0              # (B, 1)
        mb_on = m_ref[tb] > 0.0

        # packed-sequence semantics: freeze state on pads, zero emitted hidden
        c_f = jnp.where(mf_on, cf_new, c_f)
        c_b = jnp.where(mb_on, cb_new, c_b)
        hf_ref[t] = jnp.where(mf_on, hf_new, 0.0)
        hb_ref[tb] = jnp.where(mb_on, hb_new, 0.0)

        h_f = jnp.where(mf_on, hf_new, h_cat[:, 0:H])
        h_b = jnp.where(mb_on, hb_new, h_cat[:, H:2 * H])
        return jnp.concatenate([h_f, h_b], axis=-1), c_f, c_b

    h0 = jnp.zeros((B, 2 * H), jnp.float32)
    c0 = jnp.zeros((B, H), jnp.float32)
    lax.fori_loop(0, T, step, (h0, c0, c0), unroll=True)

    # --- masked additive self-attention over concatenated BiLSTM states ---
    hf = hf_ref[...]                                            # (T, B, H)
    hb = hb_ref[...]
    pf = jnp.dot(hf.reshape(T * B, H), w1f_ref[...],
                 preferred_element_type=jnp.float32)            # (T*B, A)
    pb = jnp.dot(hb.reshape(T * B, H), w1b_ref[...],
                 preferred_element_type=jnp.float32)
    u = jnp.tanh((pf + pb).reshape(T, B, A) + b1_ref[...])      # (T, B, A)
    scores = jnp.sum(u * w2_ref[...], axis=-1, keepdims=True)   # (T, B, 1)
    mask = m_ref[...]                                           # (T, B, 1)
    scores = jnp.where(mask > 0.0, scores, jnp.float32(-1e30))
    scores = scores - jnp.max(scores, axis=0, keepdims=True)
    e = jnp.exp(scores)
    alpha = e / jnp.sum(e, axis=0, keepdims=True)               # (T, B, 1)
    alpha_ref[...] = jnp.transpose(alpha.reshape(T, B))         # (B, T) lane-dense

    sent_f = jnp.sum(alpha * hf, axis=0)                        # (B, H)
    sent_b = jnp.sum(alpha * hb, axis=0)                        # (B, H)

    # dropout(p=0.5) -> identity at inference; no activation between the MLP
    # and classifier layers (matches the reference module).
    mlp = (jnp.dot(sent_f, wmf_ref[...], preferred_element_type=jnp.float32)
           + jnp.dot(sent_b, wmb_ref[...], preferred_element_type=jnp.float32)
           + bm_ref[...])                                       # (B, M)
    logits_ref[...] = (jnp.dot(mlp, wc_ref[...],
                               preferred_element_type=jnp.float32)
                       + bc_ref[...])                           # (B, Cp)


def init_params(key, vocab_size, word_dim, lstm_dim, mlp_dim, n_class):
    ks = jax.random.split(key, 16)

    def rnd(k, shape, scale=0.1):
        return scale * jax.random.normal(k, shape, dtype=jnp.float32)

    H, D, A, M, C = lstm_dim, word_dim, lstm_dim, mlp_dim, n_class
    return dict(
        we=rnd(ks[0], (vocab_size, D)),
        wih_f=rnd(ks[1], (4 * H, D)), whh_f=rnd(ks[2], (4 * H, H)),
        bih_f=rnd(ks[3], (4 * H,)),   bhh_f=rnd(ks[4], (4 * H,)),
        wih_b=rnd(ks[5], (4 * H, D)), whh_b=rnd(ks[6], (4 * H, H)),
        bih_b=rnd(ks[7], (4 * H,)),   bhh_b=rnd(ks[8], (4 * H,)),
        w_att1=rnd(ks[9], (A, 2 * H)), b_att1=rnd(ks[10], (A,)),
        w_att2=rnd(ks[11], (1, A)),
        w_mlp=rnd(ks[12], (M, 2 * H)), b_mlp=rnd(ks[13], (M,)),
        w_cls=rnd(ks[14], (C, M)),     b_cls=rnd(ks[15], (C,)),
    )


def bilstm_classifier_forward(x, x_len, params, return_alpha=False):
    B, T = x.shape
    D = params['we'].shape[1]
    H = params['whh_f'].shape[1]
    A = params['w_att1'].shape[0]
    M = params['w_mlp'].shape[0]
    C = params['w_cls'].shape[0]

    B_BLK = 8                                    # f32 sublane tile
    B_pad = ((B + B_BLK - 1) // B_BLK) * B_BLK
    C_pad = 128                                  # lane-dense logits store

    # ---- glue: embedding gather + layout shuffles / weight packing ----
    emb = params['we'][x]                        # (B, T, D) gather
    x_tbd = jnp.transpose(emb, (1, 0, 2))        # time-major (T, B, D)
    mask = (jnp.arange(T)[None, :] < x_len[:, None]).astype(jnp.float32)
    m_tb1 = jnp.transpose(mask)[:, :, None]      # (T, B, 1)
    if B_pad != B:
        x_tbd = jnp.pad(x_tbd, ((0, 0), (0, B_pad - B), (0, 0)))
        m_tb1 = jnp.pad(m_tb1, ((0, 0), (0, B_pad - B), (0, 0)))

    # fused input-projection weights (both directions): (D, 8H)
    wih_cat = jnp.concatenate([params['wih_f'].T, params['wih_b'].T], axis=1)
    # block-diagonal recurrent weights: (2H, 8H)
    whh_blk = jnp.zeros((2 * H, 8 * H), jnp.float32)
    whh_blk = whh_blk.at[:H, :4 * H].set(params['whh_f'].T)
    whh_blk = whh_blk.at[H:, 4 * H:].set(params['whh_b'].T)
    b_cat = jnp.concatenate([params['bih_f'] + params['bhh_f'],
                             params['bih_b'] + params['bhh_b']]).reshape(1, 8 * H)

    w1 = params['w_att1'].T                      # (2H, A)
    w1f, w1b = w1[:H], w1[H:]
    b1 = params['b_att1'].reshape(1, 1, A)
    w2 = params['w_att2'].reshape(1, 1, A)

    wm = params['w_mlp'].T                       # (2H, M)
    wmf, wmb = wm[:H], wm[H:]
    bm = params['b_mlp'].reshape(1, M)
    wc = jnp.zeros((M, C_pad), jnp.float32).at[:, :C].set(params['w_cls'].T)
    bc = jnp.zeros((1, C_pad), jnp.float32).at[:, :C].set(params['b_cls'])

    def full(a):
        return pl.BlockSpec(a.shape, lambda b: (0,) * a.ndim)

    grid = (B_pad // B_BLK,)
    in_specs = [
        pl.BlockSpec((T, B_BLK, D), lambda b: (0, b, 0)),
        pl.BlockSpec((T, B_BLK, 1), lambda b: (0, b, 0)),
        full(wih_cat), full(whh_blk), full(b_cat),
        full(w1f), full(w1b), full(b1), full(w2),
        full(wmf), full(wmb), full(bm), full(wc), full(bc),
    ]
    out_specs = (
        pl.BlockSpec((B_BLK, C_pad), lambda b: (b, 0)),
        pl.BlockSpec((B_BLK, T), lambda b: (b, 0)),
    )

    logits_pad, alpha_bt = pl.pallas_call(
        _bilstm_attention_kernel,
        out_shape=(jax.ShapeDtypeStruct((B_pad, C_pad), jnp.float32),
                   jax.ShapeDtypeStruct((B_pad, T), jnp.float32)),
        grid=grid,
        in_specs=in_specs,
        out_specs=out_specs,
        scratch_shapes=[
            pltpu.VMEM((T, B_BLK, 8 * H), jnp.float32),  # hoisted input proj
            pltpu.VMEM((T, B_BLK, H), jnp.float32),      # forward hidden
            pltpu.VMEM((T, B_BLK, H), jnp.float32),      # backward hidden
        ],
        compiler_params=pltpu.CompilerParams(
            dimension_semantics=("parallel",)),
    )(x_tbd, m_tb1, wih_cat, whh_blk, b_cat, w1f, w1b, b1, w2,
      wmf, wmb, bm, wc, bc)

    logits = logits_pad[:B, :C]
    alpha = alpha_bt[:B, :]
    if return_alpha:
        return logits, alpha
    return logits


if __name__ == "__main__":
    vocab_size, word_dim, lstm_dim, mlp_dim, n_class = 50, 32, 32, 32, 4
    B, T = 2, 8

    key = jax.random.PRNGKey(0)
    pkey, xkey = jax.random.split(key)
    params = init_params(pkey, vocab_size, word_dim, lstm_dim, mlp_dim, n_class)

    x = jax.random.randint(xkey, (B, T), 0, vocab_size, dtype=jnp.int32)
    x_len = jnp.array([T, 5], dtype=jnp.int32)      # second sequence is padded

    logits, alpha = bilstm_classifier_forward(x, x_len, params, return_alpha=True)
    jax.block_until_ready((logits, alpha))

    assert logits.shape == (B, n_class) and alpha.shape == (B, T)
    assert bool(jnp.all(jnp.isfinite(logits))) and bool(jnp.all(jnp.isfinite(alpha)))
    print("KERNEL_OK")
</pallas_src>

<mosaic_0001>
module attributes {stable_mosaic.version = 11 : i64} {
  func.func @_bilstm_attention_kernel(%arg0: i32, %arg1: memref<8x8x32xf32, #tpu.memory_space<vmem>>, %arg2: memref<8x8x1xf32, #tpu.memory_space<vmem>>, %arg3: memref<32x256xf32, #tpu.memory_space<vmem>>, %arg4: memref<64x256xf32, #tpu.memory_space<vmem>>, %arg5: memref<1x256xf32, #tpu.memory_space<vmem>>, %arg6: memref<32x32xf32, #tpu.memory_space<vmem>>, %arg7: memref<32x32xf32, #tpu.memory_space<vmem>>, %arg8: memref<1x1x32xf32, #tpu.memory_space<vmem>>, %arg9: memref<1x1x32xf32, #tpu.memory_space<vmem>>, %arg10: memref<32x32xf32, #tpu.memory_space<vmem>>, %arg11: memref<32x32xf32, #tpu.memory_space<vmem>>, %arg12: memref<1x32xf32, #tpu.memory_space<vmem>>, %arg13: memref<32x128xf32, #tpu.memory_space<vmem>>, %arg14: memref<1x128xf32, #tpu.memory_space<vmem>>, %arg15: memref<8x128xf32, #tpu.memory_space<vmem>>, %arg16: memref<8x8xf32, #tpu.memory_space<vmem>>, %arg17: memref<8x8x256xf32, #tpu.memory_space<vmem>>, %arg18: memref<8x8x32xf32, #tpu.memory_space<vmem>>, %arg19: memref<8x8x32xf32, #tpu.memory_space<vmem>>) attributes {dimension_semantics = [#tpu.dimension_semantics<parallel>], iteration_bounds = array<i64: 1>, scalar_prefetch = 0 : i64, scratch_operands = 3 : i64, tpu.core_type = #tpu.core_type<tc>, window_params = [{transform_indices = @transform_0, window_bounds = array<i64: 8, 8, 32>}, {transform_indices = @transform_1, window_bounds = array<i64: 8, 8, 1>}, {pipeline_mode = #tpu.pipeline_mode<synchronous>, transform_indices = @transform_2, window_bounds = array<i64: 32, 256>}, {pipeline_mode = #tpu.pipeline_mode<synchronous>, transform_indices = @transform_3, window_bounds = array<i64: 64, 256>}, {pipeline_mode = #tpu.pipeline_mode<synchronous>, transform_indices = @transform_4, window_bounds = array<i64: 1, 256>}, {pipeline_mode = #tpu.pipeline_mode<synchronous>, transform_indices = @transform_5, window_bounds = array<i64: 32, 32>}, {pipeline_mode = #tpu.pipeline_mode<synchronous>, transform_indices = @transform_6, window_bounds = array<i64: 32, 32>}, {pipeline_mode = #tpu.pipeline_mode<synchronous>, transform_indices = @transform_7, window_bounds = array<i64: 1, 1, 32>}, {pipeline_mode = #tpu.pipeline_mode<synchronous>, transform_indices = @transform_8, window_bounds = array<i64: 1, 1, 32>}, {pipeline_mode = #tpu.pipeline_mode<synchronous>, transform_indices = @transform_9, window_bounds = array<i64: 32, 32>}, {pipeline_mode = #tpu.pipeline_mode<synchronous>, transform_indices = @transform_10, window_bounds = array<i64: 32, 32>}, {pipeline_mode = #tpu.pipeline_mode<synchronous>, transform_indices = @transform_11, window_bounds = array<i64: 1, 32>}, {pipeline_mode = #tpu.pipeline_mode<synchronous>, transform_indices = @transform_12, window_bounds = array<i64: 32, 128>}, {pipeline_mode = #tpu.pipeline_mode<synchronous>, transform_indices = @transform_13, window_bounds = array<i64: 1, 128>}, {transform_indices = @transform_14, window_bounds = array<i64: 8, 128>}, {transform_indices = @transform_15, window_bounds = array<i64: 8, 8>}]} {
    %c0 = arith.constant 0 : index
    %c0_0 = arith.constant 0 : index
    %c0_1 = arith.constant 0 : index
    %0 = vector.load %arg1[%c0, %c0_0, %c0_1] : memref<8x8x32xf32, #tpu.memory_space<vmem>>, vector<8x8x32xf32>
    %1 = vector.shape_cast %0 : vector<8x8x32xf32> to vector<64x32xf32>
    %c0_2 = arith.constant 0 : index
    %c0_3 = arith.constant 0 : index
    %2 = vector.load %arg3[%c0_2, %c0_3] : memref<32x256xf32, #tpu.memory_space<vmem>>, vector<32x256xf32>
    %cst = arith.constant dense<0.000000e+00> : vector<64x256xf32>
    %3 = tpu.matmul %1, %2, %cst {dimension_numbers = #tpu.dot_dimension_numbers<[1], [0], [0], [1], [0, 0, 1, 1], [], []>} : vector<64x32xf32>, vector<32x256xf32>, vector<64x256xf32> -> vector<64x256xf32>
    %4 = vector.shape_cast %3 : vector<64x256xf32> to vector<8x8x256xf32>
    %c0_4 = arith.constant 0 : index
    %c0_5 = arith.constant 0 : index
    %c0_6 = arith.constant 0 : index
    %5 = vector.load %arg17[%c0_4, %c0_5, %c0_6] : memref<8x8x256xf32, #tpu.memory_space<vmem>>, vector<8x8x256xf32>
    tpu.vector_store %arg17[%c0_4, %c0_5, %c0_6], %4 {strides = array<i32>} : memref<8x8x256xf32, #tpu.memory_space<vmem>>, vector<8x8x256xf32>,
    %c0_7 = arith.constant 0 : index
    %c0_8 = arith.constant 0 : index
    %6 = vector.load %arg4[%c0_7, %c0_8] : memref<64x256xf32, #tpu.memory_space<vmem>>, vector<64x256xf32>
    %c0_9 = arith.constant 0 : index
    %c0_10 = arith.constant 0 : index
    %7 = vector.load %arg5[%c0_9, %c0_10] : memref<1x256xf32, #tpu.memory_space<vmem>>, vector<1x256xf32>
    %cst_11 = arith.constant 0.000000e+00 : f32
    %8 = vector.broadcast %cst_11 : f32 to vector<8x64xf32>
    %cst_12 = arith.constant 0.000000e+00 : f32
    %9 = vector.broadcast %cst_12 : f32 to vector<8x32xf32>
    %c0_i32 = arith.constant 0 : i32
    %c7_i32 = arith.constant 7 : i32
    %10 = arith.subi %c7_i32, %c0_i32 : i32
    %cst_13 = arith.constant dense<0.000000e+00> : vector<8x256xf32>
    %11 = tpu.matmul %8, %6, %cst_13 {dimension_numbers = #tpu.dot_dimension_numbers<[1], [0], [0], [1], [0, 0, 1, 1], [], []>} : vector<8x64xf32>, vector<64x256xf32>, vector<8x256xf32> -> vector<8x256xf32>
    %12 = vector.broadcast %7 : vector<1x256xf32> to vector<8x256xf32>
    %13 = arith.addf %11, %12 : vector<8x256xf32>
    %14 = arith.index_cast %c0_i32 : i32 to index
    %c0_14 = arith.constant 0 : index
    %c0_15 = arith.constant 0 : index
    %15 = vector.load %arg17[%14, %c0_14, %c0_15] : memref<8x8x256xf32, #tpu.memory_space<vmem>>, vector<1x8x256xf32>
    %16 = vector.shape_cast %15 : vector<1x8x256xf32> to vector<8x256xf32>
    %17 = vector.extract_strided_slice %16 {offsets = [0, 0], sizes = [8, 128], strides = [1, 1]} : vector<8x256xf32> to vector<8x128xf32>
    %18 = vector.extract_strided_slice %13 {offsets = [0, 0], sizes = [8, 128], strides = [1, 1]} : vector<8x256xf32> to vector<8x128xf32>
    %19 = arith.addf %17, %18 : vector<8x128xf32>
    %20 = arith.index_cast %10 : i32 to index
    %c0_16 = arith.constant 0 : index
    %c0_17 = arith.constant 0 : index
    %21 = vector.load %arg17[%20, %c0_16, %c0_17] : memref<8x8x256xf32, #tpu.memory_space<vmem>>, vector<1x8x256xf32>
    %22 = vector.shape_cast %21 : vector<1x8x256xf32> to vector<8x256xf32>
    %23 = vector.extract_strided_slice %22 {offsets = [0, 128], sizes = [8, 128], strides = [1, 1]} : vector<8x256xf32> to vector<8x128xf32>
    %24 = vector.extract_strided_slice %13 {offsets = [0, 128], sizes = [8, 128], strides = [1, 1]} : vector<8x256xf32> to vector<8x128xf32>
    %25 = arith.addf %23, %24 : vector<8x128xf32>
    %26 = vector.extract_strided_slice %19 {offsets = [0, 0], sizes = [8, 32], strides = [1, 1]} : vector<8x128xf32> to vector<8x32xf32>
    %27 = arith.negf %26 : vector<8x32xf32>
    %28 = math.exp %27 : vector<8x32xf32>
    %cst_18 = arith.constant 1.000000e+00 : f32
    %29 = vector.broadcast %cst_18 : f32 to vector<8x32xf32>
    %30 = arith.addf %29, %28 : vector<8x32xf32>
    %31 = arith.divf %29, %30 : vector<8x32xf32>
    %32 = vector.extract_strided_slice %19 {offsets = [0, 32], sizes = [8, 32], strides = [1, 1]} : vector<8x128xf32> to vector<8x32xf32>
    %33 = arith.negf %32 : vector<8x32xf32>
    %34 = math.exp %33 : vector<8x32xf32>
    %cst_19 = arith.constant 1.000000e+00 : f32
    %35 = vector.broadcast %cst_19 : f32 to vector<8x32xf32>
    %36 = arith.addf %35, %34 : vector<8x32xf32>
    %37 = arith.divf %35, %36 : vector<8x32xf32>
    %38 = vector.extract_strided_slice %19 {offsets = [0, 64], sizes = [8, 32], strides = [1, 1]} : vector<8x128xf32> to vector<8x32xf32>
    %39 = math.tanh %38 : vector<8x32xf32>
    %40 = vector.extract_strided_slice %19 {offsets = [0, 96], sizes = [8, 32], strides = [1, 1]} : vector<8x128xf32> to vector<8x32xf32>
    %41 = arith.negf %40 : vector<8x32xf32>
    %42 = math.exp %41 : vector<8x32xf32>
    %cst_20 = arith.constant 1.000000e+00 : f32
    %43 = vector.broadcast %cst_20 : f32 to vector<8x32xf32>
    %44 = arith.addf %43, %42 : vector<8x32xf32>
    %45 = arith.divf %43, %44 : vector<8x32xf32>
    %46 = arith.mulf %37, %9 : vector<8x32xf32>
    %47 = arith.mulf %31, %39 : vector<8x32xf32>
    %48 = arith.addf %46, %47 : vector<8x32xf32>
    %49 = math.tanh %48 : vector<8x32xf32>
    %50 = arith.mulf %45, %49 : vector<8x32xf32>
    %51 = vector.extract_strided_slice %25 {offsets = [0, 0], sizes = [8, 32], strides = [1, 1]} : vector<8x128xf32> to vector<8x32xf32>
    %52 = arith.negf %51 : vector<8x32xf32>
    %53 = math.exp %52 : vector<8x32xf32>
    %cst_21 = arith.constant 1.000000e+00 : f32
    %54 = vector.broadcast %cst_21 : f32 to vector<8x32xf32>
    %55 = arith.addf %54, %53 : vector<8x32xf32>
    %56 = arith.divf %54, %55 : vector<8x32xf32>
    %57 = vector.extract_strided_slice %25 {offsets = [0, 32], sizes = [8, 32], strides = [1, 1]} : vector<8x128xf32> to vector<8x32xf32>
    %58 = arith.negf %57 : vector<8x32xf32>
    %59 = math.exp %58 : vector<8x32xf32>
    %cst_22 = arith.constant 1.000000e+00 : f32
    %60 = vector.broadcast %cst_22 : f32 to vector<8x32xf32>
    %61 = arith.addf %60, %59 : vector<8x32xf32>
    %62 = arith.divf %60, %61 : vector<8x32xf32>
    %63 = vector.extract_strided_slice %25 {offsets = [0, 64], sizes = [8, 32], strides = [1, 1]} : vector<8x128xf32> to vector<8x32xf32>
    %64 = math.tanh %63 : vector<8x32xf32>
    %65 = vector.extract_strided_slice %25 {offsets = [0, 96], sizes = [8, 32], strides = [1, 1]} : vector<8x128xf32> to vector<8x32xf32>
    %66 = arith.negf %65 : vector<8x32xf32>
    %67 = math.exp %66 : vector<8x32xf32>
    %cst_23 = arith.constant 1.000000e+00 : f32
    %68 = vector.broadcast %cst_23 : f32 to vector<8x32xf32>
    %69 = arith.addf %68, %67 : vector<8x32xf32>
    %70 = arith.divf %68, %69 : vector<8x32xf32>
    %71 = arith.mulf %62, %9 : vector<8x32xf32>
    %72 = arith.mulf %56, %64 : vector<8x32xf32>
    %73 = arith.addf %71, %72 : vector<8x32xf32>
    %74 = math.tanh %73 : vector<8x32xf32>
    %75 = arith.mulf %70, %74 : vector<8x32xf32>
    %76 = arith.index_cast %c0_i32 : i32 to index
    %c0_24 = arith.constant 0 : index
    %c0_25 = arith.constant 0 : index
    %77 = vector.load %arg2[%76, %c0_24, %c0_25] : memref<8x8x1xf32, #tpu.memory_space<vmem>>, vector<1x8x1xf32>
    %78 = vector.shape_cast %77 : vector<1x8x1xf32> to vector<8x1xf32>
    %cst_26 = arith.constant 0.000000e+00 : f32
    %79 = vector.broadcast %cst_26 : f32 to vector<8x1xf32>
    %80 = arith.cmpf ogt, %78, %79 : vector<8x1xf32>
    %81 = arith.index_cast %10 : i32 to index
    %c0_27 = arith.constant 0 : index
    %c0_28 = arith.constant 0 : index
    %82 = vector.load %arg2[%81, %c0_27, %c0_28] : memref<8x8x1xf32, #tpu.memory_space<vmem>>, vector<1x8x1xf32>
    %83 = vector.shape_cast %82 : vector<1x8x1xf32> to vector<8x1xf32>
    %cst_29 = arith.constant 0.000000e+00 : f32
    %84 = vector.broadcast %cst_29 : f32 to vector<8x1xf32>
    %85 = arith.cmpf ogt, %83, %84 : vector<8x1xf32>
    %86 = vector.shape_cast %80 : vector<8x1xi1> to vector<8x1xi1>
    %87 = vector.broadcast %86 : vector<8x1xi1> to vector<8x32xi1>
    %88 = arith.select %87, %48, %9 : vector<8x32xi1>, vector<8x32xf32>
    %89 = vector.shape_cast %85 : vector<8x1xi1> to vector<8x1xi1>
    %90 = vector.broadcast %89 : vector<8x1xi1> to vector<8x32xi1>
    %91 = arith.select %90, %73, %9 : vector<8x32xi1>, vector<8x32xf32>
    %cst_30 = arith.constant 0.000000e+00 : f32
    %92 = vector.shape_cast %80 : vector<8x1xi1> to vector<8x1xi1>
    %93 = vector.broadcast %92 : vector<8x1xi1> to vector<8x32xi1>
    %94 = vector.broadcast %cst_30 : f32 to vector<8x32xf32>
    %95 = arith.select %93, %50, %94 : vector<8x32xi1>, vector<8x32xf32>
    %96 = arith.index_cast %c0_i32 : i32 to index
    %c0_31 = arith.constant 0 : index
    %c0_32 = arith.constant 0 : index
    %97 = vector.load %arg18[%96, %c0_31, %c0_32] : memref<8x8x32xf32, #tpu.memory_space<vmem>>, vector<1x8x32xf32>
    %98 = vector.shape_cast %97 : vector<1x8x32xf32> to vector<8x32xf32>
    %99 = vector.shape_cast %95 : vector<8x32xf32> to vector<1x8x32xf32>
    tpu.vector_store %arg18[%96, %c0_31, %c0_32], %99 {strides = array<i32>} : memref<8x8x32xf32, #tpu.memory_space<vmem>>, vector<1x8x32xf32>,
    %cst_33 = arith.constant 0.000000e+00 : f32
    %100 = vector.shape_cast %85 : vector<8x1xi1> to vector<8x1xi1>
    %101 = vector.broadcast %100 : vector<8x1xi1> to vector<8x32xi1>
    %102 = vector.broadcast %cst_33 : f32 to vector<8x32xf32>
    %103 = arith.select %101, %75, %102 : vector<8x32xi1>, vector<8x32xf32>
    %104 = arith.index_cast %10 : i32 to index
    %c0_34 = arith.constant 0 : index
    %c0_35 = arith.constant 0 : index
    %105 = vector.load %arg19[%104, %c0_34, %c0_35] : memref<8x8x32xf32, #tpu.memory_space<vmem>>, vector<1x8x32xf32>
    %106 = vector.shape_cast %105 : vector<1x8x32xf32> to vector<8x32xf32>
    %107 = vector.shape_cast %103 : vector<8x32xf32> to vector<1x8x32xf32>
    tpu.vector_store %arg19[%104, %c0_34, %c0_35], %107 {strides = array<i32>} : memref<8x8x32xf32, #tpu.memory_space<vmem>>, vector<1x8x32xf32>,
    %108 = vector.extract_strided_slice %8 {offsets = [0, 0], sizes = [8, 32], strides = [1, 1]} : vector<8x64xf32> to vector<8x32xf32>
    %109 = vector.shape_cast %80 : vector<8x1xi1> to vector<8x1xi1>
    %110 = vector.broadcast %109 : vector<8x1xi1> to vector<8x32xi1>
    %111 = arith.select %110, %50, %108 : vector<8x32xi1>, vector<8x32xf32>
    %112 = vector.extract_strided_slice %8 {offsets = [0, 32], sizes = [8, 32], strides = [1, 1]} : vector<8x64xf32> to vector<8x32xf32>
    %113 = vector.shape_cast %85 : vector<8x1xi1> to vector<8x1xi1>
    %114 = vector.broadcast %113 : vector<8x1xi1> to vector<8x32xi1>
    %115 = arith.select %114, %75, %112 : vector<8x32xi1>, vector<8x32xf32>
    %116 = tpu.concatenate %111, %115 in 1 : vector<8x32xf32>, vector<8x32xf32> -> vector<8x64xf32>
    %c1_i32 = arith.constant 1 : i32
    %c7_i32_36 = arith.constant 7 : i32
    %117 = arith.subi %c7_i32_36, %c1_i32 : i32
    %cst_37 = arith.constant dense<0.000000e+00> : vector<8x256xf32>
    %118 = tpu.matmul %116, %6, %cst_37 {dimension_numbers = #tpu.dot_dimension_numbers<[1], [0], [0], [1], [0, 0, 1, 1], [], []>} : vector<8x64xf32>, vector<64x256xf32>, vector<8x256xf32> -> vector<8x256xf32>
    %119 = vector.broadcast %7 : vector<1x256xf32> to vector<8x256xf32>
    %120 = arith.addf %118, %119 : vector<8x256xf32>
    %121 = arith.index_cast %c1_i32 : i32 to index
    %c0_38 = arith.constant 0 : index
    %c0_39 = arith.constant 0 : index
    %122 = vector.load %arg17[%121, %c0_38, %c0_39] : memref<8x8x256xf32, #tpu.memory_space<vmem>>, vector<1x8x256xf32>
    %123 = vector.shape_cast %122 : vector<1x8x256xf32> to vector<8x256xf32>
    %124 = vector.extract_strided_slice %123 {offsets = [0, 0], sizes = [8, 128], strides = [1, 1]} : vector<8x256xf32> to vector<8x128xf32>
    %125 = vector.extract_strided_slice %120 {offsets = [0, 0], sizes = [8, 128], strides = [1, 1]} : vector<8x256xf32> to vector<8x128xf32>
    %126 = arith.addf %124, %125 : vector<8x128xf32>
    %127 = arith.index_cast %117 : i32 to index
    %c0_40 = arith.constant 0 : index
    %c0_41 = arith.constant 0 : index
    %128 = vector.load %arg17[%127, %c0_40, %c0_41] : memref<8x8x256xf32, #tpu.memory_space<vmem>>, vector<1x8x256xf32>
    %129 = vector.shape_cast %128 : vector<1x8x256xf32> to vector<8x256xf32>
    %130 = vector.extract_strided_slice %129 {offsets = [0, 128], sizes = [8, 128], strides = [1, 1]} : vector<8x256xf32> to vector<8x128xf32>
    %131 = vector.extract_strided_slice %120 {offsets = [0, 128], sizes = [8, 128], strides = [1, 1]} : vector<8x256xf32> to vector<8x128xf32>
    %132 = arith.addf %130, %131 : vector<8x128xf32>
    %133 = vector.extract_strided_slice %126 {offsets = [0, 0], sizes = [8, 32], strides = [1, 1]} : vector<8x128xf32> to vector<8x32xf32>
    %134 = arith.negf %133 : vector<8x32xf32>
    %135 = math.exp %134 : vector<8x32xf32>
    %cst_42 = arith.constant 1.000000e+00 : f32
    %136 = vector.broadcast %cst_42 : f32 to vector<8x32xf32>
    %137 = arith.addf %136, %135 : vector<8x32xf32>
    %138 = arith.divf %136, %137 : vector<8x32xf32>
    %139 = vector.extract_strided_slice %126 {offsets = [0, 32], sizes = [8, 32], strides = [1, 1]} : vector<8x128xf32> to vector<8x32xf32>
    %140 = arith.negf %139 : vector<8x32xf32>
    %141 = math.exp %140 : vector<8x32xf32>
    %cst_43 = arith.constant 1.000000e+00 : f32
    %142 = vector.broadcast %cst_43 : f32 to vector<8x32xf32>
    %143 = arith.addf %142, %141 : vector<8x32xf32>
    %144 = arith.divf %142, %143 : vector<8x32xf32>
    %145 = vector.extract_strided_slice %126 {offsets = [0, 64], sizes = [8, 32], strides = [1, 1]} : vector<8x128xf32> to vector<8x32xf32>
    %146 = math.tanh %145 : vector<8x32xf32>
    %147 = vector.extract_strided_slice %126 {offsets = [0, 96], sizes = [8, 32], strides = [1, 1]} : vector<8x128xf32> to vector<8x32xf32>
    %148 = arith.negf %147 : vector<8x32xf32>
    %149 = math.exp %148 : vector<8x32xf32>
    %cst_44 = arith.constant 1.000000e+00 : f32
    %150 = vector.broadcast %cst_44 : f32 to vector<8x32xf32>
    %151 = arith.addf %150, %149 : vector<8x32xf32>
    %152 = arith.divf %150, %151 : vector<8x32xf32>
    %153 = arith.mulf %144, %88 : vector<8x32xf32>
    %154 = arith.mulf %138, %146 : vector<8x32xf32>
    %155 = arith.addf %153, %154 : vector<8x32xf32>
    %156 = math.tanh %155 : vector<8x32xf32>
    %157 = arith.mulf %152, %156 : vector<8x32xf32>
    %158 = vector.extract_strided_slice %132 {offsets = [0, 0], sizes = [8, 32], strides = [1, 1]} : vector<8x128xf32> to vector<8x32xf32>
    %159 = arith.negf %158 : vector<8x32xf32>
    %160 = math.exp %159 : vector<8x32xf32>
    %cst_45 = arith.constant 1.000000e+00 : f32
    %161 = vector.broadcast %cst_45 : f32 to vector<8x32xf32>
    %162 = arith.addf %161, %160 : vector<8x32xf32>
    %163 = arith.divf %161, %162 : vector<8x32xf32>
    %164 = vector.extract_strided_slice %132 {offsets = [0, 32], sizes = [8, 32], strides = [1, 1]} : vector<8x128xf32> to vector<8x32xf32>
    %165 = arith.negf %164 : vector<8x32xf32>
    %166 = math.exp %165 : vector<8x32xf32>
    %cst_46 = arith.constant 1.000000e+00 : f32
    %167 = vector.broadcast %cst_46 : f32 to vector<8x32xf32>
    %168 = arith.addf %167, %166 : vector<8x32xf32>
    %169 = arith.divf %167, %168 : vector<8x32xf32>
    %170 = vector.extract_strided_slice %132 {offsets = [0, 64], sizes = [8, 32], strides = [1, 1]} : vector<8x128xf32> to vector<8x32xf32>
    %171 = math.tanh %170 : vector<8x32xf32>
    %172 = vector.extract_strided_slice %132 {offsets = [0, 96], sizes = [8, 32], strides = [1, 1]} : vector<8x128xf32> to vector<8x32xf32>
    %173 = arith.negf %172 : vector<8x32xf32>
    %174 = math.exp %173 : vector<8x32xf32>
    %cst_47 = arith.constant 1.000000e+00 : f32
    %175 = vector.broadcast %cst_47 : f32 to vector<8x32xf32>
    %176 = arith.addf %175, %174 : vector<8x32xf32>
    %177 = arith.divf %175, %176 : vector<8x32xf32>
    %178 = arith.mulf %169, %91 : vector<8x32xf32>
    %179 = arith.mulf %163, %171 : vector<8x32xf32>
    %180 = arith.addf %178, %179 : vector<8x32xf32>
    %181 = math.tanh %180 : vector<8x32xf32>
    %182 = arith.mulf %177, %181 : vector<8x32xf32>
    %183 = arith.index_cast %c1_i32 : i32 to index
    %c0_48 = arith.constant 0 : index
    %c0_49 = arith.constant 0 : index
    %184 = vector.load %arg2[%183, %c0_48, %c0_49] : memref<8x8x1xf32, #tpu.memory_space<vmem>>, vector<1x8x1xf32>
    %185 = vector.shape_cast %184 : vector<1x8x1xf32> to vector<8x1xf32>
    %cst_50 = arith.constant 0.000000e+00 : f32
    %186 = vector.broadcast %cst_50 : f32 to vector<8x1xf32>
    %187 = arith.cmpf ogt, %185, %186 : vector<8x1xf32>
    %188 = arith.index_cast %117 : i32 to index
    %c0_51 = arith.constant 0 : index
    %c0_52 = arith.constant 0 : index
    %189 = vector.load %arg2[%188, %c0_51, %c0_52] : memref<8x8x1xf32, #tpu.memory_space<vmem>>, vector<1x8x1xf32>
    %190 = vector.shape_cast %189 : vector<1x8x1xf32> to vector<8x1xf32>
    %cst_53 = arith.constant 0.000000e+00 : f32
    %191 = vector.broadcast %cst_53 : f32 to vector<8x1xf32>
    %192 = arith.cmpf ogt, %190, %191 : vector<8x1xf32>
    %193 = vector.shape_cast %187 : vector<8x1xi1> to vector<8x1xi1>
    %194 = vector.broadcast %193 : vector<8x1xi1> to vector<8x32xi1>
    %195 = arith.select %194, %155, %88 : vector<8x32xi1>, vector<8x32xf32>
    %196 = vector.shape_cast %192 : vector<8x1xi1> to vector<8x1xi1>
    %197 = vector.broadcast %196 : vector<8x1xi1> to vector<8x32xi1>
    %198 = arith.select %197, %180, %91 : vector<8x32xi1>, vector<8x32xf32>
    %cst_54 = arith.constant 0.000000e+00 : f32
    %199 = vector.shape_cast %187 : vector<8x1xi1> to vector<8x1xi1>
    %200 = vector.broadcast %199 : vector<8x1xi1> to vector<8x32xi1>
    %201 = vector.broadcast %cst_54 : f32 to vector<8x32xf32>
    %202 = arith.select %200, %157, %201 : vector<8x32xi1>, vector<8x32xf32>
    %203 = arith.index_cast %c1_i32 : i32 to index
    %c0_55 = arith.constant 0 : index
    %c0_56 = arith.constant 0 : index
    %204 = vector.load %arg18[%203, %c0_55, %c0_56] : memref<8x8x32xf32, #tpu.memory_space<vmem>>, vector<1x8x32xf32>
    %205 = vector.shape_cast %204 : vector<1x8x32xf32> to vector<8x32xf32>
    %206 = vector.shape_cast %202 : vector<8x32xf32> to vector<1x8x32xf32>
    tpu.vector_store %arg18[%203, %c0_55, %c0_56], %206 {strides = array<i32>} : memref<8x8x32xf32, #tpu.memory_space<vmem>>, vector<1x8x32xf32>,
    %cst_57 = arith.constant 0.000000e+00 : f32
    %207 = vector.shape_cast %192 : vector<8x1xi1> to vector<8x1xi1>
    %208 = vector.broadcast %207 : vector<8x1xi1> to vector<8x32xi1>
    %209 = vector.broadcast %cst_57 : f32 to vector<8x32xf32>
    %210 = arith.select %208, %182, %209 : vector<8x32xi1>, vector<8x32xf32>
    %211 = arith.index_cast %117 : i32 to index
    %c0_58 = arith.constant 0 : index
    %c0_59 = arith.constant 0 : index
    %212 = vector.load %arg19[%211, %c0_58, %c0_59] : memref<8x8x32xf32, #tpu.memory_space<vmem>>, vector<1x8x32xf32>
    %213 = vector.shape_cast %212 : vector<1x8x32xf32> to vector<8x32xf32>
    %214 = vector.shape_cast %210 : vector<8x32xf32> to vector<1x8x32xf32>
    tpu.vector_store %arg19[%211, %c0_58, %c0_59], %214 {strides = array<i32>} : memref<8x8x32xf32, #tpu.memory_space<vmem>>, vector<1x8x32xf32>,
    %215 = vector.extract_strided_slice %116 {offsets = [0, 0], sizes = [8, 32], strides = [1, 1]} : vector<8x64xf32> to vector<8x32xf32>
    %216 = vector.shape_cast %187 : vector<8x1xi1> to vector<8x1xi1>
    %217 = vector.broadcast %216 : vector<8x1xi1> to vector<8x32xi1>
    %218 = arith.select %217, %157, %215 : vector<8x32xi1>, vector<8x32xf32>
    %219 = vector.extract_strided_slice %116 {offsets = [0, 32], sizes = [8, 32], strides = [1, 1]} : vector<8x64xf32> to vector<8x32xf32>
    %220 = vector.shape_cast %192 : vector<8x1xi1> to vector<8x1xi1>
    %221 = vector.broadcast %220 : vector<8x1xi1> to vector<8x32xi1>
    %222 = arith.select %221, %182, %219 : vector<8x32xi1>, vector<8x32xf32>
    %223 = tpu.concatenate %218, %222 in 1 : vector<8x32xf32>, vector<8x32xf32> -> vector<8x64xf32>
    %c2_i32 = arith.constant 2 : i32
    %c7_i32_60 = arith.constant 7 : i32
    %224 = arith.subi %c7_i32_60, %c2_i32 : i32
    %cst_61 = arith.constant dense<0.000000e+00> : vector<8x256xf32>
    %225 = tpu.matmul %223, %6, %cst_61 {dimension_numbers = #tpu.dot_dimension_numbers<[1], [0], [0], [1], [0, 0, 1, 1], [], []>} : vector<8x64xf32>, vector<64x256xf32>, vector<8x256xf32> -> vector<8x256xf32>
    %226 = vector.broadcast %7 : vector<1x256xf32> to vector<8x256xf32>
    %227 = arith.addf %225, %226 : vector<8x256xf32>
    %228 = arith.index_cast %c2_i32 : i32 to index
    %c0_62 = arith.constant 0 : index
    %c0_63 = arith.constant 0 : index
    %229 = vector.load %arg17[%228, %c0_62, %c0_63] : memref<8x8x256xf32, #tpu.memory_space<vmem>>, vector<1x8x256xf32>
    %230 = vector.shape_cast %229 : vector<1x8x256xf32> to vector<8x256xf32>
    %231 = vector.extract_strided_slice %230 {offsets = [0, 0], sizes = [8, 128], strides = [1, 1]} : vector<8x256xf32> to vector<8x128xf32>
    %232 = vector.extract_strided_slice %227 {offsets = [0, 0], sizes = [8, 128], strides = [1, 1]} : vector<8x256xf32> to vector<8x128xf32>
    %233 = arith.addf %231, %232 : vector<8x128xf32>
    %234 = arith.index_cast %224 : i32 to index
    %c0_64 = arith.constant 0 : index
    %c0_65 = arith.constant 0 : index
    %235 = vector.load %arg17[%234, %c0_64, %c0_65] : memref<8x8x256xf32, #tpu.memory_space<vmem>>, vector<1x8x256xf32>
    %236 = vector.shape_cast %235 : vector<1x8x256xf32> to vector<8x256xf32>
    %237 = vector.extract_strided_slice %236 {offsets = [0, 128], sizes = [8, 128], strides = [1, 1]} : vector<8x256xf32> to vector<8x128xf32>
    %238 = vector.extract_strided_slice %227 {offsets = [0, 128], sizes = [8, 128], strides = [1, 1]} : vector<8x256xf32> to vector<8x128xf32>
    %239 = arith.addf %237, %238 : vector<8x128xf32>
    %240 = vector.extract_strided_slice %233 {offsets = [0, 0], sizes = [8, 32], strides = [1, 1]} : vector<8x128xf32> to vector<8x32xf32>
    %241 = arith.negf %240 : vector<8x32xf32>
    %242 = math.exp %241 : vector<8x32xf32>
    %cst_66 = arith.constant 1.000000e+00 : f32
    %243 = vector.broadcast %cst_66 : f32 to vector<8x32xf32>
    %244 = arith.addf %243, %242 : vector<8x32xf32>
    %245 = arith.divf %243, %244 : vector<8x32xf32>
    %246 = vector.extract_strided_slice %233 {offsets = [0, 32], sizes = [8, 32], strides = [1, 1]} : vector<8x128xf32> to vector<8x32xf32>
    %247 = arith.negf %246 : vector<8x32xf32>
    %248 = math.exp %247 : vector<8x32xf32>
    %cst_67 = arith.constant 1.000000e+00 : f32
    %249 = vector.broadcast %cst_67 : f32 to vector<8x32xf32>
    %250 = arith.addf %249, %248 : vector<8x32xf32>
    %251 = arith.divf %249, %250 : vector<8x32xf32>
    %252 = vector.extract_strided_slice %233 {offsets = [0, 64], sizes = [8, 32], strides = [1, 1]} : vector<8x128xf32> to vector<8x32xf32>
    %253 = math.tanh %252 : vector<8x32xf32>
    %254 = vector.extract_strided_slice %233 {offsets = [0, 96], sizes = [8, 32], strides = [1, 1]} : vector<8x128xf32> to vector<8x32xf32>
    %255 = arith.negf %254 : vector<8x32xf32>
    %256 = math.exp %255 : vector<8x32xf32>
    %cst_68 = arith.constant 1.000000e+00 : f32
    %257 = vector.broadcast %cst_68 : f32 to vector<8x32xf32>
    %258 = arith.addf %257, %256 : vector<8x32xf32>
    %259 = arith.divf %257, %258 : vector<8x32xf32>
    %260 = arith.mulf %251, %195 : vector<8x32xf32>
    %261 = arith.mulf %245, %253 : vector<8x32xf32>
    %262 = arith.addf %260, %261 : vector<8x32xf32>
    %263 = math.tanh %262 : vector<8x32xf32>
    %264 = arith.mulf %259, %263 : vector<8x32xf32>
    %265 = vector.extract_strided_slice %239 {offsets = [0, 0], sizes = [8, 32], strides = [1, 1]} : vector<8x128xf32> to vector<8x32xf32>
    %266 = arith.negf %265 : vector<8x32xf32>
    %267 = math.exp %266 : vector<8x32xf32>
    %cst_69 = arith.constant 1.000000e+00 : f32
    %268 = vector.broadcast %cst_69 : f32 to vector<8x32xf32>
    %269 = arith.addf %268, %267 : vector<8x32xf32>
    %270 = arith.divf %268, %269 : vector<8x32xf32>
    %271 = vector.extract_strided_slice %239 {offsets = [0, 32], sizes = [8, 32], strides = [1, 1]} : vector<8x128xf32> to vector<8x32xf32>
    %272 = arith.negf %271 : vector<8x32xf32>
    %273 = math.exp %272 : vector<8x32xf32>
    %cst_70 = arith.constant 1.000000e+00 : f32
    %274 = vector.broadcast %cst_70 : f32 to vector<8x32xf32>
    %275 = arith.addf %274, %273 : vector<8x32xf32>
    %276 = arith.divf %274, %275 : vector<8x32xf32>
    %277 = vector.extract_strided_slice %239 {offsets = [0, 64], sizes = [8, 32], strides = [1, 1]} : vector<8x128xf32> to vector<8x32xf32>
    %278 = math.tanh %277 : vector<8x32xf32>
    %279 = vector.extract_strided_slice %239 {offsets = [0, 96], sizes = [8, 32], strides = [1, 1]} : vector<8x128xf32> to vector<8x32xf32>
    %280 = arith.negf %279 : vector<8x32xf32>
    %281 = math.exp %280 : vector<8x32xf32>
    %cst_71 = arith.constant 1.000000e+00 : f32
    %282 = vector.broadcast %cst_71 : f32 to vector<8x32xf32>
    %283 = arith.addf %282, %281 : vector<8x32xf32>
    %284 = arith.divf %282, %283 : vector<8x32xf32>
    %285 = arith.mulf %276, %198 : vector<8x32xf32>
    %286 = arith.mulf %270, %278 : vector<8x32xf32>
    %287 = arith.addf %285, %286 : vector<8x32xf32>
    %288 = math.tanh %287 : vector<8x32xf32>
    %289 = arith.mulf %284, %288 : vector<8x32xf32>
    %290 = arith.index_cast %c2_i32 : i32 to index
    %c0_72 = arith.constant 0 : index
    %c0_73 = arith.constant 0 : index
    %291 = vector.load %arg2[%290, %c0_72, %c0_73] : memref<8x8x1xf32, #tpu.memory_space<vmem>>, vector<1x8x1xf32>
    %292 = vector.shape_cast %291 : vector<1x8x1xf32> to vector<8x1xf32>
    %cst_74 = arith.constant 0.000000e+00 : f32
    %293 = vector.broadcast %cst_74 : f32 to vector<8x1xf32>
    %294 = arith.cmpf ogt, %292, %293 : vector<8x1xf32>
    %295 = arith.index_cast %224 : i32 to index
    %c0_75 = arith.constant 0 : index
    %c0_76 = arith.constant 0 : index
    %296 = vector.load %arg2[%295, %c0_75, %c0_76] : memref<8x8x1xf32, #tpu.memory_space<vmem>>, vector<1x8x1xf32>
    %297 = vector.shape_cast %296 : vector<1x8x1xf32> to vector<8x1xf32>
    %cst_77 = arith.constant 0.000000e+00 : f32
    %298 = vector.broadcast %cst_77 : f32 to vector<8x1xf32>
    %299 = arith.cmpf ogt, %297, %298 : vector<8x1xf32>
    %300 = vector.shape_cast %294 : vector<8x1xi1> to vector<8x1xi1>
    %301 = vector.broadcast %300 : vector<8x1xi1> to vector<8x32xi1>
    %302 = arith.select %301, %262, %195 : vector<8x32xi1>, vector<8x32xf32>
    %303 = vector.shape_cast %299 : vector<8x1xi1> to vector<8x1xi1>
    %304 = vector.broadcast %303 : vector<8x1xi1> to vector<8x32xi1>
    %305 = arith.select %304, %287, %198 : vector<8x32xi1>, vector<8x32xf32>
    %cst_78 = arith.constant 0.000000e+00 : f32
    %306 = vector.shape_cast %294 : vector<8x1xi1> to vector<8x1xi1>
    %307 = vector.broadcast %306 : vector<8x1xi1> to vector<8x32xi1>
    %308 = vector.broadcast %cst_78 : f32 to vector<8x32xf32>
    %309 = arith.select %307, %264, %308 : vector<8x32xi1>, vector<8x32xf32>
    %310 = arith.index_cast %c2_i32 : i32 to index
    %c0_79 = arith.constant 0 : index
    %c0_80 = arith.constant 0 : index
    %311 = vector.load %arg18[%310, %c0_79, %c0_80] : memref<8x8x32xf32, #tpu.memory_space<vmem>>, vector<1x8x32xf32>
    %312 = vector.shape_cast %311 : vector<1x8x32xf32> to vector<8x32xf32>
    %313 = vector.shape_cast %309 : vector<8x32xf32> to vector<1x8x32xf32>
    tpu.vector_store %arg18[%310, %c0_79, %c0_80], %313 {strides = array<i32>} : memref<8x8x32xf32, #tpu.memory_space<vmem>>, vector<1x8x32xf32>,
    %cst_81 = arith.constant 0.000000e+00 : f32
    %314 = vector.shape_cast %299 : vector<8x1xi1> to vector<8x1xi1>
    %315 = vector.broadcast %314 : vector<8x1xi1> to vector<8x32xi1>
    %316 = vector.broadcast %cst_81 : f32 to vector<8x32xf32>
    %317 = arith.select %315, %289, %316 : vector<8x32xi1>, vector<8x32xf32>
    %318 = arith.index_cast %224 : i32 to index
    %c0_82 = arith.constant 0 : index
    %c0_83 = arith.constant 0 : index
    %319 = vector.load %arg19[%318, %c0_82, %c0_83] : memref<8x8x32xf32, #tpu.memory_space<vmem>>, vector<1x8x32xf32>
    %320 = vector.shape_cast %319 : vector<1x8x32xf32> to vector<8x32xf32>
    %321 = vector.shape_cast %317 : vector<8x32xf32> to vector<1x8x32xf32>
    tpu.vector_store %arg19[%318, %c0_82, %c0_83], %321 {strides = array<i32>} : memref<8x8x32xf32, #tpu.memory_space<vmem>>, vector<1x8x32xf32>,
    %322 = vector.extract_strided_slice %223 {offsets = [0, 0], sizes = [8, 32], strides = [1, 1]} : vector<8x64xf32> to vector<8x32xf32>
    %323 = vector.shape_cast %294 : vector<8x1xi1> to vector<8x1xi1>
    %324 = vector.broadcast %323 : vector<8x1xi1> to vector<8x32xi1>
    %325 = arith.select %324, %264, %322 : vector<8x32xi1>, vector<8x32xf32>
    %326 = vector.extract_strided_slice %223 {offsets = [0, 32], sizes = [8, 32], strides = [1, 1]} : vector<8x64xf32> to vector<8x32xf32>
    %327 = vector.shape_cast %299 : vector<8x1xi1> to vector<8x1xi1>
    %328 = vector.broadcast %327 : vector<8x1xi1> to vector<8x32xi1>
    %329 = arith.select %328, %289, %326 : vector<8x32xi1>, vector<8x32xf32>
    %330 = tpu.concatenate %325, %329 in 1 : vector<8x32xf32>, vector<8x32xf32> -> vector<8x64xf32>
    %c3_i32 = arith.constant 3 : i32
    %c7_i32_84 = arith.constant 7 : i32
    %331 = arith.subi %c7_i32_84, %c3_i32 : i32
    %cst_85 = arith.constant dense<0.000000e+00> : vector<8x256xf32>
    %332 = tpu.matmul %330, %6, %cst_85 {dimension_numbers = #tpu.dot_dimension_numbers<[1], [0], [0], [1], [0, 0, 1, 1], [], []>} : vector<8x64xf32>, vector<64x256xf32>, vector<8x256xf32> -> vector<8x256xf32>
    %333 = vector.broadcast %7 : vector<1x256xf32> to vector<8x256xf32>
    %334 = arith.addf %332, %333 : vector<8x256xf32>
    %335 = arith.index_cast %c3_i32 : i32 to index
    %c0_86 = arith.constant 0 : index
    %c0_87 = arith.constant 0 : index
    %336 = vector.load %arg17[%335, %c0_86, %c0_87] : memref<8x8x256xf32, #tpu.memory_space<vmem>>, vector<1x8x256xf32>
    %337 = vector.shape_cast %336 : vector<1x8x256xf32> to vector<8x256xf32>
    %338 = vector.extract_strided_slice %337 {offsets = [0, 0], sizes = [8, 128], strides = [1, 1]} : vector<8x256xf32> to vector<8x128xf32>
    %339 = vector.extract_strided_slice %334 {offsets = [0, 0], sizes = [8, 128], strides = [1, 1]} : vector<8x256xf32> to vector<8x128xf32>
    %340 = arith.addf %338, %339 : vector<8x128xf32>
    %341 = arith.index_cast %331 : i32 to index
    %c0_88 = arith.constant 0 : index
    %c0_89 = arith.constant 0 : index
    %342 = vector.load %arg17[%341, %c0_88, %c0_89] : memref<8x8x256xf32, #tpu.memory_space<vmem>>, vector<1x8x256xf32>
    %343 = vector.shape_cast %342 : vector<1x8x256xf32> to vector<8x256xf32>
    %344 = vector.extract_strided_slice %343 {offsets = [0, 128], sizes = [8, 128], strides = [1, 1]} : vector<8x256xf32> to vector<8x128xf32>
    %345 = vector.extract_strided_slice %334 {offsets = [0, 128], sizes = [8, 128], strides = [1, 1]} : vector<8x256xf32> to vector<8x128xf32>
    %346 = arith.addf %344, %345 : vector<8x128xf32>
    %347 = vector.extract_strided_slice %340 {offsets = [0, 0], sizes = [8, 32], strides = [1, 1]} : vector<8x128xf32> to vector<8x32xf32>
    %348 = arith.negf %347 : vector<8x32xf32>
    %349 = math.exp %348 : vector<8x32xf32>
    %cst_90 = arith.constant 1.000000e+00 : f32
    %350 = vector.broadcast %cst_90 : f32 to vector<8x32xf32>
    %351 = arith.addf %350, %349 : vector<8x32xf32>
    %352 = arith.divf %350, %351 : vector<8x32xf32>
    %353 = vector.extract_strided_slice %340 {offsets = [0, 32], sizes = [8, 32], strides = [1, 1]} : vector<8x128xf32> to vector<8x32xf32>
    %354 = arith.negf %353 : vector<8x32xf32>
    %355 = math.exp %354 : vector<8x32xf32>
    %cst_91 = arith.constant 1.000000e+00 : f32
    %356 = vector.broadcast %cst_91 : f32 to vector<8x32xf32>
    %357 = arith.addf %356, %355 : vector<8x32xf32>
    %358 = arith.divf %356, %357 : vector<8x32xf32>
    %359 = vector.extract_strided_slice %340 {offsets = [0, 64], sizes = [8, 32], strides = [1, 1]} : vector<8x128xf32> to vector<8x32xf32>
    %360 = math.tanh %359 : vector<8x32xf32>
    %361 = vector.extract_strided_slice %340 {offsets = [0, 96], sizes = [8, 32], strides = [1, 1]} : vector<8x128xf32> to vector<8x32xf32>
    %362 = arith.negf %361 : vector<8x32xf32>
    %363 = math.exp %362 : vector<8x32xf32>
    %cst_92 = arith.constant 1.000000e+00 : f32
    %364 = vector.broadcast %cst_92 : f32 to vector<8x32xf32>
    %365 = arith.addf %364, %363 : vector<8x32xf32>
    %366 = arith.divf %364, %365 : vector<8x32xf32>
    %367 = arith.mulf %358, %302 : vector<8x32xf32>
    %368 = arith.mulf %352, %360 : vector<8x32xf32>
    %369 = arith.addf %367, %368 : vector<8x32xf32>
    %370 = math.tanh %369 : vector<8x32xf32>
    %371 = arith.mulf %366, %370 : vector<8x32xf32>
    %372 = vector.extract_strided_slice %346 {offsets = [0, 0], sizes = [8, 32], strides = [1, 1]} : vector<8x128xf32> to vector<8x32xf32>
    %373 = arith.negf %372 : vector<8x32xf32>
    %374 = math.exp %373 : vector<8x32xf32>
    %cst_93 = arith.constant 1.000000e+00 : f32
    %375 = vector.broadcast %cst_93 : f32 to vector<8x32xf32>
    %376 = arith.addf %375, %374 : vector<8x32xf32>
    %377 = arith.divf %375, %376 : vector<8x32xf32>
    %378 = vector.extract_strided_slice %346 {offsets = [0, 32], sizes = [8, 32], strides = [1, 1]} : vector<8x128xf32> to vector<8x32xf32>
    %379 = arith.negf %378 : vector<8x32xf32>
    %380 = math.exp %379 : vector<8x32xf32>
    %cst_94 = arith.constant 1.000000e+00 : f32
    %381 = vector.broadcast %cst_94 : f32 to vector<8x32xf32>
    %382 = arith.addf %381, %380 : vector<8x32xf32>
    %383 = arith.divf %381, %382 : vector<8x32xf32>
    %384 = vector.extract_strided_slice %346 {offsets = [0, 64], sizes = [8, 32], strides = [1, 1]} : vector<8x128xf32> to vector<8x32xf32>
    %385 = math.tanh %384 : vector<8x32xf32>
    %386 = vector.extract_strided_slice %346 {offsets = [0, 96], sizes = [8, 32], strides = [1, 1]} : vector<8x128xf32> to vector<8x32xf32>
    %387 = arith.negf %386 : vector<8x32xf32>
    %388 = math.exp %387 : vector<8x32xf32>
    %cst_95 = arith.constant 1.000000e+00 : f32
    %389 = vector.broadcast %cst_95 : f32 to vector<8x32xf32>
    %390 = arith.addf %389, %388 : vector<8x32xf32>
    %391 = arith.divf %389, %390 : vector<8x32xf32>
    %392 = arith.mulf %383, %305 : vector<8x32xf32>
    %393 = arith.mulf %377, %385 : vector<8x32xf32>
    %394 = arith.addf %392, %393 : vector<8x32xf32>
    %395 = math.tanh %394 : vector<8x32xf32>
    %396 = arith.mulf %391, %395 : vector<8x32xf32>
    %397 = arith.index_cast %c3_i32 : i32 to index
    %c0_96 = arith.constant 0 : index
    %c0_97 = arith.constant 0 : index
    %398 = vector.load %arg2[%397, %c0_96, %c0_97] : memref<8x8x1xf32, #tpu.memory_space<vmem>>, vector<1x8x1xf32>
    %399 = vector.shape_cast %398 : vector<1x8x1xf32> to vector<8x1xf32>
    %cst_98 = arith.constant 0.000000e+00 : f32
    %400 = vector.broadcast %cst_98 : f32 to vector<8x1xf32>
    %401 = arith.cmpf ogt, %399, %400 : vector<8x1xf32>
    %402 = arith.index_cast %331 : i32 to index
    %c0_99 = arith.constant 0 : index
    %c0_100 = arith.constant 0 : index
    %403 = vector.load %arg2[%402, %c0_99, %c0_100] : memref<8x8x1xf32, #tpu.memory_space<vmem>>, vector<1x8x1xf32>
    %404 = vector.shape_cast %403 : vector<1x8x1xf32> to vector<8x1xf32>
    %cst_101 = arith.constant 0.000000e+00 : f32
    %405 = vector.broadcast %cst_101 : f32 to vector<8x1xf32>
    %406 = arith.cmpf ogt, %404, %405 : vector<8x1xf32>
    %407 = vector.shape_cast %401 : vector<8x1xi1> to vector<8x1xi1>
    %408 = vector.broadcast %407 : vector<8x1xi1> to vector<8x32xi1>
    %409 = arith.select %408, %369, %302 : vector<8x32xi1>, vector<8x32xf32>
    %410 = vector.shape_cast %406 : vector<8x1xi1> to vector<8x1xi1>
    %411 = vector.broadcast %410 : vector<8x1xi1> to vector<8x32xi1>
    %412 = arith.select %411, %394, %305 : vector<8x32xi1>, vector<8x32xf32>
    %cst_102 = arith.constant 0.000000e+00 : f32
    %413 = vector.shape_cast %401 : vector<8x1xi1> to vector<8x1xi1>
    %414 = vector.broadcast %413 : vector<8x1xi1> to vector<8x32xi1>
    %415 = vector.broadcast %cst_102 : f32 to vector<8x32xf32>
    %416 = arith.select %414, %371, %415 : vector<8x32xi1>, vector<8x32xf32>
    %417 = arith.index_cast %c3_i32 : i32 to index
    %c0_103 = arith.constant 0 : index
    %c0_104 = arith.constant 0 : index
    %418 = vector.load %arg18[%417, %c0_103, %c0_104] : memref<8x8x32xf32, #tpu.memory_space<vmem>>, vector<1x8x32xf32>
    %419 = vector.shape_cast %418 : vector<1x8x32xf32> to vector<8x32xf32>
    %420 = vector.shape_cast %416 : vector<8x32xf32> to vector<1x8x32xf32>
    tpu.vector_store %arg18[%417, %c0_103, %c0_104], %420 {strides = array<i32>} : memref<8x8x32xf32, #tpu.memory_space<vmem>>, vector<1x8x32xf32>,
    %cst_105 = arith.constant 0.000000e+00 : f32
    %421 = vector.shape_cast %406 : vector<8x1xi1> to vector<8x1xi1>
    %422 = vector.broadcast %421 : vector<8x1xi1> to vector<8x32xi1>
    %423 = vector.broadcast %cst_105 : f32 to vector<8x32xf32>
    %424 = arith.select %422, %396, %423 : vector<8x32xi1>, vector<8x32xf32>
    %425 = arith.index_cast %331 : i32 to index
    %c0_106 = arith.constant 0 : index
    %c0_107 = arith.constant 0 : index
    %426 = vector.load %arg19[%425, %c0_106, %c0_107] : memref<8x8x32xf32, #tpu.memory_space<vmem>>, vector<1x8x32xf32>
    %427 = vector.shape_cast %426 : vector<1x8x32xf32> to vector<8x32xf32>
    %428 = vector.shape_cast %424 : vector<8x32xf32> to vector<1x8x32xf32>
    tpu.vector_store %arg19[%425, %c0_106, %c0_107], %428 {strides = array<i32>} : memref<8x8x32xf32, #tpu.memory_space<vmem>>, vector<1x8x32xf32>,
    %429 = vector.extract_strided_slice %330 {offsets = [0, 0], sizes = [8, 32], strides = [1, 1]} : vector<8x64xf32> to vector<8x32xf32>
    %430 = vector.shape_cast %401 : vector<8x1xi1> to vector<8x1xi1>
    %431 = vector.broadcast %430 : vector<8x1xi1> to vector<8x32xi1>
    %432 = arith.select %431, %371, %429 : vector<8x32xi1>, vector<8x32xf32>
    %433 = vector.extract_strided_slice %330 {offsets = [0, 32], sizes = [8, 32], strides = [1, 1]} : vector<8x64xf32> to vector<8x32xf32>
    %434 = vector.shape_cast %406 : vector<8x1xi1> to vector<8x1xi1>
    %435 = vector.broadcast %434 : vector<8x1xi1> to vector<8x32xi1>
    %436 = arith.select %435, %396, %433 : vector<8x32xi1>, vector<8x32xf32>
    %437 = tpu.concatenate %432, %436 in 1 : vector<8x32xf32>, vector<8x32xf32> -> vector<8x64xf32>
    %c4_i32 = arith.constant 4 : i32
    %c7_i32_108 = arith.constant 7 : i32
    %438 = arith.subi %c7_i32_108, %c4_i32 : i32
    %cst_109 = arith.constant dense<0.000000e+00> : vector<8x256xf32>
    %439 = tpu.matmul %437, %6, %cst_109 {dimension_numbers = #tpu.dot_dimension_numbers<[1], [0], [0], [1], [0, 0, 1, 1], [], []>} : vector<8x64xf32>, vector<64x256xf32>, vector<8x256xf32> -> vector<8x256xf32>
    %440 = vector.broadcast %7 : vector<1x256xf32> to vector<8x256xf32>
    %441 = arith.addf %439, %440 : vector<8x256xf32>
    %442 = arith.index_cast %c4_i32 : i32 to index
    %c0_110 = arith.constant 0 : index
    %c0_111 = arith.constant 0 : index
    %443 = vector.load %arg17[%442, %c0_110, %c0_111] : memref<8x8x256xf32, #tpu.memory_space<vmem>>, vector<1x8x256xf32>
    %444 = vector.shape_cast %443 : vector<1x8x256xf32> to vector<8x256xf32>
    %445 = vector.extract_strided_slice %444 {offsets = [0, 0], sizes = [8, 128], strides = [1, 1]} : vector<8x256xf32> to vector<8x128xf32>
    %446 = vector.extract_strided_slice %441 {offsets = [0, 0], sizes = [8, 128], strides = [1, 1]} : vector<8x256xf32> to vector<8x128xf32>
    %447 = arith.addf %445, %446 : vector<8x128xf32>
    %448 = arith.index_cast %438 : i32 to index
    %c0_112 = arith.constant 0 : index
    %c0_113 = arith.constant 0 : index
    %449 = vector.load %arg17[%448, %c0_112, %c0_113] : memref<8x8x256xf32, #tpu.memory_space<vmem>>, vector<1x8x256xf32>
    %450 = vector.shape_cast %449 : vector<1x8x256xf32> to vector<8x256xf32>
    %451 = vector.extract_strided_slice %450 {offsets = [0, 128], sizes = [8, 128], strides = [1, 1]} : vector<8x256xf32> to vector<8x128xf32>
    %452 = vector.extract_strided_slice %441 {offsets = [0, 128], sizes = [8, 128], strides = [1, 1]} : vector<8x256xf32> to vector<8x128xf32>
    %453 = arith.addf %451, %452 : vector<8x128xf32>
    %454 = vector.extract_strided_slice %447 {offsets = [0, 0], sizes = [8, 32], strides = [1, 1]} : vector<8x128xf32> to vector<8x32xf32>
    %455 = arith.negf %454 : vector<8x32xf32>
    %456 = math.exp %455 : vector<8x32xf32>
    %cst_114 = arith.constant 1.000000e+00 : f32
    %457 = vector.broadcast %cst_114 : f32 to vector<8x32xf32>
    %458 = arith.addf %457, %456 : vector<8x32xf32>
    %459 = arith.divf %457, %458 : vector<8x32xf32>
    %460 = vector.extract_strided_slice %447 {offsets = [0, 32], sizes = [8, 32], strides = [1, 1]} : vector<8x128xf32> to vector<8x32xf32>
    %461 = arith.negf %460 : vector<8x32xf32>
    %462 = math.exp %461 : vector<8x32xf32>
    %cst_115 = arith.constant 1.000000e+00 : f32
    %463 = vector.broadcast %cst_115 : f32 to vector<8x32xf32>
    %464 = arith.addf %463, %462 : vector<8x32xf32>
    %465 = arith.divf %463, %464 : vector<8x32xf32>
    %466 = vector.extract_strided_slice %447 {offsets = [0, 64], sizes = [8, 32], strides = [1, 1]} : vector<8x128xf32> to vector<8x32xf32>
    %467 = math.tanh %466 : vector<8x32xf32>
    %468 = vector.extract_strided_slice %447 {offsets = [0, 96], sizes = [8, 32], strides = [1, 1]} : vector<8x128xf32> to vector<8x32xf32>
    %469 = arith.negf %468 : vector<8x32xf32>
    %470 = math.exp %469 : vector<8x32xf32>
    %cst_116 = arith.constant 1.000000e+00 : f32
    %471 = vector.broadcast %cst_116 : f32 to vector<8x32xf32>
    %472 = arith.addf %471, %470 : vector<8x32xf32>
    %473 = arith.divf %471, %472 : vector<8x32xf32>
    %474 = arith.mulf %465, %409 : vector<8x32xf32>
    %475 = arith.mulf %459, %467 : vector<8x32xf32>
    %476 = arith.addf %474, %475 : vector<8x32xf32>
    %477 = math.tanh %476 : vector<8x32xf32>
    %478 = arith.mulf %473, %477 : vector<8x32xf32>
    %479 = vector.extract_strided_slice %453 {offsets = [0, 0], sizes = [8, 32], strides = [1, 1]} : vector<8x128xf32> to vector<8x32xf32>
    %480 = arith.negf %479 : vector<8x32xf32>
    %481 = math.exp %480 : vector<8x32xf32>
    %cst_117 = arith.constant 1.000000e+00 : f32
    %482 = vector.broadcast %cst_117 : f32 to vector<8x32xf32>
    %483 = arith.addf %482, %481 : vector<8x32xf32>
    %484 = arith.divf %482, %483 : vector<8x32xf32>
    %485 = vector.extract_strided_slice %453 {offsets = [0, 32], sizes = [8, 32], strides = [1, 1]} : vector<8x128xf32> to vector<8x32xf32>
    %486 = arith.negf %485 : vector<8x32xf32>
    %487 = math.exp %486 : vector<8x32xf32>
    %cst_118 = arith.constant 1.000000e+00 : f32
    %488 = vector.broadcast %cst_118 : f32 to vector<8x32xf32>
    %489 = arith.addf %488, %487 : vector<8x32xf32>
    %490 = arith.divf %488, %489 : vector<8x32xf32>
    %491 = vector.extract_strided_slice %453 {offsets = [0, 64], sizes = [8, 32], strides = [1, 1]} : vector<8x128xf32> to vector<8x32xf32>
    %492 = math.tanh %491 : vector<8x32xf32>
    %493 = vector.extract_strided_slice %453 {offsets = [0, 96], sizes = [8, 32], strides = [1, 1]} : vector<8x128xf32> to vector<8x32xf32>
    %494 = arith.negf %493 : vector<8x32xf32>
    %495 = math.exp %494 : vector<8x32xf32>
    %cst_119 = arith.constant 1.000000e+00 : f32
    %496 = vector.broadcast %cst_119 : f32 to vector<8x32xf32>
    %497 = arith.addf %496, %495 : vector<8x32xf32>
    %498 = arith.divf %496, %497 : vector<8x32xf32>
    %499 = arith.mulf %490, %412 : vector<8x32xf32>
    %500 = arith.mulf %484, %492 : vector<8x32xf32>
    %501 = arith.addf %499, %500 : vector<8x32xf32>
    %502 = math.tanh %501 : vector<8x32xf32>
    %503 = arith.mulf %498, %502 : vector<8x32xf32>
    %504 = arith.index_cast %c4_i32 : i32 to index
    %c0_120 = arith.constant 0 : index
    %c0_121 = arith.constant 0 : index
    %505 = vector.load %arg2[%504, %c0_120, %c0_121] : memref<8x8x1xf32, #tpu.memory_space<vmem>>, vector<1x8x1xf32>
    %506 = vector.shape_cast %505 : vector<1x8x1xf32> to vector<8x1xf32>
    %cst_122 = arith.constant 0.000000e+00 : f32
    %507 = vector.broadcast %cst_122 : f32 to vector<8x1xf32>
    %508 = arith.cmpf ogt, %506, %507 : vector<8x1xf32>
    %509 = arith.index_cast %438 : i32 to index
    %c0_123 = arith.constant 0 : index
    %c0_124 = arith.constant 0 : index
    %510 = vector.load %arg2[%509, %c0_123, %c0_124] : memref<8x8x1xf32, #tpu.memory_space<vmem>>, vector<1x8x1xf32>
    %511 = vector.shape_cast %510 : vector<1x8x1xf32> to vector<8x1xf32>
    %cst_125 = arith.constant 0.000000e+00 : f32
    %512 = vector.broadcast %cst_125 : f32 to vector<8x1xf32>
    %513 = arith.cmpf ogt, %511, %512 : vector<8x1xf32>
    %514 = vector.shape_cast %508 : vector<8x1xi1> to vector<8x1xi1>
    %515 = vector.broadcast %514 : vector<8x1xi1> to vector<8x32xi1>
    %516 = arith.select %515, %476, %409 : vector<8x32xi1>, vector<8x32xf32>
    %517 = vector.shape_cast %513 : vector<8x1xi1> to vector<8x1xi1>
    %518 = vector.broadcast %517 : vector<8x1xi1> to vector<8x32xi1>
    %519 = arith.select %518, %501, %412 : vector<8x32xi1>, vector<8x32xf32>
    %cst_126 = arith.constant 0.000000e+00 : f32
    %520 = vector.shape_cast %508 : vector<8x1xi1> to vector<8x1xi1>
    %521 = vector.broadcast %520 : vector<8x1xi1> to vector<8x32xi1>
    %522 = vector.broadcast %cst_126 : f32 to vector<8x32xf32>
    %523 = arith.select %521, %478, %522 : vector<8x32xi1>, vector<8x32xf32>
    %524 = arith.index_cast %c4_i32 : i32 to index
    %c0_127 = arith.constant 0 : index
    %c0_128 = arith.constant 0 : index
    %525 = vector.load %arg18[%524, %c0_127, %c0_128] : memref<8x8x32xf32, #tpu.memory_space<vmem>>, vector<1x8x32xf32>
    %526 = vector.shape_cast %525 : vector<1x8x32xf32> to vector<8x32xf32>
    %527 = vector.shape_cast %523 : vector<8x32xf32> to vector<1x8x32xf32>
    tpu.vector_store %arg18[%524, %c0_127, %c0_128], %527 {strides = array<i32>} : memref<8x8x32xf32, #tpu.memory_space<vmem>>, vector<1x8x32xf32>,
    %cst_129 = arith.constant 0.000000e+00 : f32
    %528 = vector.shape_cast %513 : vector<8x1xi1> to vector<8x1xi1>
    %529 = vector.broadcast %528 : vector<8x1xi1> to vector<8x32xi1>
    %530 = vector.broadcast %cst_129 : f32 to vector<8x32xf32>
    %531 = arith.select %529, %503, %530 : vector<8x32xi1>, vector<8x32xf32>
    %532 = arith.index_cast %438 : i32 to index
    %c0_130 = arith.constant 0 : index
    %c0_131 = arith.constant 0 : index
    %533 = vector.load %arg19[%532, %c0_130, %c0_131] : memref<8x8x32xf32, #tpu.memory_space<vmem>>, vector<1x8x32xf32>
    %534 = vector.shape_cast %533 : vector<1x8x32xf32> to vector<8x32xf32>
    %535 = vector.shape_cast %531 : vector<8x32xf32> to vector<1x8x32xf32>
    tpu.vector_store %arg19[%532, %c0_130, %c0_131], %535 {strides = array<i32>} : memref<8x8x32xf32, #tpu.memory_space<vmem>>, vector<1x8x32xf32>,
    %536 = vector.extract_strided_slice %437 {offsets = [0, 0], sizes = [8, 32], strides = [1, 1]} : vector<8x64xf32> to vector<8x32xf32>
    %537 = vector.shape_cast %508 : vector<8x1xi1> to vector<8x1xi1>
    %538 = vector.broadcast %537 : vector<8x1xi1> to vector<8x32xi1>
    %539 = arith.select %538, %478, %536 : vector<8x32xi1>, vector<8x32xf32>
    %540 = vector.extract_strided_slice %437 {offsets = [0, 32], sizes = [8, 32], strides = [1, 1]} : vector<8x64xf32> to vector<8x32xf32>
    %541 = vector.shape_cast %513 : vector<8x1xi1> to vector<8x1xi1>
    %542 = vector.broadcast %541 : vector<8x1xi1> to vector<8x32xi1>
    %543 = arith.select %542, %503, %540 : vector<8x32xi1>, vector<8x32xf32>
    %544 = tpu.concatenate %539, %543 in 1 : vector<8x32xf32>, vector<8x32xf32> -> vector<8x64xf32>
    %c5_i32 = arith.constant 5 : i32
    %c7_i32_132 = arith.constant 7 : i32
    %545 = arith.subi %c7_i32_132, %c5_i32 : i32
    %cst_133 = arith.constant dense<0.000000e+00> : vector<8x256xf32>
    %546 = tpu.matmul %544, %6, %cst_133 {dimension_numbers = #tpu.dot_dimension_numbers<[1], [0], [0], [1], [0, 0, 1, 1], [], []>} : vector<8x64xf32>, vector<64x256xf32>, vector<8x256xf32> -> vector<8x256xf32>
    %547 = vector.broadcast %7 : vector<1x256xf32> to vector<8x256xf32>
    %548 = arith.addf %546, %547 : vector<8x256xf32>
    %549 = arith.index_cast %c5_i32 : i32 to index
    %c0_134 = arith.constant 0 : index
    %c0_135 = arith.constant 0 : index
    %550 = vector.load %arg17[%549, %c0_134, %c0_135] : memref<8x8x256xf32, #tpu.memory_space<vmem>>, vector<1x8x256xf32>
    %551 = vector.shape_cast %550 : vector<1x8x256xf32> to vector<8x256xf32>
    %552 = vector.extract_strided_slice %551 {offsets = [0, 0], sizes = [8, 128], strides = [1, 1]} : vector<8x256xf32> to vector<8x128xf32>
    %553 = vector.extract_strided_slice %548 {offsets = [0, 0], sizes = [8, 128], strides = [1, 1]} : vector<8x256xf32> to vector<8x128xf32>
    %554 = arith.addf %552, %553 : vector<8x128xf32>
    %555 = arith.index_cast %545 : i32 to index
    %c0_136 = arith.constant 0 : index
    %c0_137 = arith.constant 0 : index
    %556 = vector.load %arg17[%555, %c0_136, %c0_137] : memref<8x8x256xf32, #tpu.memory_space<vmem>>, vector<1x8x256xf32>
    %557 = vector.shape_cast %556 : vector<1x8x256xf32> to vector<8x256xf32>
    %558 = vector.extract_strided_slice %557 {offsets = [0, 128], sizes = [8, 128], strides = [1, 1]} : vector<8x256xf32> to vector<8x128xf32>
    %559 = vector.extract_strided_slice %548 {offsets = [0, 128], sizes = [8, 128], strides = [1, 1]} : vector<8x256xf32> to vector<8x128xf32>
    %560 = arith.addf %558, %559 : vector<8x128xf32>
    %561 = vector.extract_strided_slice %554 {offsets = [0, 0], sizes = [8, 32], strides = [1, 1]} : vector<8x128xf32> to vector<8x32xf32>
    %562 = arith.negf %561 : vector<8x32xf32>
    %563 = math.exp %562 : vector<8x32xf32>
    %cst_138 = arith.constant 1.000000e+00 : f32
    %564 = vector.broadcast %cst_138 : f32 to vector<8x32xf32>
    %565 = arith.addf %564, %563 : vector<8x32xf32>
    %566 = arith.divf %564, %565 : vector<8x32xf32>
    %567 = vector.extract_strided_slice %554 {offsets = [0, 32], sizes = [8, 32], strides = [1, 1]} : vector<8x128xf32> to vector<8x32xf32>
    %568 = arith.negf %567 : vector<8x32xf32>
    %569 = math.exp %568 : vector<8x32xf32>
    %cst_139 = arith.constant 1.000000e+00 : f32
    %570 = vector.broadcast %cst_139 : f32 to vector<8x32xf32>
    %571 = arith.addf %570, %569 : vector<8x32xf32>
    %572 = arith.divf %570, %571 : vector<8x32xf32>
    %573 = vector.extract_strided_slice %554 {offsets = [0, 64], sizes = [8, 32], strides = [1, 1]} : vector<8x128xf32> to vector<8x32xf32>
    %574 = math.tanh %573 : vector<8x32xf32>
    %575 = vector.extract_strided_slice %554 {offsets = [0, 96], sizes = [8, 32], strides = [1, 1]} : vector<8x128xf32> to vector<8x32xf32>
    %576 = arith.negf %575 : vector<8x32xf32>
    %577 = math.exp %576 : vector<8x32xf32>
    %cst_140 = arith.constant 1.000000e+00 : f32
    %578 = vector.broadcast %cst_140 : f32 to vector<8x32xf32>
    %579 = arith.addf %578, %577 : vector<8x32xf32>
    %580 = arith.divf %578, %579 : vector<8x32xf32>
    %581 = arith.mulf %572, %516 : vector<8x32xf32>
    %582 = arith.mulf %566, %574 : vector<8x32xf32>
    %583 = arith.addf %581, %582 : vector<8x32xf32>
    %584 = math.tanh %583 : vector<8x32xf32>
    %585 = arith.mulf %580, %584 : vector<8x32xf32>
    %586 = vector.extract_strided_slice %560 {offsets = [0, 0], sizes = [8, 32], strides = [1, 1]} : vector<8x128xf32> to vector<8x32xf32>
    %587 = arith.negf %586 : vector<8x32xf32>
    %588 = math.exp %587 : vector<8x32xf32>
    %cst_141 = arith.constant 1.000000e+00 : f32
    %589 = vector.broadcast %cst_141 : f32 to vector<8x32xf32>
    %590 = arith.addf %589, %588 : vector<8x32xf32>
    %591 = arith.divf %589, %590 : vector<8x32xf32>
    %592 = vector.extract_strided_slice %560 {offsets = [0, 32], sizes = [8, 32], strides = [1, 1]} : vector<8x128xf32> to vector<8x32xf32>
    %593 = arith.negf %592 : vector<8x32xf32>
    %594 = math.exp %593 : vector<8x32xf32>
    %cst_142 = arith.constant 1.000000e+00 : f32
    %595 = vector.broadcast %cst_142 : f32 to vector<8x32xf32>
    %596 = arith.addf %595, %594 : vector<8x32xf32>
    %597 = arith.divf %595, %596 : vector<8x32xf32>
    %598 = vector.extract_strided_slice %560 {offsets = [0, 64], sizes = [8, 32], strides = [1, 1]} : vector<8x128xf32> to vector<8x32xf32>
    %599 = math.tanh %598 : vector<8x32xf32>
    %600 = vector.extract_strided_slice %560 {offsets = [0, 96], sizes = [8, 32], strides = [1, 1]} : vector<8x128xf32> to vector<8x32xf32>
    %601 = arith.negf %600 : vector<8x32xf32>
    %602 = math.exp %601 : vector<8x32xf32>
    %cst_143 = arith.constant 1.000000e+00 : f32
    %603 = vector.broadcast %cst_143 : f32 to vector<8x32xf32>
    %604 = arith.addf %603, %602 : vector<8x32xf32>
    %605 = arith.divf %603, %604 : vector<8x32xf32>
    %606 = arith.mulf %597, %519 : vector<8x32xf32>
    %607 = arith.mulf %591, %599 : vector<8x32xf32>
    %608 = arith.addf %606, %607 : vector<8x32xf32>
    %609 = math.tanh %608 : vector<8x32xf32>
    %610 = arith.mulf %605, %609 : vector<8x32xf32>
    %611 = arith.index_cast %c5_i32 : i32 to index
    %c0_144 = arith.constant 0 : index
    %c0_145 = arith.constant 0 : index
    %612 = vector.load %arg2[%611, %c0_144, %c0_145] : memref<8x8x1xf32, #tpu.memory_space<vmem>>, vector<1x8x1xf32>
    %613 = vector.shape_cast %612 : vector<1x8x1xf32> to vector<8x1xf32>
    %cst_146 = arith.constant 0.000000e+00 : f32
    %614 = vector.broadcast %cst_146 : f32 to vector<8x1xf32>
    %615 = arith.cmpf ogt, %613, %614 : vector<8x1xf32>
    %616 = arith.index_cast %545 : i32 to index
    %c0_147 = arith.constant 0 : index
    %c0_148 = arith.constant 0 : index
    %617 = vector.load %arg2[%616, %c0_147, %c0_148] : memref<8x8x1xf32, #tpu.memory_space<vmem>>, vector<1x8x1xf32>
    %618 = vector.shape_cast %617 : vector<1x8x1xf32> to vector<8x1xf32>
    %cst_149 = arith.constant 0.000000e+00 : f32
    %619 = vector.broadcast %cst_149 : f32 to vector<8x1xf32>
    %620 = arith.cmpf ogt, %618, %619 : vector<8x1xf32>
    %621 = vector.shape_cast %615 : vector<8x1xi1> to vector<8x1xi1>
    %622 = vector.broadcast %621 : vector<8x1xi1> to vector<8x32xi1>
    %623 = arith.select %622, %583, %516 : vector<8x32xi1>, vector<8x32xf32>
    %624 = vector.shape_cast %620 : vector<8x1xi1> to vector<8x1xi1>
    %625 = vector.broadcast %624 : vector<8x1xi1> to vector<8x32xi1>
    %626 = arith.select %625, %608, %519 : vector<8x32xi1>, vector<8x32xf32>
    %cst_150 = arith.constant 0.000000e+00 : f32
    %627 = vector.shape_cast %615 : vector<8x1xi1> to vector<8x1xi1>
    %628 = vector.broadcast %627 : vector<8x1xi1> to vector<8x32xi1>
    %629 = vector.broadcast %cst_150 : f32 to vector<8x32xf32>
    %630 = arith.select %628, %585, %629 : vector<8x32xi1>, vector<8x32xf32>
    %631 = arith.index_cast %c5_i32 : i32 to index
    %c0_151 = arith.constant 0 : index
    %c0_152 = arith.constant 0 : index
    %632 = vector.load %arg18[%631, %c0_151, %c0_152] : memref<8x8x32xf32, #tpu.memory_space<vmem>>, vector<1x8x32xf32>
    %633 = vector.shape_cast %632 : vector<1x8x32xf32> to vector<8x32xf32>
    %634 = vector.shape_cast %630 : vector<8x32xf32> to vector<1x8x32xf32>
    tpu.vector_store %arg18[%631, %c0_151, %c0_152], %634 {strides = array<i32>} : memref<8x8x32xf32, #tpu.memory_space<vmem>>, vector<1x8x32xf32>,
    %cst_153 = arith.constant 0.000000e+00 : f32
    %635 = vector.shape_cast %620 : vector<8x1xi1> to vector<8x1xi1>
    %636 = vector.broadcast %635 : vector<8x1xi1> to vector<8x32xi1>
    %637 = vector.broadcast %cst_153 : f32 to vector<8x32xf32>
    %638 = arith.select %636, %610, %637 : vector<8x32xi1>, vector<8x32xf32>
    %639 = arith.index_cast %545 : i32 to index
    %c0_154 = arith.constant 0 : index
    %c0_155 = arith.constant 0 : index
    %640 = vector.load %arg19[%639, %c0_154, %c0_155] : memref<8x8x32xf32, #tpu.memory_space<vmem>>, vector<1x8x32xf32>
    %641 = vector.shape_cast %640 : vector<1x8x32xf32> to vector<8x32xf32>
    %642 = vector.shape_cast %638 : vector<8x32xf32> to vector<1x8x32xf32>
    tpu.vector_store %arg19[%639, %c0_154, %c0_155], %642 {strides = array<i32>} : memref<8x8x32xf32, #tpu.memory_space<vmem>>, vector<1x8x32xf32>,
    %643 = vector.extract_strided_slice %544 {offsets = [0, 0], sizes = [8, 32], strides = [1, 1]} : vector<8x64xf32> to vector<8x32xf32>
    %644 = vector.shape_cast %615 : vector<8x1xi1> to vector<8x1xi1>
    %645 = vector.broadcast %644 : vector<8x1xi1> to vector<8x32xi1>
    %646 = arith.select %645, %585, %643 : vector<8x32xi1>, vector<8x32xf32>
    %647 = vector.extract_strided_slice %544 {offsets = [0, 32], sizes = [8, 32], strides = [1, 1]} : vector<8x64xf32> to vector<8x32xf32>
    %648 = vector.shape_cast %620 : vector<8x1xi1> to vector<8x1xi1>
    %649 = vector.broadcast %648 : vector<8x1xi1> to vector<8x32xi1>
    %650 = arith.select %649, %610, %647 : vector<8x32xi1>, vector<8x32xf32>
    %651 = tpu.concatenate %646, %650 in 1 : vector<8x32xf32>, vector<8x32xf32> -> vector<8x64xf32>
    %c6_i32 = arith.constant 6 : i32
    %c7_i32_156 = arith.constant 7 : i32
    %652 = arith.subi %c7_i32_156, %c6_i32 : i32
    %cst_157 = arith.constant dense<0.000000e+00> : vector<8x256xf32>
    %653 = tpu.matmul %651, %6, %cst_157 {dimension_numbers = #tpu.dot_dimension_numbers<[1], [0], [0], [1], [0, 0, 1, 1], [], []>} : vector<8x64xf32>, vector<64x256xf32>, vector<8x256xf32> -> vector<8x256xf32>
    %654 = vector.broadcast %7 : vector<1x256xf32> to vector<8x256xf32>
    %655 = arith.addf %653, %654 : vector<8x256xf32>
    %656 = arith.index_cast %c6_i32 : i32 to index
    %c0_158 = arith.constant 0 : index
    %c0_159 = arith.constant 0 : index
    %657 = vector.load %arg17[%656, %c0_158, %c0_159] : memref<8x8x256xf32, #tpu.memory_space<vmem>>, vector<1x8x256xf32>
    %658 = vector.shape_cast %657 : vector<1x8x256xf32> to vector<8x256xf32>
    %659 = vector.extract_strided_slice %658 {offsets = [0, 0], sizes = [8, 128], strides = [1, 1]} : vector<8x256xf32> to vector<8x128xf32>
    %660 = vector.extract_strided_slice %655 {offsets = [0, 0], sizes = [8, 128], strides = [1, 1]} : vector<8x256xf32> to vector<8x128xf32>
    %661 = arith.addf %659, %660 : vector<8x128xf32>
    %662 = arith.index_cast %652 : i32 to index
    %c0_160 = arith.constant 0 : index
    %c0_161 = arith.constant 0 : index
    %663 = vector.load %arg17[%662, %c0_160, %c0_161] : memref<8x8x256xf32, #tpu.memory_space<vmem>>, vector<1x8x256xf32>
    %664 = vector.shape_cast %663 : vector<1x8x256xf32> to vector<8x256xf32>
    %665 = vector.extract_strided_slice %664 {offsets = [0, 128], sizes = [8, 128], strides = [1, 1]} : vector<8x256xf32> to vector<8x128xf32>
    %666 = vector.extract_strided_slice %655 {offsets = [0, 128], sizes = [8, 128], strides = [1, 1]} : vector<8x256xf32> to vector<8x128xf32>
    %667 = arith.addf %665, %666 : vector<8x128xf32>
    %668 = vector.extract_strided_slice %661 {offsets = [0, 0], sizes = [8, 32], strides = [1, 1]} : vector<8x128xf32> to vector<8x32xf32>
    %669 = arith.negf %668 : vector<8x32xf32>
    %670 = math.exp %669 : vector<8x32xf32>
    %cst_162 = arith.constant 1.000000e+00 : f32
    %671 = vector.broadcast %cst_162 : f32 to vector<8x32xf32>
    %672 = arith.addf %671, %670 : vector<8x32xf32>
    %673 = arith.divf %671, %672 : vector<8x32xf32>
    %674 = vector.extract_strided_slice %661 {offsets = [0, 32], sizes = [8, 32], strides = [1, 1]} : vector<8x128xf32> to vector<8x32xf32>
    %675 = arith.negf %674 : vector<8x32xf32>
    %676 = math.exp %675 : vector<8x32xf32>
    %cst_163 = arith.constant 1.000000e+00 : f32
    %677 = vector.broadcast %cst_163 : f32 to vector<8x32xf32>
    %678 = arith.addf %677, %676 : vector<8x32xf32>
    %679 = arith.divf %677, %678 : vector<8x32xf32>
    %680 = vector.extract_strided_slice %661 {offsets = [0, 64], sizes = [8, 32], strides = [1, 1]} : vector<8x128xf32> to vector<8x32xf32>
    %681 = math.tanh %680 : vector<8x32xf32>
    %682 = vector.extract_strided_slice %661 {offsets = [0, 96], sizes = [8, 32], strides = [1, 1]} : vector<8x128xf32> to vector<8x32xf32>
    %683 = arith.negf %682 : vector<8x32xf32>
    %684 = math.exp %683 : vector<8x32xf32>
    %cst_164 = arith.constant 1.000000e+00 : f32
    %685 = vector.broadcast %cst_164 : f32 to vector<8x32xf32>
    %686 = arith.addf %685, %684 : vector<8x32xf32>
    %687 = arith.divf %685, %686 : vector<8x32xf32>
    %688 = arith.mulf %679, %623 : vector<8x32xf32>
    %689 = arith.mulf %673, %681 : vector<8x32xf32>
    %690 = arith.addf %688, %689 : vector<8x32xf32>
    %691 = math.tanh %690 : vector<8x32xf32>
    %692 = arith.mulf %687, %691 : vector<8x32xf32>
    %693 = vector.extract_strided_slice %667 {offsets = [0, 0], sizes = [8, 32], strides = [1, 1]} : vector<8x128xf32> to vector<8x32xf32>
    %694 = arith.negf %693 : vector<8x32xf32>
    %695 = math.exp %694 : vector<8x32xf32>
    %cst_165 = arith.constant 1.000000e+00 : f32
    %696 = vector.broadcast %cst_165 : f32 to vector<8x32xf32>
    %697 = arith.addf %696, %695 : vector<8x32xf32>
    %698 = arith.divf %696, %697 : vector<8x32xf32>
    %699 = vector.extract_strided_slice %667 {offsets = [0, 32], sizes = [8, 32], strides = [1, 1]} : vector<8x128xf32> to vector<8x32xf32>
    %700 = arith.negf %699 : vector<8x32xf32>
    %701 = math.exp %700 : vector<8x32xf32>
    %cst_166 = arith.constant 1.000000e+00 : f32
    %702 = vector.broadcast %cst_166 : f32 to vector<8x32xf32>
    %703 = arith.addf %702, %701 : vector<8x32xf32>
    %704 = arith.divf %702, %703 : vector<8x32xf32>
    %705 = vector.extract_strided_slice %667 {offsets = [0, 64], sizes = [8, 32], strides = [1, 1]} : vector<8x128xf32> to vector<8x32xf32>
    %706 = math.tanh %705 : vector<8x32xf32>
    %707 = vector.extract_strided_slice %667 {offsets = [0, 96], sizes = [8, 32], strides = [1, 1]} : vector<8x128xf32> to vector<8x32xf32>
    %708 = arith.negf %707 : vector<8x32xf32>
    %709 = math.exp %708 : vector<8x32xf32>
    %cst_167 = arith.constant 1.000000e+00 : f32
    %710 = vector.broadcast %cst_167 : f32 to vector<8x32xf32>
    %711 = arith.addf %710, %709 : vector<8x32xf32>
    %712 = arith.divf %710, %711 : vector<8x32xf32>
    %713 = arith.mulf %704, %626 : vector<8x32xf32>
    %714 = arith.mulf %698, %706 : vector<8x32xf32>
    %715 = arith.addf %713, %714 : vector<8x32xf32>
    %716 = math.tanh %715 : vector<8x32xf32>
    %717 = arith.mulf %712, %716 : vector<8x32xf32>
    %718 = arith.index_cast %c6_i32 : i32 to index
    %c0_168 = arith.constant 0 : index
    %c0_169 = arith.constant 0 : index
    %719 = vector.load %arg2[%718, %c0_168, %c0_169] : memref<8x8x1xf32, #tpu.memory_space<vmem>>, vector<1x8x1xf32>
    %720 = vector.shape_cast %719 : vector<1x8x1xf32> to vector<8x1xf32>
    %cst_170 = arith.constant 0.000000e+00 : f32
    %721 = vector.broadcast %cst_170 : f32 to vector<8x1xf32>
    %722 = arith.cmpf ogt, %720, %721 : vector<8x1xf32>
    %723 = arith.index_cast %652 : i32 to index
    %c0_171 = arith.constant 0 : index
    %c0_172 = arith.constant 0 : index
    %724 = vector.load %arg2[%723, %c0_171, %c0_172] : memref<8x8x1xf32, #tpu.memory_space<vmem>>, vector<1x8x1xf32>
    %725 = vector.shape_cast %724 : vector<1x8x1xf32> to vector<8x1xf32>
    %cst_173 = arith.constant 0.000000e+00 : f32
    %726 = vector.broadcast %cst_173 : f32 to vector<8x1xf32>
    %727 = arith.cmpf ogt, %725, %726 : vector<8x1xf32>
    %728 = vector.shape_cast %722 : vector<8x1xi1> to vector<8x1xi1>
    %729 = vector.broadcast %728 : vector<8x1xi1> to vector<8x32xi1>
    %730 = arith.select %729, %690, %623 : vector<8x32xi1>, vector<8x32xf32>
    %731 = vector.shape_cast %727 : vector<8x1xi1> to vector<8x1xi1>
    %732 = vector.broadcast %731 : vector<8x1xi1> to vector<8x32xi1>
    %733 = arith.select %732, %715, %626 : vector<8x32xi1>, vector<8x32xf32>
    %cst_174 = arith.constant 0.000000e+00 : f32
    %734 = vector.shape_cast %722 : vector<8x1xi1> to vector<8x1xi1>
    %735 = vector.broadcast %734 : vector<8x1xi1> to vector<8x32xi1>
    %736 = vector.broadcast %cst_174 : f32 to vector<8x32xf32>
    %737 = arith.select %735, %692, %736 : vector<8x32xi1>, vector<8x32xf32>
    %738 = arith.index_cast %c6_i32 : i32 to index
    %c0_175 = arith.constant 0 : index
    %c0_176 = arith.constant 0 : index
    %739 = vector.load %arg18[%738, %c0_175, %c0_176] : memref<8x8x32xf32, #tpu.memory_space<vmem>>, vector<1x8x32xf32>
    %740 = vector.shape_cast %739 : vector<1x8x32xf32> to vector<8x32xf32>
    %741 = vector.shape_cast %737 : vector<8x32xf32> to vector<1x8x32xf32>
    tpu.vector_store %arg18[%738, %c0_175, %c0_176], %741 {strides = array<i32>} : memref<8x8x32xf32, #tpu.memory_space<vmem>>, vector<1x8x32xf32>,
    %cst_177 = arith.constant 0.000000e+00 : f32
    %742 = vector.shape_cast %727 : vector<8x1xi1> to vector<8x1xi1>
    %743 = vector.broadcast %742 : vector<8x1xi1> to vector<8x32xi1>
    %744 = vector.broadcast %cst_177 : f32 to vector<8x32xf32>
    %745 = arith.select %743, %717, %744 : vector<8x32xi1>, vector<8x32xf32>
    %746 = arith.index_cast %652 : i32 to index
    %c0_178 = arith.constant 0 : index
    %c0_179 = arith.constant 0 : index
    %747 = vector.load %arg19[%746, %c0_178, %c0_179] : memref<8x8x32xf32, #tpu.memory_space<vmem>>, vector<1x8x32xf32>
    %748 = vector.shape_cast %747 : vector<1x8x32xf32> to vector<8x32xf32>
    %749 = vector.shape_cast %745 : vector<8x32xf32> to vector<1x8x32xf32>
    tpu.vector_store %arg19[%746, %c0_178, %c0_179], %749 {strides = array<i32>} : memref<8x8x32xf32, #tpu.memory_space<vmem>>, vector<1x8x32xf32>,
    %750 = vector.extract_strided_slice %651 {offsets = [0, 0], sizes = [8, 32], strides = [1, 1]} : vector<8x64xf32> to vector<8x32xf32>
    %751 = vector.shape_cast %722 : vector<8x1xi1> to vector<8x1xi1>
    %752 = vector.broadcast %751 : vector<8x1xi1> to vector<8x32xi1>
    %753 = arith.select %752, %692, %750 : vector<8x32xi1>, vector<8x32xf32>
    %754 = vector.extract_strided_slice %651 {offsets = [0, 32], sizes = [8, 32], strides = [1, 1]} : vector<8x64xf32> to vector<8x32xf32>
    %755 = vector.shape_cast %727 : vector<8x1xi1> to vector<8x1xi1>
    %756 = vector.broadcast %755 : vector<8x1xi1> to vector<8x32xi1>
    %757 = arith.select %756, %717, %754 : vector<8x32xi1>, vector<8x32xf32>
    %758 = tpu.concatenate %753, %757 in 1 : vector<8x32xf32>, vector<8x32xf32> -> vector<8x64xf32>
    %c7_i32_180 = arith.constant 7 : i32
    %c7_i32_181 = arith.constant 7 : i32
    %759 = arith.subi %c7_i32_181, %c7_i32_180 : i32
    %cst_182 = arith.constant dense<0.000000e+00> : vector<8x256xf32>
    %760 = tpu.matmul %758, %6, %cst_182 {dimension_numbers = #tpu.dot_dimension_numbers<[1], [0], [0], [1], [0, 0, 1, 1], [], []>} : vector<8x64xf32>, vector<64x256xf32>, vector<8x256xf32> -> vector<8x256xf32>
    %761 = vector.broadcast %7 : vector<1x256xf32> to vector<8x256xf32>
    %762 = arith.addf %760, %761 : vector<8x256xf32>
    %763 = arith.index_cast %c7_i32_180 : i32 to index
    %c0_183 = arith.constant 0 : index
    %c0_184 = arith.constant 0 : index
    %764 = vector.load %arg17[%763, %c0_183, %c0_184] : memref<8x8x256xf32, #tpu.memory_space<vmem>>, vector<1x8x256xf32>
    %765 = vector.shape_cast %764 : vector<1x8x256xf32> to vector<8x256xf32>
    %766 = vector.extract_strided_slice %765 {offsets = [0, 0], sizes = [8, 128], strides = [1, 1]} : vector<8x256xf32> to vector<8x128xf32>
    %767 = vector.extract_strided_slice %762 {offsets = [0, 0], sizes = [8, 128], strides = [1, 1]} : vector<8x256xf32> to vector<8x128xf32>
    %768 = arith.addf %766, %767 : vector<8x128xf32>
    %769 = arith.index_cast %759 : i32 to index
    %c0_185 = arith.constant 0 : index
    %c0_186 = arith.constant 0 : index
    %770 = vector.load %arg17[%769, %c0_185, %c0_186] : memref<8x8x256xf32, #tpu.memory_space<vmem>>, vector<1x8x256xf32>
    %771 = vector.shape_cast %770 : vector<1x8x256xf32> to vector<8x256xf32>
    %772 = vector.extract_strided_slice %771 {offsets = [0, 128], sizes = [8, 128], strides = [1, 1]} : vector<8x256xf32> to vector<8x128xf32>
    %773 = vector.extract_strided_slice %762 {offsets = [0, 128], sizes = [8, 128], strides = [1, 1]} : vector<8x256xf32> to vector<8x128xf32>
    %774 = arith.addf %772, %773 : vector<8x128xf32>
    %775 = vector.extract_strided_slice %768 {offsets = [0, 0], sizes = [8, 32], strides = [1, 1]} : vector<8x128xf32> to vector<8x32xf32>
    %776 = arith.negf %775 : vector<8x32xf32>
    %777 = math.exp %776 : vector<8x32xf32>
    %cst_187 = arith.constant 1.000000e+00 : f32
    %778 = vector.broadcast %cst_187 : f32 to vector<8x32xf32>
    %779 = arith.addf %778, %777 : vector<8x32xf32>
    %780 = arith.divf %778, %779 : vector<8x32xf32>
    %781 = vector.extract_strided_slice %768 {offsets = [0, 32], sizes = [8, 32], strides = [1, 1]} : vector<8x128xf32> to vector<8x32xf32>
    %782 = arith.negf %781 : vector<8x32xf32>
    %783 = math.exp %782 : vector<8x32xf32>
    %cst_188 = arith.constant 1.000000e+00 : f32
    %784 = vector.broadcast %cst_188 : f32 to vector<8x32xf32>
    %785 = arith.addf %784, %783 : vector<8x32xf32>
    %786 = arith.divf %784, %785 : vector<8x32xf32>
    %787 = vector.extract_strided_slice %768 {offsets = [0, 64], sizes = [8, 32], strides = [1, 1]} : vector<8x128xf32> to vector<8x32xf32>
    %788 = math.tanh %787 : vector<8x32xf32>
    %789 = vector.extract_strided_slice %768 {offsets = [0, 96], sizes = [8, 32], strides = [1, 1]} : vector<8x128xf32> to vector<8x32xf32>
    %790 = arith.negf %789 : vector<8x32xf32>
    %791 = math.exp %790 : vector<8x32xf32>
    %cst_189 = arith.constant 1.000000e+00 : f32
    %792 = vector.broadcast %cst_189 : f32 to vector<8x32xf32>
    %793 = arith.addf %792, %791 : vector<8x32xf32>
    %794 = arith.divf %792, %793 : vector<8x32xf32>
    %795 = arith.mulf %786, %730 : vector<8x32xf32>
    %796 = arith.mulf %780, %788 : vector<8x32xf32>
    %797 = arith.addf %795, %796 : vector<8x32xf32>
    %798 = math.tanh %797 : vector<8x32xf32>
    %799 = arith.mulf %794, %798 : vector<8x32xf32>
    %800 = vector.extract_strided_slice %774 {offsets = [0, 0], sizes = [8, 32], strides = [1, 1]} : vector<8x128xf32> to vector<8x32xf32>
    %801 = arith.negf %800 : vector<8x32xf32>
    %802 = math.exp %801 : vector<8x32xf32>
    %cst_190 = arith.constant 1.000000e+00 : f32
    %803 = vector.broadcast %cst_190 : f32 to vector<8x32xf32>
    %804 = arith.addf %803, %802 : vector<8x32xf32>
    %805 = arith.divf %803, %804 : vector<8x32xf32>
    %806 = vector.extract_strided_slice %774 {offsets = [0, 32], sizes = [8, 32], strides = [1, 1]} : vector<8x128xf32> to vector<8x32xf32>
    %807 = arith.negf %806 : vector<8x32xf32>
    %808 = math.exp %807 : vector<8x32xf32>
    %cst_191 = arith.constant 1.000000e+00 : f32
    %809 = vector.broadcast %cst_191 : f32 to vector<8x32xf32>
    %810 = arith.addf %809, %808 : vector<8x32xf32>
    %811 = arith.divf %809, %810 : vector<8x32xf32>
    %812 = vector.extract_strided_slice %774 {offsets = [0, 64], sizes = [8, 32], strides = [1, 1]} : vector<8x128xf32> to vector<8x32xf32>
    %813 = math.tanh %812 : vector<8x32xf32>
    %814 = vector.extract_strided_slice %774 {offsets = [0, 96], sizes = [8, 32], strides = [1, 1]} : vector<8x128xf32> to vector<8x32xf32>
    %815 = arith.negf %814 : vector<8x32xf32>
    %816 = math.exp %815 : vector<8x32xf32>
    %cst_192 = arith.constant 1.000000e+00 : f32
    %817 = vector.broadcast %cst_192 : f32 to vector<8x32xf32>
    %818 = arith.addf %817, %816 : vector<8x32xf32>
    %819 = arith.divf %817, %818 : vector<8x32xf32>
    %820 = arith.mulf %811, %733 : vector<8x32xf32>
    %821 = arith.mulf %805, %813 : vector<8x32xf32>
    %822 = arith.addf %820, %821 : vector<8x32xf32>
    %823 = math.tanh %822 : vector<8x32xf32>
    %824 = arith.mulf %819, %823 : vector<8x32xf32>
    %825 = arith.index_cast %c7_i32_180 : i32 to index
    %c0_193 = arith.constant 0 : index
    %c0_194 = arith.constant 0 : index
    %826 = vector.load %arg2[%825, %c0_193, %c0_194] : memref<8x8x1xf32, #tpu.memory_space<vmem>>, vector<1x8x1xf32>
    %827 = vector.shape_cast %826 : vector<1x8x1xf32> to vector<8x1xf32>
    %cst_195 = arith.constant 0.000000e+00 : f32
    %828 = vector.broadcast %cst_195 : f32 to vector<8x1xf32>
    %829 = arith.cmpf ogt, %827, %828 : vector<8x1xf32>
    %830 = arith.index_cast %759 : i32 to index
    %c0_196 = arith.constant 0 : index
    %c0_197 = arith.constant 0 : index
    %831 = vector.load %arg2[%830, %c0_196, %c0_197] : memref<8x8x1xf32, #tpu.memory_space<vmem>>, vector<1x8x1xf32>
    %832 = vector.shape_cast %831 : vector<1x8x1xf32> to vector<8x1xf32>
    %cst_198 = arith.constant 0.000000e+00 : f32
    %833 = vector.broadcast %cst_198 : f32 to vector<8x1xf32>
    %834 = arith.cmpf ogt, %832, %833 : vector<8x1xf32>
    %835 = vector.shape_cast %829 : vector<8x1xi1> to vector<8x1xi1>
    %836 = vector.broadcast %835 : vector<8x1xi1> to vector<8x32xi1>
    %837 = arith.select %836, %797, %730 : vector<8x32xi1>, vector<8x32xf32>
    %838 = vector.shape_cast %834 : vector<8x1xi1> to vector<8x1xi1>
    %839 = vector.broadcast %838 : vector<8x1xi1> to vector<8x32xi1>
    %840 = arith.select %839, %822, %733 : vector<8x32xi1>, vector<8x32xf32>
    %cst_199 = arith.constant 0.000000e+00 : f32
    %841 = vector.shape_cast %829 : vector<8x1xi1> to vector<8x1xi1>
    %842 = vector.broadcast %841 : vector<8x1xi1> to vector<8x32xi1>
    %843 = vector.broadcast %cst_199 : f32 to vector<8x32xf32>
    %844 = arith.select %842, %799, %843 : vector<8x32xi1>, vector<8x32xf32>
    %845 = arith.index_cast %c7_i32_180 : i32 to index
    %c0_200 = arith.constant 0 : index
    %c0_201 = arith.constant 0 : index
    %846 = vector.load %arg18[%845, %c0_200, %c0_201] : memref<8x8x32xf32, #tpu.memory_space<vmem>>, vector<1x8x32xf32>
    %847 = vector.shape_cast %846 : vector<1x8x32xf32> to vector<8x32xf32>
    %848 = vector.shape_cast %844 : vector<8x32xf32> to vector<1x8x32xf32>
    tpu.vector_store %arg18[%845, %c0_200, %c0_201], %848 {strides = array<i32>} : memref<8x8x32xf32, #tpu.memory_space<vmem>>, vector<1x8x32xf32>,
    %cst_202 = arith.constant 0.000000e+00 : f32
    %849 = vector.shape_cast %834 : vector<8x1xi1> to vector<8x1xi1>
    %850 = vector.broadcast %849 : vector<8x1xi1> to vector<8x32xi1>
    %851 = vector.broadcast %cst_202 : f32 to vector<8x32xf32>
    %852 = arith.select %850, %824, %851 : vector<8x32xi1>, vector<8x32xf32>
    %853 = arith.index_cast %759 : i32 to index
    %c0_203 = arith.constant 0 : index
    %c0_204 = arith.constant 0 : index
    %854 = vector.load %arg19[%853, %c0_203, %c0_204] : memref<8x8x32xf32, #tpu.memory_space<vmem>>, vector<1x8x32xf32>
    %855 = vector.shape_cast %854 : vector<1x8x32xf32> to vector<8x32xf32>
    %856 = vector.shape_cast %852 : vector<8x32xf32> to vector<1x8x32xf32>
    tpu.vector_store %arg19[%853, %c0_203, %c0_204], %856 {strides = array<i32>} : memref<8x8x32xf32, #tpu.memory_space<vmem>>, vector<1x8x32xf32>,
    %857 = vector.extract_strided_slice %758 {offsets = [0, 0], sizes = [8, 32], strides = [1, 1]} : vector<8x64xf32> to vector<8x32xf32>
    %858 = vector.shape_cast %829 : vector<8x1xi1> to vector<8x1xi1>
    %859 = vector.broadcast %858 : vector<8x1xi1> to vector<8x32xi1>
    %860 = arith.select %859, %799, %857 : vector<8x32xi1>, vector<8x32xf32>
    %861 = vector.extract_strided_slice %758 {offsets = [0, 32], sizes = [8, 32], strides = [1, 1]} : vector<8x64xf32> to vector<8x32xf32>
    %862 = vector.shape_cast %834 : vector<8x1xi1> to vector<8x1xi1>
    %863 = vector.broadcast %862 : vector<8x1xi1> to vector<8x32xi1>
    %864 = arith.select %863, %824, %861 : vector<8x32xi1>, vector<8x32xf32>
    %865 = tpu.concatenate %860, %864 in 1 : vector<8x32xf32>, vector<8x32xf32> -> vector<8x64xf32>
    %c8_i32 = arith.constant 8 : i32
    %c0_205 = arith.constant 0 : index
    %c0_206 = arith.constant 0 : index
    %c0_207 = arith.constant 0 : index
    %866 = vector.load %arg18[%c0_205, %c0_206, %c0_207] : memref<8x8x32xf32, #tpu.memory_space<vmem>>, vector<8x8x32xf32>
    %c0_208 = arith.constant 0 : index
    %c0_209 = arith.constant 0 : index
    %c0_210 = arith.constant 0 : index
    %867 = vector.load %arg19[%c0_208, %c0_209, %c0_210] : memref<8x8x32xf32, #tpu.memory_space<vmem>>, vector<8x8x32xf32>
    %868 = vector.shape_cast %866 : vector<8x8x32xf32> to vector<64x32xf32>
    %c0_211 = arith.constant 0 : index
    %c0_212 = arith.constant 0 : index
    %869 = vector.load %arg6[%c0_211, %c0_212] : memref<32x32xf32, #tpu.memory_space<vmem>>, vector<32x32xf32>
    %cst_213 = arith.constant dense<0.000000e+00> : vector<64x32xf32>
    %870 = tpu.matmul %868, %869, %cst_213 {dimension_numbers = #tpu.dot_dimension_numbers<[1], [0], [0], [1], [0, 0, 1, 1], [], []>} : vector<64x32xf32>, vector<32x32xf32>, vector<64x32xf32> -> vector<64x32xf32>
    %871 = vector.shape_cast %867 : vector<8x8x32xf32> to vector<64x32xf32>
    %c0_214 = arith.constant 0 : index
    %c0_215 = arith.constant 0 : index
    %872 = vector.load %arg7[%c0_214, %c0_215] : memref<32x32xf32, #tpu.memory_space<vmem>>, vector<32x32xf32>
    %cst_216 = arith.constant dense<0.000000e+00> : vector<64x32xf32>
    %873 = tpu.matmul %871, %872, %cst_216 {dimension_numbers = #tpu.dot_dimension_numbers<[1], [0], [0], [1], [0, 0, 1, 1], [], []>} : vector<64x32xf32>, vector<32x32xf32>, vector<64x32xf32> -> vector<64x32xf32>
    %874 = arith.addf %870, %873 : vector<64x32xf32>
    %875 = vector.shape_cast %874 : vector<64x32xf32> to vector<8x8x32xf32>
    %c0_217 = arith.constant 0 : index
    %c0_218 = arith.constant 0 : index
    %c0_219 = arith.constant 0 : index
    %876 = vector.load %arg8[%c0_217, %c0_218, %c0_219] : memref<1x1x32xf32, #tpu.memory_space<vmem>>, vector<1x1x32xf32>
    %877 = vector.broadcast %876 : vector<1x1x32xf32> to vector<8x8x32xf32>
    %878 = arith.addf %875, %877 : vector<8x8x32xf32>
    %879 = math.tanh %878 : vector<8x8x32xf32>
    %c0_220 = arith.constant 0 : index
    %c0_221 = arith.constant 0 : index
    %c0_222 = arith.constant 0 : index
    %880 = vector.load %arg9[%c0_220, %c0_221, %c0_222] : memref<1x1x32xf32, #tpu.memory_space<vmem>>, vector<1x1x32xf32>
    %881 = vector.broadcast %880 : vector<1x1x32xf32> to vector<8x8x32xf32>
    %882 = arith.mulf %879, %881 : vector<8x8x32xf32>
    %cst_223 = arith.constant dense<0.000000e+00> : vector<8x8xf32>
    %883 = vector.multi_reduction <add>, %882, %cst_223 [2] : vector<8x8x32xf32> to vector<8x8xf32>
    %884 = vector.shape_cast %883 : vector<8x8xf32> to vector<8x8x1xf32>
    %c0_224 = arith.constant 0 : index
    %c0_225 = arith.constant 0 : index
    %c0_226 = arith.constant 0 : index
    %885 = vector.load %arg2[%c0_224, %c0_225, %c0_226] : memref<8x8x1xf32, #tpu.memory_space<vmem>>, vector<8x8x1xf32>
    %cst_227 = arith.constant 0.000000e+00 : f32
    %886 = vector.broadcast %cst_227 : f32 to vector<8x8x1xf32>
    %887 = arith.cmpf ogt, %885, %886 : vector<8x8x1xf32>
    %cst_228 = arith.constant -1.000000e+30 : f32
    %888 = vector.broadcast %cst_228 : f32 to vector<8x8x1xf32>
    %889 = arith.select %887, %884, %888 : vector<8x8x1xi1>, vector<8x8x1xf32>
    %cst_229 = arith.constant dense<0xFF800000> : vector<8x1xf32>
    %890 = vector.multi_reduction <maximumf>, %889, %cst_229 [0] : vector<8x8x1xf32> to vector<8x1xf32>
    %891 = vector.shape_cast %890 : vector<8x1xf32> to vector<1x8x1xf32>
    %892 = vector.broadcast %891 : vector<1x8x1xf32> to vector<8x8x1xf32>
    %893 = arith.subf %889, %892 : vector<8x8x1xf32>
    %894 = math.exp %893 : vector<8x8x1xf32>
    %cst_230 = arith.constant dense<0.000000e+00> : vector<8x1xf32>
    %895 = vector.multi_reduction <add>, %894, %cst_230 [0] : vector<8x8x1xf32> to vector<8x1xf32>
    %896 = vector.shape_cast %895 : vector<8x1xf32> to vector<1x8x1xf32>
    %897 = vector.broadcast %896 : vector<1x8x1xf32> to vector<8x8x1xf32>
    %898 = arith.divf %894, %897 : vector<8x8x1xf32>
    %899 = vector.shape_cast %898 : vector<8x8x1xf32> to vector<8x8xf32>
    %900 = tpu.transpose %899, [1, 0] : vector<8x8xf32> -> vector<8x8xf32>
    %c0_231 = arith.constant 0 : index
    %c0_232 = arith.constant 0 : index
    %901 = vector.load %arg16[%c0_231, %c0_232] : memref<8x8xf32, #tpu.memory_space<vmem>>, vector<8x8xf32>
    tpu.vector_store %arg16[%c0_231, %c0_232], %900 {strides = array<i32>} : memref<8x8xf32, #tpu.memory_space<vmem>>, vector<8x8xf32>,
    %902 = vector.broadcast %898 : vector<8x8x1xf32> to vector<8x8x32xf32>
    %903 = arith.mulf %902, %866 : vector<8x8x32xf32>
    %cst_233 = arith.constant dense<0.000000e+00> : vector<8x32xf32>
    %904 = vector.multi_reduction <add>, %903, %cst_233 [0] : vector<8x8x32xf32> to vector<8x32xf32>
    %905 = vector.broadcast %898 : vector<8x8x1xf32> to vector<8x8x32xf32>
    %906 = arith.mulf %905, %867 : vector<8x8x32xf32>
    %cst_234 = arith.constant dense<0.000000e+00> : vector<8x32xf32>
    %907 = vector.multi_reduction <add>, %906, %cst_234 [0] : vector<8x8x32xf32> to vector<8x32xf32>
    %c0_235 = arith.constant 0 : index
    %c0_236 = arith.constant 0 : index
    %908 = vector.load %arg10[%c0_235, %c0_236] : memref<32x32xf32, #tpu.memory_space<vmem>>, vector<32x32xf32>
    %cst_237 = arith.constant dense<0.000000e+00> : vector<8x32xf32>
    %909 = tpu.matmul %904, %908, %cst_237 {dimension_numbers = #tpu.dot_dimension_numbers<[1], [0], [0], [1], [0, 0, 1, 1], [], []>} : vector<8x32xf32>, vector<32x32xf32>, vector<8x32xf32> -> vector<8x32xf32>
    %c0_238 = arith.constant 0 : index
    %c0_239 = arith.constant 0 : index
    %910 = vector.load %arg11[%c0_238, %c0_239] : memref<32x32xf32, #tpu.memory_space<vmem>>, vector<32x32xf32>
    %cst_240 = arith.constant dense<0.000000e+00> : vector<8x32xf32>
    %911 = tpu.matmul %907, %910, %cst_240 {dimension_numbers = #tpu.dot_dimension_numbers<[1], [0], [0], [1], [0, 0, 1, 1], [], []>} : vector<8x32xf32>, vector<32x32xf32>, vector<8x32xf32> -> vector<8x32xf32>
    %912 = arith.addf %909, %911 : vector<8x32xf32>
    %c0_241 = arith.constant 0 : index
    %c0_242 = arith.constant 0 : index
    %913 = vector.load %arg12[%c0_241, %c0_242] : memref<1x32xf32, #tpu.memory_space<vmem>>, vector<1x32xf32>
    %914 = vector.broadcast %913 : vector<1x32xf32> to vector<8x32xf32>
    %915 = arith.addf %912, %914 : vector<8x32xf32>
    %c0_243 = arith.constant 0 : index
    %c0_244 = arith.constant 0 : index
    %916 = vector.load %arg13[%c0_243, %c0_244] : memref<32x128xf32, #tpu.memory_space<vmem>>, vector<32x128xf32>
    %cst_245 = arith.constant dense<0.000000e+00> : vector<8x128xf32>
    %917 = tpu.matmul %915, %916, %cst_245 {dimension_numbers = #tpu.dot_dimension_numbers<[1], [0], [0], [1], [0, 0, 1, 1], [], []>} : vector<8x32xf32>, vector<32x128xf32>, vector<8x128xf32> -> vector<8x128xf32>
    %c0_246 = arith.constant 0 : index
    %c0_247 = arith.constant 0 : index
    %918 = vector.load %arg14[%c0_246, %c0_247] : memref<1x128xf32, #tpu.memory_space<vmem>>, vector<1x128xf32>
    %919 = vector.broadcast %918 : vector<1x128xf32> to vector<8x128xf32>
    %920 = arith.addf %917, %919 : vector<8x128xf32>
    %c0_248 = arith.constant 0 : index
    %c0_249 = arith.constant 0 : index
    %921 = vector.load %arg15[%c0_248, %c0_249] : memref<8x128xf32, #tpu.memory_space<vmem>>, vector<8x128xf32>
    tpu.vector_store %arg15[%c0_248, %c0_249], %920 {strides = array<i32>} : memref<8x128xf32, #tpu.memory_space<vmem>>, vector<8x128xf32>,
    return
  }
  func.func @transform_0(%arg0: i32) -> (i32, i32, i32) {
    %c0_i32 = arith.constant 0 : i32
    %c0_i32_0 = arith.constant 0 : i32
    %c0_i32_1 = arith.constant 0 : i32
    return %c0_i32, %arg0, %c0_i32_0 : i32, i32, i32
  }
  func.func @transform_1(%arg0: i32) -> (i32, i32, i32) {
    %c0_i32 = arith.constant 0 : i32
    %c0_i32_0 = arith.constant 0 : i32
    %c0_i32_1 = arith.constant 0 : i32
    return %c0_i32, %arg0, %c0_i32_0 : i32, i32, i32
  }
  func.func @transform_2(%arg0: i32) -> (i32, i32) {
    %c0_i32 = arith.constant 0 : i32
    %c0_i32_0 = arith.constant 0 : i32
    %c0_i32_1 = arith.constant 0 : i32
    return %c0_i32, %c0_i32_0 : i32, i32
  }
  func.func @transform_3(%arg0: i32) -> (i32, i32) {
    %c0_i32 = arith.constant 0 : i32
    %c0_i32_0 = arith.constant 0 : i32
    %c0_i32_1 = arith.constant 0 : i32
    return %c0_i32, %c0_i32_0 : i32, i32
  }
  func.func @transform_4(%arg0: i32) -> (i32, i32) {
    %c0_i32 = arith.constant 0 : i32
    %c0_i32_0 = arith.constant 0 : i32
    %c0_i32_1 = arith.constant 0 : i32
    return %c0_i32, %c0_i32_0 : i32, i32
  }
  func.func @transform_5(%arg0: i32) -> (i32, i32) {
    %c0_i32 = arith.constant 0 : i32
    %c0_i32_0 = arith.constant 0 : i32
    %c0_i32_1 = arith.constant 0 : i32
    return %c0_i32, %c0_i32_0 : i32, i32
  }
  func.func @transform_6(%arg0: i32) -> (i32, i32) {
    %c0_i32 = arith.constant 0 : i32
    %c0_i32_0 = arith.constant 0 : i32
    %c0_i32_1 = arith.constant 0 : i32
    return %c0_i32, %c0_i32_0 : i32, i32
  }
  func.func @transform_7(%arg0: i32) -> (i32, i32, i32) {
    %c0_i32 = arith.constant 0 : i32
    %c0_i32_0 = arith.constant 0 : i32
    %c0_i32_1 = arith.constant 0 : i32
    %c0_i32_2 = arith.constant 0 : i32
    return %c0_i32, %c0_i32_0, %c0_i32_1 : i32, i32, i32
  }
  func.func @transform_8(%arg0: i32) -> (i32, i32, i32) {
    %c0_i32 = arith.constant 0 : i32
    %c0_i32_0 = arith.constant 0 : i32
    %c0_i32_1 = arith.constant 0 : i32
    %c0_i32_2 = arith.constant 0 : i32
    return %c0_i32, %c0_i32_0, %c0_i32_1 : i32, i32, i32
  }
  func.func @transform_9(%arg0: i32) -> (i32, i32) {
    %c0_i32 = arith.constant 0 : i32
    %c0_i32_0 = arith.constant 0 : i32
    %c0_i32_1 = arith.constant 0 : i32
    return %c0_i32, %c0_i32_0 : i32, i32
  }
  func.func @transform_10(%arg0: i32) -> (i32, i32) {
    %c0_i32 = arith.constant 0 : i32
    %c0_i32_0 = arith.constant 0 : i32
    %c0_i32_1 = arith.constant 0 : i32
    return %c0_i32, %c0_i32_0 : i32, i32
  }
  func.func @transform_11(%arg0: i32) -> (i32, i32) {
    %c0_i32 = arith.constant 0 : i32
    %c0_i32_0 = arith.constant 0 : i32
    %c0_i32_1 = arith.constant 0 : i32
    return %c0_i32, %c0_i32_0 : i32, i32
  }
  func.func @transform_12(%arg0: i32) -> (i32, i32) {
    %c0_i32 = arith.constant 0 : i32
    %c0_i32_0 = arith.constant 0 : i32
    %c0_i32_1 = arith.constant 0 : i32
    return %c0_i32, %c0_i32_0 : i32, i32
  }
  func.func @transform_13(%arg0: i32) -> (i32, i32) {
    %c0_i32 = arith.constant 0 : i32
    %c0_i32_0 = arith.constant 0 : i32
    %c0_i32_1 = arith.constant 0 : i32
    return %c0_i32, %c0_i32_0 : i32, i32
  }
  func.func @transform_14(%arg0: i32) -> (i32, i32) {
    %c0_i32 = arith.constant 0 : i32
    %c0_i32_0 = arith.constant 0 : i32
    return %arg0, %c0_i32 : i32, i32
  }
  func.func @transform_15(%arg0: i32) -> (i32, i32) {
    %c0_i32 = arith.constant 0 : i32
    %c0_i32_0 = arith.constant 0 : i32
    return %arg0, %c0_i32 : i32, i32
  }
}

</mosaic_0001>

<llo_original>
// kernel: tpu_custom_call.1
$region0: #{tpu_custom_call.1}
  #allocation0 [shape = 'u32[]', space=smem, size = 0x4, offset = 0x4, fixed_abs, tag = 'smem constant byte address 0x4 - core index']
  #allocation1 [shape = 'u32[72,128]{1,0:T(1,128)}', space=vmem, size = 0x9000, scoped, tag = 'internal scratch']
  #allocation2 [shape = 'f32[8,8,256]{2,1,0:T(8,128)}', space=vmem, size = 0x10000, scoped, tag = 'scratch operand']
  #allocation3 [shape = 'f32[8,8,32]{2,1,0:T(8,128)}', space=vmem, size = 0x8000, scoped, tag = 'scratch operand']
  #allocation4 [shape = 'f32[8,8,32]{2,1,0:T(8,128)}', space=vmem, size = 0x8000, scoped, tag = 'scratch operand']
  %s0 = inlined_call_operand.vmem [shape: f32[8,8,32], index: 0, kind: input, shape index: {}]
  %s1 = inlined_call_operand.vmem [shape: f32[8,8,1], index: 1, kind: input, shape index: {}]
  %s2 = inlined_call_operand.hbm [shape: f32[32,256], index: 2, kind: input, shape index: {}]
  %s3 = inlined_call_operand.hbm [shape: f32[64,256], index: 3, kind: input, shape index: {}]
  %s4 = inlined_call_operand.vmem [shape: f32[1,256], index: 4, kind: input, shape index: {}]
  %s5 = inlined_call_operand.hbm [shape: f32[32,32], index: 5, kind: input, shape index: {}]
  %s6 = inlined_call_operand.hbm [shape: f32[32,32], index: 6, kind: input, shape index: {}]
  %s7 = inlined_call_operand.vmem [shape: f32[1,1,32], index: 7, kind: input, shape index: {}]
  %s8 = inlined_call_operand.vmem [shape: f32[1,1,32], index: 8, kind: input, shape index: {}]
  %s9 = inlined_call_operand.hbm [shape: f32[32,32], index: 9, kind: input, shape index: {}]
  %s10 = inlined_call_operand.hbm [shape: f32[32,32], index: 10, kind: input, shape index: {}]
  %s11 = inlined_call_operand.vmem [shape: f32[1,32], index: 11, kind: input, shape index: {}]
  %s12 = inlined_call_operand.hbm [shape: f32[32,128], index: 12, kind: input, shape index: {}]
  %s13 = inlined_call_operand.vmem [shape: f32[1,128], index: 13, kind: input, shape index: {}]
  %s14 = inlined_call_operand.hbm [shape: f32[8,128], index: 14, kind: output, shape index: {0}]
  %s15 = inlined_call_operand.hbm [shape: f32[8,8], index: 15, kind: output, shape index: {1}]
  %16 = xla_tuple %s14, %s15
  %s17 = sld [smem:[#allocation0]]
  $region102: #{tpu_custom_call.1} parent=0
    _
  %s19 = ssub.s32 1, %s17
  %s20 = scalar_select 0, %s19, %s17
  $region1: #{tpu_custom_call.1} parent=0
    #allocation5 [shape = 'u8[32768]{0}', space=vmem, size = 0x8000, scoped, tag = 'input window, operand 2, single buffered']
    #allocation6 [shape = 's32[1]{0}', space=sflag, size = 0x4, scoped, tag = 'scoped memory for tpu_custom_call.1']
    #allocation7 [shape = 's32[1]{0}', space=sflag, size = 0x4, scoped, tag = 'scoped memory for tpu_custom_call.1']
    #allocation8 [shape = 'u8[65536]{0}', space=vmem, size = 0x10000, scoped, tag = 'input window, operand 3, single buffered']
    #allocation9 [shape = 's32[1]{0}', space=sflag, size = 0x4, scoped, tag = 'scoped memory for tpu_custom_call.1']
    #allocation10 [shape = 'u8[16384]{0}', space=vmem, size = 0x4000, scoped, tag = 'input window, operand 5, single buffered']
    #allocation11 [shape = 'u8[16384]{0}', space=vmem, size = 0x4000, scoped, tag = 'input window, operand 6, single buffered']
    #allocation12 [shape = 's32[1]{0}', space=sflag, size = 0x4, scoped, tag = 'scoped memory for tpu_custom_call.1']
    #allocation13 [shape = 'u8[16384]{0}', space=vmem, size = 0x4000, scoped, tag = 'input window, operand 9, single buffered']
    #allocation14 [shape = 'u8[16384]{0}', space=vmem, size = 0x4000, scoped, tag = 'input window, operand 10, single buffered']
    #allocation15 [shape = 's32[1]{0}', space=sflag, size = 0x4, scoped, tag = 'scoped memory for tpu_custom_call.1']
    #allocation16 [shape = 'u8[16384]{0}', space=vmem, size = 0x4000, scoped, tag = 'input window, operand 12, single buffered']
    #allocation17 [shape = 'u8[4096]{0}', space=vmem, size = 0x1000, scoped, tag = 'output window, operand 0, single buffered']
    #allocation18 [shape = 'u8[4096]{0}', space=vmem, size = 0x1000, scoped, tag = 'output window, operand 1, single buffered']
    #allocation19 [shape = 's32[1]{0}', space=sflag, size = 0x4, scoped, tag = 'scoped memory for tpu_custom_call.1']
    %21 = vsyncpa [#allocation6], 0
    %22 = vsyncpa [#allocation9], 0
    %23 = vsyncpa [#allocation12], 0
    %24 = vsyncpa [#allocation15], 0
    %25 = vsyncpa [#allocation7], 0
    %26 = vsyncpa [#allocation19], 0
    // Predicated region
    $region2: #{tpu_custom_call.1} parent=1 // pred_check
      _
    $region3: #{tpu_custom_call.1} parent=1 // pred_check_branch
      %28 = sbr.rel (0) target = $region5
    $region4: #{tpu_custom_call.1} parent=1 // pred_region
      _
    $region5: #{tpu_custom_call.1} parent=1 // pred_fallthru
      _
    // Predicated region
    $region6: #{tpu_custom_call.1} parent=1 // pred_check
      _
    $region7: #{tpu_custom_call.1} parent=1 // pred_check_branch
      %30 = sbr.rel (0) target = $region9
    $region8: #{tpu_custom_call.1} parent=1 // pred_region
      _
    $region9: #{tpu_custom_call.1} parent=1 // pred_fallthru
      _
    // Predicated region
    $region10: #{tpu_custom_call.1} parent=1 // pred_check
      _
    $region11: #{tpu_custom_call.1} parent=1 // pred_check_branch
      %32 = sbr.rel (0) target = $region13
    $region12: #{tpu_custom_call.1} parent=1 // pred_region
      %34 = vsyncadd [#allocation6], 0
      %s35 = sshll.u32 %s2, 4
      %s36 = int_to_ptr.hbm [resolvable:$true] %s35
      %s37 = sshll.u32 [#allocation5], 4
      %s38 = int_to_ptr.vmem [resolvable:$true] %s37
      %43 = dma.hbm_to_vmem [thread:$0]  %s36, 1024, %s38, [#allocation6], 256, 256, 16
    $region13: #{tpu_custom_call.1} parent=1 // pred_fallthru
      _
    // Predicated region
    $region14: #{tpu_custom_call.1} parent=1 // pred_check
      _
    $region15: #{tpu_custom_call.1} parent=1 // pred_check_branch
      %45 = sbr.rel (0) target = $region17
    $region16: #{tpu_custom_call.1} parent=1 // pred_region
      %47 = vsyncadd [#allocation9], 0
      %s48 = sshll.u32 %s3, 4
      %s49 = int_to_ptr.hbm [resolvable:$true] %s48
      %s50 = sshll.u32 [#allocation8], 4
      %s51 = int_to_ptr.vmem [resolvable:$true] %s50
      %56 = dma.hbm_to_vmem [thread:$0]  %s49, 2048, %s51, [#allocation9], 256, 256, 16
    $region17: #{tpu_custom_call.1} parent=1 // pred_fallthru
      _
    // Predicated region
    $region18: #{tpu_custom_call.1} parent=1 // pred_check
      _
    $region19: #{tpu_custom_call.1} parent=1 // pred_check_branch
      %58 = sbr.rel (0) target = $region21
    $region20: #{tpu_custom_call.1} parent=1 // pred_region
      _
    $region21: #{tpu_custom_call.1} parent=1 // pred_fallthru
      _
    // Predicated region
    $region22: #{tpu_custom_call.1} parent=1 // pred_check
      _
    $region23: #{tpu_custom_call.1} parent=1 // pred_check_branch
      %60 = sbr.rel (0) target = $region25
    $region24: #{tpu_custom_call.1} parent=1 // pred_region
      %62 = vsyncadd [#allocation9], 0
      %s63 = sshll.u32 %s5, 4
      %s64 = int_to_ptr.hbm [resolvable:$true] %s63
      %s65 = sshll.u32 [#allocation10], 4
      %s66 = int_to_ptr.vmem [resolvable:$true] %s65
      %71 = dma.hbm_to_vmem [thread:$0]  %s64, 512, %s66, [#allocation9], 128, 128, 8
    $region25: #{tpu_custom_call.1} parent=1 // pred_fallthru
      _
    // Predicated region
    $region26: #{tpu_custom_call.1} parent=1 // pred_check
      _
    $region27: #{tpu_custom_call.1} parent=1 // pred_check_branch
      %73 = sbr.rel (0) target = $region29
    $region28: #{tpu_custom_call.1} parent=1 // pred_region
      %75 = vsyncadd [#allocation12], 0
      %s76 = sshll.u32 %s6, 4
      %s77 = int_to_ptr.hbm [resolvable:$true] %s76
      %s78 = sshll.u32 [#allocation11], 4
      %s79 = int_to_ptr.vmem [resolvable:$true] %s78
      %84 = dma.hbm_to_vmem [thread:$0]  %s77, 512, %s79, [#allocation12], 128, 128, 8
    $region29: #{tpu_custom_call.1} parent=1 // pred_fallthru
      _
    // Predicated region
    $region30: #{tpu_custom_call.1} parent=1 // pred_check
      _
    $region31: #{tpu_custom_call.1} parent=1 // pred_check_branch
      %86 = sbr.rel (0) target = $region33
    $region32: #{tpu_custom_call.1} parent=1 // pred_region
      _
    $region33: #{tpu_custom_call.1} parent=1 // pred_fallthru
      _
    // Predicated region
    $region34: #{tpu_custom_call.1} parent=1 // pred_check
      _
    $region35: #{tpu_custom_call.1} parent=1 // pred_check_branch
      %88 = sbr.rel (0) target = $region37
    $region36: #{tpu_custom_call.1} parent=1 // pred_region
      _
    $region37: #{tpu_custom_call.1} parent=1 // pred_fallthru
      _
    // Predicated region
    $region38: #{tpu_custom_call.1} parent=1 // pred_check
      _
    $region39: #{tpu_custom_call.1} parent=1 // pred_check_branch
      %90 = sbr.rel (0) target = $region41
    $region40: #{tpu_custom_call.1} parent=1 // pred_region
      %92 = vsyncadd [#allocation12], 0
      %s93 = sshll.u32 %s9, 4
      %s94 = int_to_ptr.hbm [resolvable:$true] %s93
      %s95 = sshll.u32 [#allocation13], 4
      %s96 = int_to_ptr.vmem [resolvable:$true] %s95
      %101 = dma.hbm_to_vmem [thread:$0]  %s94, 512, %s96, [#allocation12], 128, 128, 8
    $region41: #{tpu_custom_call.1} parent=1 // pred_fallthru
      _
    // Predicated region
    $region42: #{tpu_custom_call.1} parent=1 // pred_check
      _
    $region43: #{tpu_custom_call.1} parent=1 // pred_check_branch
      %103 = sbr.rel (0) target = $region45
    $region44: #{tpu_custom_call.1} parent=1 // pred_region
      %105 = vsyncadd [#allocation15], 0
      %s106 = sshll.u32 %s10, 4
      %s107 = int_to_ptr.hbm [resolvable:$true] %s106
      %s108 = sshll.u32 [#allocation14], 4
      %s109 = int_to_ptr.vmem [resolvable:$true] %s108
      %114 = dma.hbm_to_vmem [thread:$0]  %s107, 512, %s109, [#allocation15], 128, 128, 8
    $region45: #{tpu_custom_call.1} parent=1 // pred_fallthru
      _
    // Predicated region
    $region46: #{tpu_custom_call.1} parent=1 // pred_check
      _
    $region47: #{tpu_custom_call.1} parent=1 // pred_check_branch
      %116 = sbr.rel (0) target = $region49
    $region48: #{tpu_custom_call.1} parent=1 // pred_region
      _
    $region49: #{tpu_custom_call.1} parent=1 // pred_fallthru
      _
    // Predicated region
    $region50: #{tpu_custom_call.1} parent=1 // pred_check
      _
    $region51: #{tpu_custom_call.1} parent=1 // pred_check_branch
      %118 = sbr.rel (0) target = $region53
    $region52: #{tpu_custom_call.1} parent=1 // pred_region
      %120 = vsyncadd [#allocation15], 0
      %s121 = sshll.u32 %s12, 4
      %s122 = int_to_ptr.hbm [resolvable:$true] %s121
      %s123 = sshll.u32 [#allocation16], 4
      %s124 = int_to_ptr.vmem [resolvable:$true] %s123
      %129 = dma.hbm_to_vmem [thread:$0]  %s122, 512, %s124, [#allocation15], 128, 128, 8
    $region53: #{tpu_custom_call.1} parent=1 // pred_fallthru
      _
    // Predicated region
    $region54: #{tpu_custom_call.1} parent=1 // pred_check
      _
    $region55: #{tpu_custom_call.1} parent=1 // pred_check_branch
      %131 = sbr.rel (0) target = $region57
    $region56: #{tpu_custom_call.1} parent=1 // pred_region
      _
    $region57: #{tpu_custom_call.1} parent=1 // pred_fallthru
      _
    // Predicated region
    $region58: #{tpu_custom_call.1} parent=1 // pred_check
      _
    $region59: #{tpu_custom_call.1} parent=1 // pred_check_branch
      %133 = sbr.rel (0) target = $region61
    $region60: #{tpu_custom_call.1} parent=1 // pred_region
      %135 = dma.done [#allocation6], 1024
    $region61: #{tpu_custom_call.1} parent=1 // pred_fallthru
      _
    // Predicated region
    $region62: #{tpu_custom_call.1} parent=1 // pred_check
      _
    $region63: #{tpu_custom_call.1} parent=1 // pred_check_branch
      %137 = sbr.rel (0) target = $region65
    $region64: #{tpu_custom_call.1} parent=1 // pred_region
      %139 = dma.done [#allocation9], 2048
    $region65: #{tpu_custom_call.1} parent=1 // pred_fallthru
      _
    // Predicated region
    $region66: #{tpu_custom_call.1} parent=1 // pred_check
      _
    $region67: #{tpu_custom_call.1} parent=1 // pred_check_branch
      %141 = sbr.rel (0) target = $region69
    $region68: #{tpu_custom_call.1} parent=1 // pred_region
      %143 = dma.done [#allocation9], 512
    $region69: #{tpu_custom_call.1} parent=1 // pred_fallthru
      _
    // Predicated region
    $region70: #{tpu_custom_call.1} parent=1 // pred_check
      _
    $region71: #{tpu_custom_call.1} parent=1 // pred_check_branch
      %145 = sbr.rel (0) target = $region73
    $region72: #{tpu_custom_call.1} parent=1 // pred_region
      %147 = dma.done [#allocation12], 512
    $region73: #{tpu_custom_call.1} parent=1 // pred_fallthru
      _
    // Predicated region
    $region74: #{tpu_custom_call.1} parent=1 // pred_check
      _
    $region75: #{tpu_custom_call.1} parent=1 // pred_check_branch
      %149 = sbr.rel (0) target = $region77
    $region76: #{tpu_custom_call.1} parent=1 // pred_region
      %151 = dma.done [#allocation12], 512
    $region77: #{tpu_custom_call.1} parent=1 // pred_fallthru
      _
    // Predicated region
    $region78: #{tpu_custom_call.1} parent=1 // pred_check
      _
    $region79: #{tpu_custom_call.1} parent=1 // pred_check_branch
      %153 = sbr.rel (0) target = $region81
    $region80: #{tpu_custom_call.1} parent=1 // pred_region
      %155 = dma.done [#allocation15], 512
    $region81: #{tpu_custom_call.1} parent=1 // pred_fallthru
      _
    // Predicated region
    $region82: #{tpu_custom_call.1} parent=1 // pred_check
      _
    $region83: #{tpu_custom_call.1} parent=1 // pred_check_branch
      %157 = sbr.rel (0) target = $region85
    $region84: #{tpu_custom_call.1} parent=1 // pred_region
      %159 = dma.done [#allocation15], 512
    $region85: #{tpu_custom_call.1} parent=1 // pred_fallthru
      _
    %v160 = vld [vmem:[%s0] sm:$0xff]
    %v161 = vld [vmem:[%s0 + $0x8] sm:$0xff]
    %v162 = vld [vmem:[%s0 + $0x10] sm:$0xff]
    %v163 = vld [vmem:[%s0 + $0x18] sm:$0xff]
    %v164 = vld [vmem:[%s0 + $0x20] sm:$0xff]
    %v165 = vld [vmem:[%s0 + $0x28] sm:$0xff]
    %v166 = vld [vmem:[%s0 + $0x30] sm:$0xff]
    %v167 = vld [vmem:[%s0 + $0x38] sm:$0xff]
    %v168 = vld [vmem:[#allocation5] sm:$0xff]
    %v169 = vld [vmem:[#allocation5 + $0x8] sm:$0xff]
    %v170 = vld [vmem:[#allocation5 + $0x10] sm:$0xff]
    %v171 = vld [vmem:[#allocation5 + $0x18] sm:$0xff]
    %v172 = vld [vmem:[#allocation5 + $0x20] sm:$0xff]
    %v173 = vld [vmem:[#allocation5 + $0x28] sm:$0xff]
    %v174 = vld [vmem:[#allocation5 + $0x30] sm:$0xff]
    %v175 = vld [vmem:[#allocation5 + $0x38] sm:$0xff]
    %vm176 = vcmask 261120
    %v178 = vsel %vm176, %v160, 0
    %v181 = vsel %vm176, %v161, 0
    %v184 = vsel %vm176, %v162, 0
    %v187 = vsel %vm176, %v163, 0
    %v190 = vsel %vm176, %v164, 0
    %v193 = vsel %vm176, %v165, 0
    %v196 = vsel %vm176, %v166, 0
    %v199 = vsel %vm176, %v167, 0
    %201 = vmatpush.msra.mxu0 0.0
    %202 = vmatpush.msra.mxu0 0.0
    %203 = vmatpush.msra.mxu0 0.0
    %204 = vmatpush.msra.mxu0 0.0
    %205 = vmatpush.msra.mxu0 0.0
    %206 = vmatpush.msra.mxu0 0.0
    %207 = vmatpush.msra.mxu0 0.0
    %208 = vmatpush.msra.mxu0 0.0
    %209 = vmatpush.msra.mxu0 0.0
    %210 = vmatpush.msra.mxu0 0.0
    %211 = vmatpush.msra.mxu0 0.0
    %212 = vmatpush.msra.mxu0 0.0
    %213 = vmatpush.msra.mxu0 %v174
    %214 = vmatpush.msra.mxu0 %v172
    %215 = vmatpush.msra.mxu0 %v170
    %216 = vmatpush.msra.mxu0 %v168
    %217 = vmatmul.f32.gmra.mxu0 %v178
    %v218 = vpop.f32.mrf.mxu0
    %v219 = vadd.f32 0.0, %v218
    %220 = vmatmul.f32.gmra.mxu0 %v181
    %v221 = vpop.f32.mrf.mxu0
    %v222 = vadd.f32 0.0, %v221
    %223 = vmatmul.f32.gmra.mxu0 %v184
    %v224 = vpop.f32.mrf.mxu0
    %v225 = vadd.f32 0.0, %v224
    %226 = vmatmul.f32.gmra.mxu0 %v187
    %v227 = vpop.f32.mrf.mxu0
    %v228 = vadd.f32 0.0, %v227
    %229 = vmatmul.f32.gmra.mxu0 %v190
    %v230 = vpop.f32.mrf.mxu0
    %v231 = vadd.f32 0.0, %v230
    %232 = vmatmul.f32.gmra.mxu0 %v193
    %v233 = vpop.f32.mrf.mxu0
    %v234 = vadd.f32 0.0, %v233
    %235 = vmatmul.f32.gmra.mxu0 %v196
    %v236 = vpop.f32.mrf.mxu0
    %v237 = vadd.f32 0.0, %v236
    %238 = vmatmul.f32.gmra.mxu0 %v199
    %v239 = vpop.f32.mrf.mxu0
    %v240 = vadd.f32 0.0, %v239
    %241 = vdwg.mxu0
    %242 = vmatpush.msra.mxu0 0.0
    %243 = vmatpush.msra.mxu0 0.0
    %244 = vmatpush.msra.mxu0 0.0
    %245 = vmatpush.msra.mxu0 0.0
    %246 = vmatpush.msra.mxu0 0.0
    %247 = vmatpush.msra.mxu0 0.0
    %248 = vmatpush.msra.mxu0 0.0
    %249 = vmatpush.msra.mxu0 0.0
    %250 = vmatpush.msra.mxu0 0.0
    %251 = vmatpush.msra.mxu0 0.0
    %252 = vmatpush.msra.mxu0 0.0
    %253 = vmatpush.msra.mxu0 0.0
    %254 = vmatpush.msra.mxu0 %v175
    %255 = vmatpush.msra.mxu0 %v173
    %256 = vmatpush.msra.mxu0 %v171
    %257 = vmatpush.msra.mxu0 %v169
    %258 = vmatmul.f32.gmra.mxu0 %v178
    %v259 = vpop.f32.mrf.mxu0
    %v260 = vadd.f32 0.0, %v259
    %261 = vmatmul.f32.gmra.mxu0 %v181
    %v262 = vpop.f32.mrf.mxu0
    %v263 = vadd.f32 0.0, %v262
    %264 = vmatmul.f32.gmra.mxu0 %v184
    %v265 = vpop.f32.mrf.mxu0
    %v266 = vadd.f32 0.0, %v265
    %267 = vmatmul.f32.gmra.mxu0 %v187
    %v268 = vpop.f32.mrf.mxu0
    %v269 = vadd.f32 0.0, %v268
    %270 = vmatmul.f32.gmra.mxu0 %v190
    %v271 = vpop.f32.mrf.mxu0
    %v272 = vadd.f32 0.0, %v271
    %273 = vmatmul.f32.gmra.mxu0 %v193
    %v274 = vpop.f32.mrf.mxu0
    %v275 = vadd.f32 0.0, %v274
    %276 = vmatmul.f32.gmra.mxu0 %v196
    %v277 = vpop.f32.mrf.mxu0
    %v278 = vadd.f32 0.0, %v277
    %279 = vmatmul.f32.gmra.mxu0 %v199
    %v280 = vpop.f32.mrf.mxu0
    %v281 = vadd.f32 0.0, %v280
    %282 = vdwg.mxu0
    %283 = vst [vmem:[#allocation2] sm:$0xff] %v219
    %284 = vst [vmem:[#allocation2 + $0x8] sm:$0xff] %v260
    %285 = vst [vmem:[#allocation2 + $0x10] sm:$0xff] %v222
    %286 = vst [vmem:[#allocation2 + $0x18] sm:$0xff] %v263
    %287 = vst [vmem:[#allocation2 + $0x20] sm:$0xff] %v225
    %288 = vst [vmem:[#allocation2 + $0x28] sm:$0xff] %v266
    %289 = vst [vmem:[#allocation2 + $0x30] sm:$0xff] %v228
    %290 = vst [vmem:[#allocation2 + $0x38] sm:$0xff] %v269
    %291 = vst [vmem:[#allocation2 + $0x40] sm:$0xff] %v231
    %292 = vst [vmem:[#allocation2 + $0x48] sm:$0xff] %v272
    %293 = vst [vmem:[#allocation2 + $0x50] sm:$0xff] %v234
    %294 = vst [vmem:[#allocation2 + $0x58] sm:$0xff] %v275
    %295 = vst [vmem:[#allocation2 + $0x60] sm:$0xff] %v237
    %296 = vst [vmem:[#allocation2 + $0x68] sm:$0xff] %v278
    %297 = vst [vmem:[#allocation2 + $0x70] sm:$0xff] %v240
    %298 = vst [vmem:[#allocation2 + $0x78] sm:$0xff] %v281
    %v299 = vld [vmem:[#allocation8] sm:$0xff]
    %v300 = vld [vmem:[#allocation8 + $0x8] sm:$0xff]
    %v301 = vld [vmem:[#allocation8 + $0x10] sm:$0xff]
    %v302 = vld [vmem:[#allocation8 + $0x18] sm:$0xff]
    %v303 = vld [vmem:[#allocation8 + $0x20] sm:$0xff]
    %v304 = vld [vmem:[#allocation8 + $0x28] sm:$0xff]
    %v305 = vld [vmem:[#allocation8 + $0x30] sm:$0xff]
    %v306 = vld [vmem:[#allocation8 + $0x38] sm:$0xff]
    %v307 = vld [vmem:[#allocation8 + $0x40] sm:$0xff]
    %v308 = vld [vmem:[#allocation8 + $0x48] sm:$0xff]
    %v309 = vld [vmem:[#allocation8 + $0x50] sm:$0xff]
    %v310 = vld [vmem:[#allocation8 + $0x58] sm:$0xff]
    %v311 = vld [vmem:[#allocation8 + $0x60] sm:$0xff]
    %v312 = vld [vmem:[#allocation8 + $0x68] sm:$0xff]
    %v313 = vld [vmem:[#allocation8 + $0x70] sm:$0xff]
    %v314 = vld [vmem:[#allocation8 + $0x78] sm:$0xff]
    %v315 = vld [vmem:[%s4] sm:$0x3]
    %v317 = vperm.slane %v315, 0
    %v318 = vperm.slane %v315, 1
    %vm321 = vcmask 523264
    %v323 = vsel %vm321, 0.0, 0
    %325 = vmatpush.msra.mxu0 0.0
    %326 = vmatpush.msra.mxu0 0.0
    %327 = vmatpush.msra.mxu0 0.0
    %328 = vmatpush.msra.mxu0 0.0
    %329 = vmatpush.msra.mxu0 0.0
    %330 = vmatpush.msra.mxu0 0.0
    %331 = vmatpush.msra.mxu0 0.0
    %332 = vmatpush.msra.mxu0 0.0
    %333 = vmatpush.msra.mxu0 %v313
    %334 = vmatpush.msra.mxu0 %v311
    %335 = vmatpush.msra.mxu0 %v309
    %336 = vmatpush.msra.mxu0 %v307
    %337 = vmatpush.msra.mxu0 %v305
    %338 = vmatpush.msra.mxu0 %v303
    %339 = vmatpush.msra.mxu0 %v301
    %340 = vmatpush.msra.mxu0 %v299
    %341 = vmatmul.f32.gmra.mxu0 %v323
    %v342 = vpop.f32.mrf.mxu0
    %v343 = vadd.f32 %v317, %v342
    %344 = vdwg.mxu0
    %345 = vmatpush.msra.mxu0 0.0
    %346 = vmatpush.msra.mxu0 0.0
    %347 = vmatpush.msra.mxu0 0.0
    %348 = vmatpush.msra.mxu0 0.0
    %349 = vmatpush.msra.mxu0 0.0
    %350 = vmatpush.msra.mxu0 0.0
    %351 = vmatpush.msra.mxu0 0.0
    %352 = vmatpush.msra.mxu0 0.0
    %353 = vmatpush.msra.mxu0 %v314
    %354 = vmatpush.msra.mxu0 %v312
    %355 = vmatpush.msra.mxu0 %v310
    %356 = vmatpush.msra.mxu0 %v308
    %357 = vmatpush.msra.mxu0 %v306
    %358 = vmatpush.msra.mxu0 %v304
    %359 = vmatpush.msra.mxu0 %v302
    %360 = vmatpush.msra.mxu0 %v300
    %361 = vmatmul.f32.gmra.mxu0 %v323
    %v362 = vpop.f32.mrf.mxu0
    %v363 = vadd.f32 %v318, %v362
    %364 = vdwg.mxu0
    %v365 = vld [vmem:[#allocation2] sm:$0xff]
    %v366 = vadd.f32 %v365, %v343
    %s367 = scalar_lea.vmem [#allocation2], 112
    %v368 = vld [vmem:[%s367 + $0x8] sm:$0xff]
    %v369 = vadd.f32 %v368, %v363
    %v370 = vxor.u32 %v366, 2147483648
    %v371 = vmul.f32 %v370, 1.442695
    %v372 = vpow.pop %v371
    %v373 = vadd.f32 %v372, 1.0
    %v374 = vrcp.pop %v373
    %v375 = vmul.f32 %v373, %v374
    %v376 = vsub.f32 1.0, %v375
    %v377 = vmul.f32 %v374, %v376
    %v378 = vadd.f32 %v374, %v377
    %vm379 = vweird.f32 %v373
    %vm380 = vweird.f32 %v374
    %vm381 = vmor %vm379, %vm380
    %v382 = vsel %vm381, %v374, %v378
    %v383 = vand.u32 2147483647, %v373
    %vm384 = vcmp.eq.f32.partialorder %v383, 8.507059e+37
    %v385 = vand.u32 %v373, 2147483648
    %v386 = vor.u32 1.1754944e-38, %v385
    %v387 = vsel %vm384, %v386, %v382
    %v388 = vmul.f32 1.0, %v387
    %v389 = vtanh.pop %v366
    %v390 = vmul.f32 %v388, 0.0
    %392 = vrot.lane.b32.xlu0 %v389, 64
    %v393 = vpop.permute.xlu0 %392
    %v395 = vmul.f32 %v388, %v393
    %397 = vrot.lane.b32.xlu0 %v395, 32
    %v398 = vpop.permute.xlu0 %397
    %v400 = vadd.f32 %v390, %v398
    %v401 = vtanh.pop %v400
    %403 = vrot.lane.b32.xlu0 %v401, 64
    %v404 = vpop.permute.xlu0 %403
    %v406 = vmul.f32 %v388, %v404
    %v407 = vxor.u32 %v369, 2147483648
    %v408 = vmul.f32 %v407, 1.442695
    %v409 = vpow.pop %v408
    %v410 = vadd.f32 %v409, 1.0
    %v411 = vrcp.pop %v410
    %v412 = vmul.f32 %v410, %v411
    %v413 = vsub.f32 1.0, %v412
    %v414 = vmul.f32 %v411, %v413
    %v415 = vadd.f32 %v411, %v414
    %vm416 = vweird.f32 %v410
    %vm417 = vweird.f32 %v411
    %vm418 = vmor %vm416, %vm417
    %v419 = vsel %vm418, %v411, %v415
    %v420 = vand.u32 2147483647, %v410
    %vm421 = vcmp.eq.f32.partialorder %v420, 8.507059e+37
    %v422 = vand.u32 %v410, 2147483648
    %v423 = vor.u32 1.1754944e-38, %v422
    %v424 = vsel %vm421, %v423, %v419
    %v425 = vmul.f32 1.0, %v424
    %v426 = vtanh.pop %v369
    %v427 = vmul.f32 %v425, 0.0
    %429 = vrot.lane.b32.xlu0 %v426, 64
    %v430 = vpop.permute.xlu0 %429
    %v432 = vmul.f32 %v425, %v430
    %434 = vrot.lane.b32.xlu0 %v432, 32
    %v435 = vpop.permute.xlu0 %434
    %v437 = vadd.f32 %v427, %v435
    %v438 = vtanh.pop %v437
    %440 = vrot.lane.b32.xlu0 %v438, 64
    %v441 = vpop.permute.xlu0 %440
    %v443 = vmul.f32 %v425, %v441
    %v444 = vld [vmem:[%s1] sm:$0xff]
    %vm445 = vcmp.gt.f32.partialorder %v444, 0.0
    %s446 = scalar_lea.vmem %s1, 56
    %v447 = vld [vmem:[%s446] sm:$0xff]
    %vm448 = vcmp.gt.f32.partialorder %v447, 0.0
    %v449 = vsel %vm445, 1, 0
    %450 = vset.pattern.permute.xlu0 0
    %451 = vperm.xlu0 %450, %v449
    %v452 = vpop.permute.xlu0 %451
    %vm453 = vcmp.eq.s32.totalorder %v452, 1
    %v454 = vsel %vm453, %v400, 0.0
    %v455 = vsel %vm448, 1, 0
    %456 = vset.pattern.permute.xlu0 0
    %457 = vperm.xlu0 %456, %v455
    %v458 = vpop.permute.xlu0 %457
    %vm459 = vcmp.eq.s32.totalorder %v458, 1
    %v460 = vsel %vm459, %v437, 0.0
    %v461 = vsel %vm453, %v406, 0.0
    %463 = vrot.lane.b32.xlu0 %v461, 32
    %v464 = vpop.permute.xlu0 %463
    %466 = vst.msk [vmem:[#allocation3] sm:$0xff] %vm176, %v464
    %v467 = vsel %vm459, %v443, 0.0
    %469 = vrot.lane.b32.xlu0 %v467, 32
    %v470 = vpop.permute.xlu0 %469
    %s472 = scalar_lea.vmem [#allocation4], 56
    %473 = vst.msk [vmem:[%s472] sm:$0xff] %vm176, %v470
    %474 = vrot.lane.b32.xlu0 %v467, 64
    %v475 = vpop.permute.xlu0 %474
    %v477 = vsel %vm176, %v464, %v475
    %v479 = vsel %vm321, %v477, 0
    %481 = vmatpush.msra.mxu0 0.0
    %482 = vmatpush.msra.mxu0 0.0
    %483 = vmatpush.msra.mxu0 0.0
    %484 = vmatpush.msra.mxu0 0.0
    %485 = vmatpush.msra.mxu0 0.0
    %486 = vmatpush.msra.mxu0 0.0
    %487 = vmatpush.msra.mxu0 0.0
    %488 = vmatpush.msra.mxu0 0.0
    %489 = vmatpush.msra.mxu0 %v313
    %490 = vmatpush.msra.mxu0 %v311
    %491 = vmatpush.msra.mxu0 %v309
    %492 = vmatpush.msra.mxu0 %v307
    %493 = vmatpush.msra.mxu0 %v305
    %494 = vmatpush.msra.mxu0 %v303
    %495 = vmatpush.msra.mxu0 %v301
    %496 = vmatpush.msra.mxu0 %v299
    %497 = vmatmul.f32.gmra.mxu0 %v479
    %v498 = vpop.f32.mrf.mxu0
    %v499 = vadd.f32 %v317, %v498
    %500 = vdwg.mxu0
    %501 = vmatpush.msra.mxu0 0.0
    %502 = vmatpush.msra.mxu0 0.0
    %503 = vmatpush.msra.mxu0 0.0
    %504 = vmatpush.msra.mxu0 0.0
    %505 = vmatpush.msra.mxu0 0.0
    %506 = vmatpush.msra.mxu0 0.0
    %507 = vmatpush.msra.mxu0 0.0
    %508 = vmatpush.msra.mxu0 0.0
    %509 = vmatpush.msra.mxu0 %v314
    %510 = vmatpush.msra.mxu0 %v312
    %511 = vmatpush.msra.mxu0 %v310
    %512 = vmatpush.msra.mxu0 %v308
    %513 = vmatpush.msra.mxu0 %v306
    %514 = vmatpush.msra.mxu0 %v304
    %515 = vmatpush.msra.mxu0 %v302
    %516 = vmatpush.msra.mxu0 %v300
    %517 = vmatmul.f32.gmra.mxu0 %v479
    %v518 = vpop.f32.mrf.mxu0
    %v519 = vadd.f32 %v318, %v518
    %520 = vdwg.mxu0
    %s521 = scalar_lea.vmem [#allocation2], 16
    %v522 = vld [vmem:[%s521] sm:$0xff]
    %v523 = vadd.f32 %v522, %v499
    %s524 = scalar_lea.vmem [#allocation2], 96
    %v525 = vld [vmem:[%s524 + $0x8] sm:$0xff]
    %v526 = vadd.f32 %v525, %v519
    %v527 = vxor.u32 %v523, 2147483648
    %v528 = vmul.f32 %v527, 1.442695
    %v529 = vpow.pop %v528
    %v530 = vadd.f32 %v529, 1.0
    %v531 = vrcp.pop %v530
    %v532 = vmul.f32 %v530, %v531
    %v533 = vsub.f32 1.0, %v532
    %v534 = vmul.f32 %v531, %v533
    %v535 = vadd.f32 %v531, %v534
    %vm536 = vweird.f32 %v530
    %vm537 = vweird.f32 %v531
    %vm538 = vmor %vm536, %vm537
    %v539 = vsel %vm538, %v531, %v535
    %v540 = vand.u32 2147483647, %v530
    %vm541 = vcmp.eq.f32.partialorder %v540, 8.507059e+37
    %v542 = vand.u32 %v530, 2147483648
    %v543 = vor.u32 1.1754944e-38, %v542
    %v544 = vsel %vm541, %v543, %v539
    %v545 = vmul.f32 1.0, %v544
    %v546 = vtanh.pop %v523
    %v547 = vmul.f32 %v545, %v454
    %549 = vrot.lane.b32.xlu0 %v546, 64
    %v550 = vpop.permute.xlu0 %549
    %v552 = vmul.f32 %v545, %v550
    %554 = vrot.lane.b32.xlu0 %v552, 32
    %v555 = vpop.permute.xlu0 %554
    %v557 = vadd.f32 %v547, %v555
    %v558 = vtanh.pop %v557
    %560 = vrot.lane.b32.xlu0 %v558, 64
    %v561 = vpop.permute.xlu0 %560
    %v563 = vmul.f32 %v545, %v561
    %v564 = vxor.u32 %v526, 2147483648
    %v565 = vmul.f32 %v564, 1.442695
    %v566 = vpow.pop %v565
    %v567 = vadd.f32 %v566, 1.0
    %v568 = vrcp.pop %v567
    %v569 = vmul.f32 %v567, %v568
    %v570 = vsub.f32 1.0, %v569
    %v571 = vmul.f32 %v568, %v570
    %v572 = vadd.f32 %v568, %v571
    %vm573 = vweird.f32 %v567
    %vm574 = vweird.f32 %v568
    %vm575 = vmor %vm573, %vm574
    %v576 = vsel %vm575, %v568, %v572
    %v577 = vand.u32 2147483647, %v567
    %vm578 = vcmp.eq.f32.partialorder %v577, 8.507059e+37
    %v579 = vand.u32 %v567, 2147483648
    %v580 = vor.u32 1.1754944e-38, %v579
    %v581 = vsel %vm578, %v580, %v576
    %v582 = vmul.f32 1.0, %v581
    %v583 = vtanh.pop %v526
    %v584 = vmul.f32 %v582, %v460
    %586 = vrot.lane.b32.xlu0 %v583, 64
    %v587 = vpop.permute.xlu0 %586
    %v589 = vmul.f32 %v582, %v587
    %591 = vrot.lane.b32.xlu0 %v589, 32
    %v592 = vpop.permute.xlu0 %591
    %v594 = vadd.f32 %v584, %v592
    %v595 = vtanh.pop %v594
    %597 = vrot.lane.b32.xlu0 %v595, 64
    %v598 = vpop.permute.xlu0 %597
    %v600 = vmul.f32 %v582, %v598
    %s601 = scalar_lea.vmem %s1, 8
    %v602 = vld [vmem:[%s601] sm:$0xff]
    %vm603 = vcmp.gt.f32.partialorder %v602, 0.0
    %s604 = scalar_lea.vmem %s1, 48
    %v605 = vld [vmem:[%s604] sm:$0xff]
    %vm606 = vcmp.gt.f32.partialorder %v605, 0.0
    %v607 = vsel %vm603, 1, 0
    %608 = vset.pattern.permute.xlu0 0
    %609 = vperm.xlu0 %608, %v607
    %v610 = vpop.permute.xlu0 %609
    %vm611 = vcmp.eq.s32.totalorder %v610, 1
    %v612 = vsel %vm611, %v557, %v454
    %v613 = vsel %vm606, 1, 0
    %614 = vset.pattern.permute.xlu0 0
    %615 = vperm.xlu0 %614, %v613
    %v616 = vpop.permute.xlu0 %615
    %vm617 = vcmp.eq.s32.totalorder %v616, 1
    %v618 = vsel %vm617, %v594, %v460
    %v619 = vsel %vm611, %v563, 0.0
    %621 = vrot.lane.b32.xlu0 %v619, 32
    %v622 = vpop.permute.xlu0 %621
    %s624 = scalar_lea.vmem [#allocation3], 8
    %625 = vst.msk [vmem:[%s624] sm:$0xff] %vm176, %v622
    %v626 = vsel %vm617, %v600, 0.0
    %628 = vrot.lane.b32.xlu0 %v626, 32
    %v629 = vpop.permute.xlu0 %628
    %s631 = scalar_lea.vmem [#allocation4], 48
    %632 = vst.msk [vmem:[%s631] sm:$0xff] %vm176, %v629
    %633 = vrot.lane.b32.xlu0 %v477, 96
    %v634 = vpop.permute.xlu0 %633
    %v636 = vsel %vm611, %v563, %v634
    %637 = vrot.lane.b32.xlu0 %v477, 64
    %v638 = vpop.permute.xlu0 %637
    %v640 = vsel %vm617, %v600, %v638
    %642 = vrot.lane.b32.xlu0 %v636, 32
    %v643 = vpop.permute.xlu0 %642
    %646 = vrot.lane.b32.xlu0 %v640, 64
    %v647 = vpop.permute.xlu0 %646
    %v649 = vsel %vm176, %v643, %v647
    %v651 = vsel %vm321, %v649, 0
    %653 = vmatpush.msra.mxu0 0.0
    %654 = vmatpush.msra.mxu0 0.0
    %655 = vmatpush.msra.mxu0 0.0
    %656 = vmatpush.msra.mxu0 0.0
    %657 = vmatpush.msra.mxu0 0.0
    %658 = vmatpush.msra.mxu0 0.0
    %659 = vmatpush.msra.mxu0 0.0
    %660 = vmatpush.msra.mxu0 0.0
    %661 = vmatpush.msra.mxu0 %v313
    %662 = vmatpush.msra.mxu0 %v311
    %663 = vmatpush.msra.mxu0 %v309
    %664 = vmatpush.msra.mxu0 %v307
    %665 = vmatpush.msra.mxu0 %v305
    %666 = vmatpush.msra.mxu0 %v303
    %667 = vmatpush.msra.mxu0 %v301
    %668 = vmatpush.msra.mxu0 %v299
    %669 = vmatmul.f32.gmra.mxu0 %v651
    %v670 = vpop.f32.mrf.mxu0
    %v671 = vadd.f32 %v317, %v670
    %672 = vdwg.mxu0
    %673 = vmatpush.msra.mxu0 0.0
    %674 = vmatpush.msra.mxu0 0.0
    %675 = vmatpush.msra.mxu0 0.0
    %676 = vmatpush.msra.mxu0 0.0
    %677 = vmatpush.msra.mxu0 0.0
    %678 = vmatpush.msra.mxu0 0.0
    %679 = vmatpush.msra.mxu0 0.0
    %680 = vmatpush.msra.mxu0 0.0
    %681 = vmatpush.msra.mxu0 %v314
    %682 = vmatpush.msra.mxu0 %v312
    %683 = vmatpush.msra.mxu0 %v310
    %684 = vmatpush.msra.mxu0 %v308
    %685 = vmatpush.msra.mxu0 %v306
    %686 = vmatpush.msra.mxu0 %v304
    %687 = vmatpush.msra.mxu0 %v302
    %688 = vmatpush.msra.mxu0 %v300
    %689 = vmatmul.f32.gmra.mxu0 %v651
    %v690 = vpop.f32.mrf.mxu0
    %v691 = vadd.f32 %v318, %v690
    %692 = vdwg.mxu0
    %s693 = scalar_lea.vmem [#allocation2], 32
    %v694 = vld [vmem:[%s693] sm:$0xff]
    %v695 = vadd.f32 %v694, %v671
    %s696 = scalar_lea.vmem [#allocation2], 80
    %v697 = vld [vmem:[%s696 + $0x8] sm:$0xff]
    %v698 = vadd.f32 %v697, %v691
    %v699 = vxor.u32 %v695, 2147483648
    %v700 = vmul.f32 %v699, 1.442695
    %v701 = vpow.pop %v700
    %v702 = vadd.f32 %v701, 1.0
    %v703 = vrcp.pop %v702
    %v704 = vmul.f32 %v702, %v703
    %v705 = vsub.f32 1.0, %v704
    %v706 = vmul.f32 %v703, %v705
    %v707 = vadd.f32 %v703, %v706
    %vm708 = vweird.f32 %v702
    %vm709 = vweird.f32 %v703
    %vm710 = vmor %vm708, %vm709
    %v711 = vsel %vm710, %v703, %v707
    %v712 = vand.u32 2147483647, %v702
    %vm713 = vcmp.eq.f32.partialorder %v712, 8.507059e+37
    %v714 = vand.u32 %v702, 2147483648
    %v715 = vor.u32 1.1754944e-38, %v714
    %v716 = vsel %vm713, %v715, %v711
    %v717 = vmul.f32 1.0, %v716
    %v718 = vtanh.pop %v695
    %v719 = vmul.f32 %v717, %v612
    %721 = vrot.lane.b32.xlu0 %v718, 64
    %v722 = vpop.permute.xlu0 %721
    %v724 = vmul.f32 %v717, %v722
    %726 = vrot.lane.b32.xlu0 %v724, 32
    %v727 = vpop.permute.xlu0 %726
    %v729 = vadd.f32 %v719, %v727
    %v730 = vtanh.pop %v729
    %732 = vrot.lane.b32.xlu0 %v730, 64
    %v733 = vpop.permute.xlu0 %732
    %v735 = vmul.f32 %v717, %v733
    %v736 = vxor.u32 %v698, 2147483648
    %v737 = vmul.f32 %v736, 1.442695
    %v738 = vpow.pop %v737
    %v739 = vadd.f32 %v738, 1.0
    %v740 = vrcp.pop %v739
    %v741 = vmul.f32 %v739, %v740
    %v742 = vsub.f32 1.0, %v741
    %v743 = vmul.f32 %v740, %v742
    %v744 = vadd.f32 %v740, %v743
    %vm745 = vweird.f32 %v739
    %vm746 = vweird.f32 %v740
    %vm747 = vmor %vm745, %vm746
    %v748 = vsel %vm747, %v740, %v744
    %v749 = vand.u32 2147483647, %v739
    %vm750 = vcmp.eq.f32.partialorder %v749, 8.507059e+37
    %v751 = vand.u32 %v739, 2147483648
    %v752 = vor.u32 1.1754944e-38, %v751
    %v753 = vsel %vm750, %v752, %v748
    %v754 = vmul.f32 1.0, %v753
    %v755 = vtanh.pop %v698
    %v756 = vmul.f32 %v754, %v618
    %758 = vrot.lane.b32.xlu0 %v755, 64
    %v759 = vpop.permute.xlu0 %758
    %v761 = vmul.f32 %v754, %v759
    %763 = vrot.lane.b32.xlu0 %v761, 32
    %v764 = vpop.permute.xlu0 %763
    %v766 = vadd.f32 %v756, %v764
    %v767 = vtanh.pop %v766
    %769 = vrot.lane.b32.xlu0 %v767, 64
    %v770 = vpop.permute.xlu0 %769
    %v772 = vmul.f32 %v754, %v770
    %s773 = scalar_lea.vmem %s1, 16
    %v774 = vld [vmem:[%s773] sm:$0xff]
    %vm775 = vcmp.gt.f32.partialorder %v774, 0.0
    %s776 = scalar_lea.vmem %s1, 40
    %v777 = vld [vmem:[%s776] sm:$0xff]
    %vm778 = vcmp.gt.f32.partialorder %v777, 0.0
    %v779 = vsel %vm775, 1, 0
    %780 = vset.pattern.permute.xlu0 0
    %781 = vperm.xlu0 %780, %v779
    %v782 = vpop.permute.xlu0 %781
    %vm783 = vcmp.eq.s32.totalorder %v782, 1
    %v784 = vsel %vm783, %v729, %v612
    %v785 = vsel %vm778, 1, 0
    %786 = vset.pattern.permute.xlu0 0
    %787 = vperm.xlu0 %786, %v785
    %v788 = vpop.permute.xlu0 %787
    %vm789 = vcmp.eq.s32.totalorder %v788, 1
    %v790 = vsel %vm789, %v766, %v618
    %v791 = vsel %vm783, %v735, 0.0
    %793 = vrot.lane.b32.xlu0 %v791, 32
    %v794 = vpop.permute.xlu0 %793
    %s796 = scalar_lea.vmem [#allocation3], 16
    %797 = vst.msk [vmem:[%s796] sm:$0xff] %vm176, %v794
    %v798 = vsel %vm789, %v772, 0.0
    %800 = vrot.lane.b32.xlu0 %v798, 32
    %v801 = vpop.permute.xlu0 %800
    %s803 = scalar_lea.vmem [#allocation4], 40
    %804 = vst.msk [vmem:[%s803] sm:$0xff] %vm176, %v801
    %805 = vrot.lane.b32.xlu0 %v649, 96
    %v806 = vpop.permute.xlu0 %805
    %v808 = vsel %vm783, %v735, %v806
    %809 = vrot.lane.b32.xlu0 %v649, 64
    %v810 = vpop.permute.xlu0 %809
    %v812 = vsel %vm789, %v772, %v810
    %814 = vrot.lane.b32.xlu0 %v808, 32
    %v815 = vpop.permute.xlu0 %814
    %818 = vrot.lane.b32.xlu0 %v812, 64
    %v819 = vpop.permute.xlu0 %818
    %v821 = vsel %vm176, %v815, %v819
    %v823 = vsel %vm321, %v821, 0
    %825 = vmatpush.msra.mxu0 0.0
    %826 = vmatpush.msra.mxu0 0.0
    %827 = vmatpush.msra.mxu0 0.0
    %828 = vmatpush.msra.mxu0 0.0
    %829 = vmatpush.msra.mxu0 0.0
    %830 = vmatpush.msra.mxu0 0.0
    %831 = vmatpush.msra.mxu0 0.0
    %832 = vmatpush.msra.mxu0 0.0
    %833 = vmatpush.msra.mxu0 %v313
    %834 = vmatpush.msra.mxu0 %v311
    %835 = vmatpush.msra.mxu0 %v309
    %836 = vmatpush.msra.mxu0 %v307
    %837 = vmatpush.msra.mxu0 %v305
    %838 = vmatpush.msra.mxu0 %v303
    %839 = vmatpush.msra.mxu0 %v301
    %840 = vmatpush.msra.mxu0 %v299
    %841 = vmatmul.f32.gmra.mxu0 %v823
    %v842 = vpop.f32.mrf.mxu0
    %v843 = vadd.f32 %v317, %v842
    %844 = vdwg.mxu0
    %845 = vmatpush.msra.mxu0 0.0
    %846 = vmatpush.msra.mxu0 0.0
    %847 = vmatpush.msra.mxu0 0.0
    %848 = vmatpush.msra.mxu0 0.0
    %849 = vmatpush.msra.mxu0 0.0
    %850 = vmatpush.msra.mxu0 0.0
    %851 = vmatpush.msra.mxu0 0.0
    %852 = vmatpush.msra.mxu0 0.0
    %853 = vmatpush.msra.mxu0 %v314
    %854 = vmatpush.msra.mxu0 %v312
    %855 = vmatpush.msra.mxu0 %v310
    %856 = vmatpush.msra.mxu0 %v308
    %857 = vmatpush.msra.mxu0 %v306
    %858 = vmatpush.msra.mxu0 %v304
    %859 = vmatpush.msra.mxu0 %v302
    %860 = vmatpush.msra.mxu0 %v300
    %861 = vmatmul.f32.gmra.mxu0 %v823
    %v862 = vpop.f32.mrf.mxu0
    %v863 = vadd.f32 %v318, %v862
    %864 = vdwg.mxu0
    %s865 = scalar_lea.vmem [#allocation2], 48
    %v866 = vld [vmem:[%s865] sm:$0xff]
    %v867 = vadd.f32 %v866, %v843
    %s868 = scalar_lea.vmem [#allocation2], 64
    %v869 = vld [vmem:[%s868 + $0x8] sm:$0xff]
    %v870 = vadd.f32 %v869, %v863
    %v871 = vxor.u32 %v867, 2147483648
    %v872 = vmul.f32 %v871, 1.442695
    %v873 = vpow.pop %v872
    %v874 = vadd.f32 %v873, 1.0
    %v875 = vrcp.pop %v874
    %v876 = vmul.f32 %v874, %v875
    %v877 = vsub.f32 1.0, %v876
    %v878 = vmul.f32 %v875, %v877
    %v879 = vadd.f32 %v875, %v878
    %vm880 = vweird.f32 %v874
    %vm881 = vweird.f32 %v875
    %vm882 = vmor %vm880, %vm881
    %v883 = vsel %vm882, %v875, %v879
    %v884 = vand.u32 2147483647, %v874
    %vm885 = vcmp.eq.f32.partialorder %v884, 8.507059e+37
    %v886 = vand.u32 %v874, 2147483648
    %v887 = vor.u32 1.1754944e-38, %v886
    %v888 = vsel %vm885, %v887, %v883
    %v889 = vmul.f32 1.0, %v888
    %v890 = vtanh.pop %v867
    %v891 = vmul.f32 %v889, %v784
    %893 = vrot.lane.b32.xlu0 %v890, 64
    %v894 = vpop.permute.xlu0 %893
    %v896 = vmul.f32 %v889, %v894
    %898 = vrot.lane.b32.xlu0 %v896, 32
    %v899 = vpop.permute.xlu0 %898
    %v901 = vadd.f32 %v891, %v899
    %v902 = vtanh.pop %v901
    %904 = vrot.lane.b32.xlu0 %v902, 64
    %v905 = vpop.permute.xlu0 %904
    %v907 = vmul.f32 %v889, %v905
    %v908 = vxor.u32 %v870, 2147483648
    %v909 = vmul.f32 %v908, 1.442695
    %v910 = vpow.pop %v909
    %v911 = vadd.f32 %v910, 1.0
    %v912 = vrcp.pop %v911
    %v913 = vmul.f32 %v911, %v912
    %v914 = vsub.f32 1.0, %v913
    %v915 = vmul.f32 %v912, %v914
    %v916 = vadd.f32 %v912, %v915
    %vm917 = vweird.f32 %v911
    %vm918 = vweird.f32 %v912
    %vm919 = vmor %vm917, %vm918
    %v920 = vsel %vm919, %v912, %v916
    %v921 = vand.u32 2147483647, %v911
    %vm922 = vcmp.eq.f32.partialorder %v921, 8.507059e+37
    %v923 = vand.u32 %v911, 2147483648
    %v924 = vor.u32 1.1754944e-38, %v923
    %v925 = vsel %vm922, %v924, %v920
    %v926 = vmul.f32 1.0, %v925
    %v927 = vtanh.pop %v870
    %v928 = vmul.f32 %v926, %v790
    %930 = vrot.lane.b32.xlu0 %v927, 64
    %v931 = vpop.permute.xlu0 %930
    %v933 = vmul.f32 %v926, %v931
    %935 = vrot.lane.b32.xlu0 %v933, 32
    %v936 = vpop.permute.xlu0 %935
    %v938 = vadd.f32 %v928, %v936
    %v939 = vtanh.pop %v938
    %941 = vrot.lane.b32.xlu0 %v939, 64
    %v942 = vpop.permute.xlu0 %941
    %v944 = vmul.f32 %v926, %v942
    %s945 = scalar_lea.vmem %s1, 24
    %v946 = vld [vmem:[%s945] sm:$0xff]
    %vm947 = vcmp.gt.f32.partialorder %v946, 0.0
    %s948 = scalar_lea.vmem %s1, 32
    %v949 = vld [vmem:[%s948] sm:$0xff]
    %vm950 = vcmp.gt.f32.partialorder %v949, 0.0
    %v951 = vsel %vm947, 1, 0
    %952 = vset.pattern.permute.xlu0 0
    %953 = vperm.xlu0 %952, %v951
    %v954 = vpop.permute.xlu0 %953
    %vm955 = vcmp.eq.s32.totalorder %v954, 1
    %v956 = vsel %vm955, %v901, %v784
    %v957 = vsel %vm950, 1, 0
    %958 = vset.pattern.permute.xlu0 0
    %959 = vperm.xlu0 %958, %v957
    %v960 = vpop.permute.xlu0 %959
    %vm961 = vcmp.eq.s32.totalorder %v960, 1
    %v962 = vsel %vm961, %v938, %v790
    %v963 = vsel %vm955, %v907, 0.0
    %965 = vrot.lane.b32.xlu0 %v963, 32
    %v966 = vpop.permute.xlu0 %965
    %s968 = scalar_lea.vmem [#allocation3], 24
    %969 = vst.msk [vmem:[%s968] sm:$0xff] %vm176, %v966
    %v970 = vsel %vm961, %v944, 0.0
    %972 = vrot.lane.b32.xlu0 %v970, 32
    %v973 = vpop.permute.xlu0 %972
    %s975 = scalar_lea.vmem [#allocation4], 32
    %976 = vst.msk [vmem:[%s975] sm:$0xff] %vm176, %v973
    %977 = vrot.lane.b32.xlu0 %v821, 96
    %v978 = vpop.permute.xlu0 %977
    %v980 = vsel %vm955, %v907, %v978
    %981 = vrot.lane.b32.xlu0 %v821, 64
    %v982 = vpop.permute.xlu0 %981
    %v984 = vsel %vm961, %v944, %v982
    %986 = vrot.lane.b32.xlu0 %v980, 32
    %v987 = vpop.permute.xlu0 %986
    %990 = vrot.lane.b32.xlu0 %v984, 64
    %v991 = vpop.permute.xlu0 %990
    %v993 = vsel %vm176, %v987, %v991
    %v995 = vsel %vm321, %v993, 0
    %997 = vmatpush.msra.mxu0 0.0
    %998 = vmatpush.msra.mxu0 0.0
    %999 = vmatpush.msra.mxu0 0.0
    %1000 = vmatpush.msra.mxu0 0.0
    %1001 = vmatpush.msra.mxu0 0.0
    %1002 = vmatpush.msra.mxu0 0.0
    %1003 = vmatpush.msra.mxu0 0.0
    %1004 = vmatpush.msra.mxu0 0.0
    %1005 = vmatpush.msra.mxu0 %v313
    %1006 = vmatpush.msra.mxu0 %v311
    %1007 = vmatpush.msra.mxu0 %v309
    %1008 = vmatpush.msra.mxu0 %v307
    %1009 = vmatpush.msra.mxu0 %v305
    %1010 = vmatpush.msra.mxu0 %v303
    %1011 = vmatpush.msra.mxu0 %v301
    %1012 = vmatpush.msra.mxu0 %v299
    %1013 = vmatmul.f32.gmra.mxu0 %v995
    %v1014 = vpop.f32.mrf.mxu0
    %v1015 = vadd.f32 %v317, %v1014
    %1016 = vdwg.mxu0
    %1017 = vmatpush.msra.mxu0 0.0
    %1018 = vmatpush.msra.mxu0 0.0
    %1019 = vmatpush.msra.mxu0 0.0
    %1020 = vmatpush.msra.mxu0 0.0
    %1021 = vmatpush.msra.mxu0 0.0
    %1022 = vmatpush.msra.mxu0 0.0
    %1023 = vmatpush.msra.mxu0 0.0
    %1024 = vmatpush.msra.mxu0 0.0
    %1025 = vmatpush.msra.mxu0 %v314
    %1026 = vmatpush.msra.mxu0 %v312
    %1027 = vmatpush.msra.mxu0 %v310
    %1028 = vmatpush.msra.mxu0 %v308
    %1029 = vmatpush.msra.mxu0 %v306
    %1030 = vmatpush.msra.mxu0 %v304
    %1031 = vmatpush.msra.mxu0 %v302
    %1032 = vmatpush.msra.mxu0 %v300
    %1033 = vmatmul.f32.gmra.mxu0 %v995
    %v1034 = vpop.f32.mrf.mxu0
    %v1035 = vadd.f32 %v318, %v1034
    %1036 = vdwg.mxu0
    %v1037 = vld [vmem:[%s868] sm:$0xff]
    %v1038 = vadd.f32 %v1037, %v1015
    %v1039 = vld [vmem:[%s865 + $0x8] sm:$0xff]
    %v1040 = vadd.f32 %v1039, %v1035
    %v1041 = vxor.u32 %v1038, 2147483648
    %v1042 = vmul.f32 %v1041, 1.442695
    %v1043 = vpow.pop %v1042
    %v1044 = vadd.f32 %v1043, 1.0
    %v1045 = vrcp.pop %v1044
    %v1046 = vmul.f32 %v1044, %v1045
    %v1047 = vsub.f32 1.0, %v1046
    %v1048 = vmul.f32 %v1045, %v1047
    %v1049 = vadd.f32 %v1045, %v1048
    %vm1050 = vweird.f32 %v1044
    %vm1051 = vweird.f32 %v1045
    %vm1052 = vmor %vm1050, %vm1051
    %v1053 = vsel %vm1052, %v1045, %v1049
    %v1054 = vand.u32 2147483647, %v1044
    %vm1055 = vcmp.eq.f32.partialorder %v1054, 8.507059e+37
    %v1056 = vand.u32 %v1044, 2147483648
    %v1057 = vor.u32 1.1754944e-38, %v1056
    %v1058 = vsel %vm1055, %v1057, %v1053
    %v1059 = vmul.f32 1.0, %v1058
    %v1060 = vtanh.pop %v1038
    %v1061 = vmul.f32 %v1059, %v956
    %1063 = vrot.lane.b32.xlu0 %v1060, 64
    %v1064 = vpop.permute.xlu0 %1063
    %v1066 = vmul.f32 %v1059, %v1064
    %1068 = vrot.lane.b32.xlu0 %v1066, 32
    %v1069 = vpop.permute.xlu0 %1068
    %v1071 = vadd.f32 %v1061, %v1069
    %v1072 = vtanh.pop %v1071
    %1074 = vrot.lane.b32.xlu0 %v1072, 64
    %v1075 = vpop.permute.xlu0 %1074
    %v1077 = vmul.f32 %v1059, %v1075
    %v1078 = vxor.u32 %v1040, 2147483648
    %v1079 = vmul.f32 %v1078, 1.442695
    %v1080 = vpow.pop %v1079
    %v1081 = vadd.f32 %v1080, 1.0
    %v1082 = vrcp.pop %v1081
    %v1083 = vmul.f32 %v1081, %v1082
    %v1084 = vsub.f32 1.0, %v1083
    %v1085 = vmul.f32 %v1082, %v1084
    %v1086 = vadd.f32 %v1082, %v1085
    %vm1087 = vweird.f32 %v1081
    %vm1088 = vweird.f32 %v1082
    %vm1089 = vmor %vm1087, %vm1088
    %v1090 = vsel %vm1089, %v1082, %v1086
    %v1091 = vand.u32 2147483647, %v1081
    %vm1092 = vcmp.eq.f32.partialorder %v1091, 8.507059e+37
    %v1093 = vand.u32 %v1081, 2147483648
    %v1094 = vor.u32 1.1754944e-38, %v1093
    %v1095 = vsel %vm1092, %v1094, %v1090
    %v1096 = vmul.f32 1.0, %v1095
    %v1097 = vtanh.pop %v1040
    %v1098 = vmul.f32 %v1096, %v962
    %1100 = vrot.lane.b32.xlu0 %v1097, 64
    %v1101 = vpop.permute.xlu0 %1100
    %v1103 = vmul.f32 %v1096, %v1101
    %1105 = vrot.lane.b32.xlu0 %v1103, 32
    %v1106 = vpop.permute.xlu0 %1105
    %v1108 = vadd.f32 %v1098, %v1106
    %v1109 = vtanh.pop %v1108
    %1111 = vrot.lane.b32.xlu0 %v1109, 64
    %v1112 = vpop.permute.xlu0 %1111
    %v1114 = vmul.f32 %v1096, %v1112
    %v1115 = vld [vmem:[%s948] sm:$0xff]
    %vm1116 = vcmp.gt.f32.partialorder %v1115, 0.0
    %v1117 = vld [vmem:[%s945] sm:$0xff]
    %vm1118 = vcmp.gt.f32.partialorder %v1117, 0.0
    %v1119 = vsel %vm1116, 1, 0
    %1120 = vset.pattern.permute.xlu0 0
    %1121 = vperm.xlu0 %1120, %v1119
    %v1122 = vpop.permute.xlu0 %1121
    %vm1123 = vcmp.eq.s32.totalorder %v1122, 1
    %v1124 = vsel %vm1123, %v1071, %v956
    %v1125 = vsel %vm1118, 1, 0
    %1126 = vset.pattern.permute.xlu0 0
    %1127 = vperm.xlu0 %1126, %v1125
    %v1128 = vpop.permute.xlu0 %1127
    %vm1129 = vcmp.eq.s32.totalorder %v1128, 1
    %v1130 = vsel %vm1129, %v1108, %v962
    %v1131 = vsel %vm1123, %v1077, 0.0
    %1133 = vrot.lane.b32.xlu0 %v1131, 32
    %v1134 = vpop.permute.xlu0 %1133
    %s1136 = scalar_lea.vmem [#allocation3], 32
    %1137 = vst.msk [vmem:[%s1136] sm:$0xff] %vm176, %v1134
    %v1138 = vsel %vm1129, %v1114, 0.0
    %1140 = vrot.lane.b32.xlu0 %v1138, 32
    %v1141 = vpop.permute.xlu0 %1140
    %s1143 = scalar_lea.vmem [#allocation4], 24
    %1144 = vst.msk [vmem:[%s1143] sm:$0xff] %vm176, %v1141
    %1145 = vrot.lane.b32.xlu0 %v993, 96
    %v1146 = vpop.permute.xlu0 %1145
    %v1148 = vsel %vm1123, %v1077, %v1146
    %1149 = vrot.lane.b32.xlu0 %v993, 64
    %v1150 = vpop.permute.xlu0 %1149
    %v1152 = vsel %vm1129, %v1114, %v1150
    %1154 = vrot.lane.b32.xlu0 %v1148, 32
    %v1155 = vpop.permute.xlu0 %1154
    %1158 = vrot.lane.b32.xlu0 %v1152, 64
    %v1159 = vpop.permute.xlu0 %1158
    %v1161 = vsel %vm176, %v1155, %v1159
    %v1163 = vsel %vm321, %v1161, 0
    %1165 = vmatpush.msra.mxu0 0.0
    %1166 = vmatpush.msra.mxu0 0.0
    %1167 = vmatpush.msra.mxu0 0.0
    %1168 = vmatpush.msra.mxu0 0.0
    %1169 = vmatpush.msra.mxu0 0.0
    %1170 = vmatpush.msra.mxu0 0.0
    %1171 = vmatpush.msra.mxu0 0.0
    %1172 = vmatpush.msra.mxu0 0.0
    %1173 = vmatpush.msra.mxu0 %v313
    %1174 = vmatpush.msra.mxu0 %v311
    %1175 = vmatpush.msra.mxu0 %v309
    %1176 = vmatpush.msra.mxu0 %v307
    %1177 = vmatpush.msra.mxu0 %v305
    %1178 = vmatpush.msra.mxu0 %v303
    %1179 = vmatpush.msra.mxu0 %v301
    %1180 = vmatpush.msra.mxu0 %v299
    %1181 = vmatmul.f32.gmra.mxu0 %v1163
    %v1182 = vpop.f32.mrf.mxu0
    %v1183 = vadd.f32 %v317, %v1182
    %1184 = vdwg.mxu0
    %1185 = vmatpush.msra.mxu0 0.0
    %1186 = vmatpush.msra.mxu0 0.0
    %1187 = vmatpush.msra.mxu0 0.0
    %1188 = vmatpush.msra.mxu0 0.0
    %1189 = vmatpush.msra.mxu0 0.0
    %1190 = vmatpush.msra.mxu0 0.0
    %1191 = vmatpush.msra.mxu0 0.0
    %1192 = vmatpush.msra.mxu0 0.0
    %1193 = vmatpush.msra.mxu0 %v314
    %1194 = vmatpush.msra.mxu0 %v312
    %1195 = vmatpush.msra.mxu0 %v310
    %1196 = vmatpush.msra.mxu0 %v308
    %1197 = vmatpush.msra.mxu0 %v306
    %1198 = vmatpush.msra.mxu0 %v304
    %1199 = vmatpush.msra.mxu0 %v302
    %1200 = vmatpush.msra.mxu0 %v300
    %1201 = vmatmul.f32.gmra.mxu0 %v1163
    %v1202 = vpop.f32.mrf.mxu0
    %v1203 = vadd.f32 %v318, %v1202
    %1204 = vdwg.mxu0
    %v1205 = vld [vmem:[%s696] sm:$0xff]
    %v1206 = vadd.f32 %v1205, %v1183
    %v1207 = vld [vmem:[%s693 + $0x8] sm:$0xff]
    %v1208 = vadd.f32 %v1207, %v1203
    %v1209 = vxor.u32 %v1206, 2147483648
    %v1210 = vmul.f32 %v1209, 1.442695
    %v1211 = vpow.pop %v1210
    %v1212 = vadd.f32 %v1211, 1.0
    %v1213 = vrcp.pop %v1212
    %v1214 = vmul.f32 %v1212, %v1213
    %v1215 = vsub.f32 1.0, %v1214
    %v1216 = vmul.f32 %v1213, %v1215
    %v1217 = vadd.f32 %v1213, %v1216
    %vm1218 = vweird.f32 %v1212
    %vm1219 = vweird.f32 %v1213
    %vm1220 = vmor %vm1218, %vm1219
    %v1221 = vsel %vm1220, %v1213, %v1217
    %v1222 = vand.u32 2147483647, %v1212
    %vm1223 = vcmp.eq.f32.partialorder %v1222, 8.507059e+37
    %v1224 = vand.u32 %v1212, 2147483648
    %v1225 = vor.u32 1.1754944e-38, %v1224
    %v1226 = vsel %vm1223, %v1225, %v1221
    %v1227 = vmul.f32 1.0, %v1226
    %v1228 = vtanh.pop %v1206
    %v1229 = vmul.f32 %v1227, %v1124
    %1231 = vrot.lane.b32.xlu0 %v1228, 64
    %v1232 = vpop.permute.xlu0 %1231
    %v1234 = vmul.f32 %v1227, %v1232
    %1236 = vrot.lane.b32.xlu0 %v1234, 32
    %v1237 = vpop.permute.xlu0 %1236
    %v1239 = vadd.f32 %v1229, %v1237
    %v1240 = vtanh.pop %v1239
    %1242 = vrot.lane.b32.xlu0 %v1240, 64
    %v1243 = vpop.permute.xlu0 %1242
    %v1245 = vmul.f32 %v1227, %v1243
    %v1246 = vxor.u32 %v1208, 2147483648
    %v1247 = vmul.f32 %v1246, 1.442695
    %v1248 = vpow.pop %v1247
    %v1249 = vadd.f32 %v1248, 1.0
    %v1250 = vrcp.pop %v1249
    %v1251 = vmul.f32 %v1249, %v1250
    %v1252 = vsub.f32 1.0, %v1251
    %v1253 = vmul.f32 %v1250, %v1252
    %v1254 = vadd.f32 %v1250, %v1253
    %vm1255 = vweird.f32 %v1249
    %vm1256 = vweird.f32 %v1250
    %vm1257 = vmor %vm1255, %vm1256
    %v1258 = vsel %vm1257, %v1250, %v1254
    %v1259 = vand.u32 2147483647, %v1249
    %vm1260 = vcmp.eq.f32.partialorder %v1259, 8.507059e+37
    %v1261 = vand.u32 %v1249, 2147483648
    %v1262 = vor.u32 1.1754944e-38, %v1261
    %v1263 = vsel %vm1260, %v1262, %v1258
    %v1264 = vmul.f32 1.0, %v1263
    %v1265 = vtanh.pop %v1208
    %v1266 = vmul.f32 %v1264, %v1130
    %1268 = vrot.lane.b32.xlu0 %v1265, 64
    %v1269 = vpop.permute.xlu0 %1268
    %v1271 = vmul.f32 %v1264, %v1269
    %1273 = vrot.lane.b32.xlu0 %v1271, 32
    %v1274 = vpop.permute.xlu0 %1273
    %v1276 = vadd.f32 %v1266, %v1274
    %v1277 = vtanh.pop %v1276
    %1279 = vrot.lane.b32.xlu0 %v1277, 64
    %v1280 = vpop.permute.xlu0 %1279
    %v1282 = vmul.f32 %v1264, %v1280
    %v1283 = vld [vmem:[%s776] sm:$0xff]
    %vm1284 = vcmp.gt.f32.partialorder %v1283, 0.0
    %v1285 = vld [vmem:[%s773] sm:$0xff]
    %vm1286 = vcmp.gt.f32.partialorder %v1285, 0.0
    %v1287 = vsel %vm1284, 1, 0
    %1288 = vset.pattern.permute.xlu0 0
    %1289 = vperm.xlu0 %1288, %v1287
    %v1290 = vpop.permute.xlu0 %1289
    %vm1291 = vcmp.eq.s32.totalorder %v1290, 1
    %v1292 = vsel %vm1291, %v1239, %v1124
    %v1293 = vsel %vm1286, 1, 0
    %1294 = vset.pattern.permute.xlu0 0
    %1295 = vperm.xlu0 %1294, %v1293
    %v1296 = vpop.permute.xlu0 %1295
    %vm1297 = vcmp.eq.s32.totalorder %v1296, 1
    %v1298 = vsel %vm1297, %v1276, %v1130
    %v1299 = vsel %vm1291, %v1245, 0.0
    %1301 = vrot.lane.b32.xlu0 %v1299, 32
    %v1302 = vpop.permute.xlu0 %1301
    %s1304 = scalar_lea.vmem [#allocation3], 40
    %1305 = vst.msk [vmem:[%s1304] sm:$0xff] %vm176, %v1302
    %v1306 = vsel %vm1297, %v1282, 0.0
    %1308 = vrot.lane.b32.xlu0 %v1306, 32
    %v1309 = vpop.permute.xlu0 %1308
    %s1311 = scalar_lea.vmem [#allocation4], 16
    %1312 = vst.msk [vmem:[%s1311] sm:$0xff] %vm176, %v1309
    %1313 = vrot.lane.b32.xlu0 %v1161, 96
    %v1314 = vpop.permute.xlu0 %1313
    %v1316 = vsel %vm1291, %v1245, %v1314
    %1317 = vrot.lane.b32.xlu0 %v1161, 64
    %v1318 = vpop.permute.xlu0 %1317
    %v1320 = vsel %vm1297, %v1282, %v1318
    %1322 = vrot.lane.b32.xlu0 %v1316, 32
    %v1323 = vpop.permute.xlu0 %1322
    %1326 = vrot.lane.b32.xlu0 %v1320, 64
    %v1327 = vpop.permute.xlu0 %1326
    %v1329 = vsel %vm176, %v1323, %v1327
    %v1331 = vsel %vm321, %v1329, 0
    %1333 = vmatpush.msra.mxu0 0.0
    %1334 = vmatpush.msra.mxu0 0.0
    %1335 = vmatpush.msra.mxu0 0.0
    %1336 = vmatpush.msra.mxu0 0.0
    %1337 = vmatpush.msra.mxu0 0.0
    %1338 = vmatpush.msra.mxu0 0.0
    %1339 = vmatpush.msra.mxu0 0.0
    %1340 = vmatpush.msra.mxu0 0.0
    %1341 = vmatpush.msra.mxu0 %v313
    %1342 = vmatpush.msra.mxu0 %v311
    %1343 = vmatpush.msra.mxu0 %v309
    %1344 = vmatpush.msra.mxu0 %v307
    %1345 = vmatpush.msra.mxu0 %v305
    %1346 = vmatpush.msra.mxu0 %v303
    %1347 = vmatpush.msra.mxu0 %v301
    %1348 = vmatpush.msra.mxu0 %v299
    %1349 = vmatmul.f32.gmra.mxu0 %v1331
    %v1350 = vpop.f32.mrf.mxu0
    %v1351 = vadd.f32 %v317, %v1350
    %1352 = vdwg.mxu0
    %1353 = vmatpush.msra.mxu0 0.0
    %1354 = vmatpush.msra.mxu0 0.0
    %1355 = vmatpush.msra.mxu0 0.0
    %1356 = vmatpush.msra.mxu0 0.0
    %1357 = vmatpush.msra.mxu0 0.0
    %1358 = vmatpush.msra.mxu0 0.0
    %1359 = vmatpush.msra.mxu0 0.0
    %1360 = vmatpush.msra.mxu0 0.0
    %1361 = vmatpush.msra.mxu0 %v314
    %1362 = vmatpush.msra.mxu0 %v312
    %1363 = vmatpush.msra.mxu0 %v310
    %1364 = vmatpush.msra.mxu0 %v308
    %1365 = vmatpush.msra.mxu0 %v306
    %1366 = vmatpush.msra.mxu0 %v304
    %1367 = vmatpush.msra.mxu0 %v302
    %1368 = vmatpush.msra.mxu0 %v300
    %1369 = vmatmul.f32.gmra.mxu0 %v1331
    %v1370 = vpop.f32.mrf.mxu0
    %v1371 = vadd.f32 %v318, %v1370
    %1372 = vdwg.mxu0
    %v1373 = vld [vmem:[%s524] sm:$0xff]
    %v1374 = vadd.f32 %v1373, %v1351
    %v1375 = vld [vmem:[%s521 + $0x8] sm:$0xff]
    %v1376 = vadd.f32 %v1375, %v1371
    %v1377 = vxor.u32 %v1374, 2147483648
    %v1378 = vmul.f32 %v1377, 1.442695
    %v1379 = vpow.pop %v1378
    %v1380 = vadd.f32 %v1379, 1.0
    %v1381 = vrcp.pop %v1380
    %v1382 = vmul.f32 %v1380, %v1381
    %v1383 = vsub.f32 1.0, %v1382
    %v1384 = vmul.f32 %v1381, %v1383
    %v1385 = vadd.f32 %v1381, %v1384
    %vm1386 = vweird.f32 %v1380
    %vm1387 = vweird.f32 %v1381
    %vm1388 = vmor %vm1386, %vm1387
    %v1389 = vsel %vm1388, %v1381, %v1385
    %v1390 = vand.u32 2147483647, %v1380
    %vm1391 = vcmp.eq.f32.partialorder %v1390, 8.507059e+37
    %v1392 = vand.u32 %v1380, 2147483648
    %v1393 = vor.u32 1.1754944e-38, %v1392
    %v1394 = vsel %vm1391, %v1393, %v1389
    %v1395 = vmul.f32 1.0, %v1394
    %v1396 = vtanh.pop %v1374
    %v1397 = vmul.f32 %v1395, %v1292
    %1399 = vrot.lane.b32.xlu0 %v1396, 64
    %v1400 = vpop.permute.xlu0 %1399
    %v1402 = vmul.f32 %v1395, %v1400
    %1404 = vrot.lane.b32.xlu0 %v1402, 32
    %v1405 = vpop.permute.xlu0 %1404
    %v1407 = vadd.f32 %v1397, %v1405
    %v1408 = vtanh.pop %v1407
    %1410 = vrot.lane.b32.xlu0 %v1408, 64
    %v1411 = vpop.permute.xlu0 %1410
    %v1413 = vmul.f32 %v1395, %v1411
    %v1414 = vxor.u32 %v1376, 2147483648
    %v1415 = vmul.f32 %v1414, 1.442695
    %v1416 = vpow.pop %v1415
    %v1417 = vadd.f32 %v1416, 1.0
    %v1418 = vrcp.pop %v1417
    %v1419 = vmul.f32 %v1417, %v1418
    %v1420 = vsub.f32 1.0, %v1419
    %v1421 = vmul.f32 %v1418, %v1420
    %v1422 = vadd.f32 %v1418, %v1421
    %vm1423 = vweird.f32 %v1417
    %vm1424 = vweird.f32 %v1418
    %vm1425 = vmor %vm1423, %vm1424
    %v1426 = vsel %vm1425, %v1418, %v1422
    %v1427 = vand.u32 2147483647, %v1417
    %vm1428 = vcmp.eq.f32.partialorder %v1427, 8.507059e+37
    %v1429 = vand.u32 %v1417, 2147483648
    %v1430 = vor.u32 1.1754944e-38, %v1429
    %v1431 = vsel %vm1428, %v1430, %v1426
    %v1432 = vmul.f32 1.0, %v1431
    %v1433 = vtanh.pop %v1376
    %v1434 = vmul.f32 %v1432, %v1298
    %1436 = vrot.lane.b32.xlu0 %v1433, 64
    %v1437 = vpop.permute.xlu0 %1436
    %v1439 = vmul.f32 %v1432, %v1437
    %1441 = vrot.lane.b32.xlu0 %v1439, 32
    %v1442 = vpop.permute.xlu0 %1441
    %v1444 = vadd.f32 %v1434, %v1442
    %v1445 = vtanh.pop %v1444
    %1447 = vrot.lane.b32.xlu0 %v1445, 64
    %v1448 = vpop.permute.xlu0 %1447
    %v1450 = vmul.f32 %v1432, %v1448
    %v1451 = vld [vmem:[%s604] sm:$0xff]
    %vm1452 = vcmp.gt.f32.partialorder %v1451, 0.0
    %v1453 = vld [vmem:[%s601] sm:$0xff]
    %vm1454 = vcmp.gt.f32.partialorder %v1453, 0.0
    %v1455 = vsel %vm1452, 1, 0
    %1456 = vset.pattern.permute.xlu0 0
    %1457 = vperm.xlu0 %1456, %v1455
    %v1458 = vpop.permute.xlu0 %1457
    %vm1459 = vcmp.eq.s32.totalorder %v1458, 1
    %v1460 = vsel %vm1459, %v1407, %v1292
    %v1461 = vsel %vm1454, 1, 0
    %1462 = vset.pattern.permute.xlu0 0
    %1463 = vperm.xlu0 %1462, %v1461
    %v1464 = vpop.permute.xlu0 %1463
    %vm1465 = vcmp.eq.s32.totalorder %v1464, 1
    %v1466 = vsel %vm1465, %v1444, %v1298
    %v1467 = vsel %vm1459, %v1413, 0.0
    %1469 = vrot.lane.b32.xlu0 %v1467, 32
    %v1470 = vpop.permute.xlu0 %1469
    %s1472 = scalar_lea.vmem [#allocation3], 48
    %1473 = vst.msk [vmem:[%s1472] sm:$0xff] %vm176, %v1470
    %v1474 = vsel %vm1465, %v1450, 0.0
    %1476 = vrot.lane.b32.xlu0 %v1474, 32
    %v1477 = vpop.permute.xlu0 %1476
    %s1479 = scalar_lea.vmem [#allocation4], 8
    %1480 = vst.msk [vmem:[%s1479] sm:$0xff] %vm176, %v1477
    %1481 = vrot.lane.b32.xlu0 %v1329, 96
    %v1482 = vpop.permute.xlu0 %1481
    %v1484 = vsel %vm1459, %v1413, %v1482
    %1485 = vrot.lane.b32.xlu0 %v1329, 64
    %v1486 = vpop.permute.xlu0 %1485
    %v1488 = vsel %vm1465, %v1450, %v1486
    %1490 = vrot.lane.b32.xlu0 %v1484, 32
    %v1491 = vpop.permute.xlu0 %1490
    %1494 = vrot.lane.b32.xlu0 %v1488, 64
    %v1495 = vpop.permute.xlu0 %1494
    %v1497 = vsel %vm176, %v1491, %v1495
    %v1499 = vsel %vm321, %v1497, 0
    %1501 = vmatpush.msra.mxu0 0.0
    %1502 = vmatpush.msra.mxu0 0.0
    %1503 = vmatpush.msra.mxu0 0.0
    %1504 = vmatpush.msra.mxu0 0.0
    %1505 = vmatpush.msra.mxu0 0.0
    %1506 = vmatpush.msra.mxu0 0.0
    %1507 = vmatpush.msra.mxu0 0.0
    %1508 = vmatpush.msra.mxu0 0.0
    %1509 = vmatpush.msra.mxu0 %v313
    %1510 = vmatpush.msra.mxu0 %v311
    %1511 = vmatpush.msra.mxu0 %v309
    %1512 = vmatpush.msra.mxu0 %v307
    %1513 = vmatpush.msra.mxu0 %v305
    %1514 = vmatpush.msra.mxu0 %v303
    %1515 = vmatpush.msra.mxu0 %v301
    %1516 = vmatpush.msra.mxu0 %v299
    %1517 = vmatmul.f32.gmra.mxu0 %v1499
    %v1518 = vpop.f32.mrf.mxu0
    %v1519 = vadd.f32 %v317, %v1518
    %1520 = vdwg.mxu0
    %1521 = vmatpush.msra.mxu0 0.0
    %1522 = vmatpush.msra.mxu0 0.0
    %1523 = vmatpush.msra.mxu0 0.0
    %1524 = vmatpush.msra.mxu0 0.0
    %1525 = vmatpush.msra.mxu0 0.0
    %1526 = vmatpush.msra.mxu0 0.0
    %1527 = vmatpush.msra.mxu0 0.0
    %1528 = vmatpush.msra.mxu0 0.0
    %1529 = vmatpush.msra.mxu0 %v314
    %1530 = vmatpush.msra.mxu0 %v312
    %1531 = vmatpush.msra.mxu0 %v310
    %1532 = vmatpush.msra.mxu0 %v308
    %1533 = vmatpush.msra.mxu0 %v306
    %1534 = vmatpush.msra.mxu0 %v304
    %1535 = vmatpush.msra.mxu0 %v302
    %1536 = vmatpush.msra.mxu0 %v300
    %1537 = vmatmul.f32.gmra.mxu0 %v1499
    %v1538 = vpop.f32.mrf.mxu0
    %v1539 = vadd.f32 %v318, %v1538
    %1540 = vdwg.mxu0
    %v1541 = vld [vmem:[%s367] sm:$0xff]
    %v1542 = vadd.f32 %v1541, %v1519
    %v1543 = vld [vmem:[#allocation2 + $0x8] sm:$0xff]
    %v1544 = vadd.f32 %v1543, %v1539
    %v1545 = vxor.u32 %v1542, 2147483648
    %v1546 = vmul.f32 %v1545, 1.442695
    %v1547 = vpow.pop %v1546
    %v1548 = vadd.f32 %v1547, 1.0
    %v1549 = vrcp.pop %v1548
    %v1550 = vmul.f32 %v1548, %v1549
    %v1551 = vsub.f32 1.0, %v1550
    %v1552 = vmul.f32 %v1549, %v1551
    %v1553 = vadd.f32 %v1549, %v1552
    %vm1554 = vweird.f32 %v1548
    %vm1555 = vweird.f32 %v1549
    %vm1556 = vmor %vm1554, %vm1555
    %v1557 = vsel %vm1556, %v1549, %v1553
    %v1558 = vand.u32 2147483647, %v1548
    %vm1559 = vcmp.eq.f32.partialorder %v1558, 8.507059e+37
    %v1560 = vand.u32 %v1548, 2147483648
    %v1561 = vor.u32 1.1754944e-38, %v1560
    %v1562 = vsel %vm1559, %v1561, %v1557
    %v1563 = vmul.f32 1.0, %v1562
    %v1564 = vtanh.pop %v1542
    %v1565 = vmul.f32 %v1563, %v1460
    %1567 = vrot.lane.b32.xlu0 %v1564, 64
    %v1568 = vpop.permute.xlu0 %1567
    %v1570 = vmul.f32 %v1563, %v1568
    %1572 = vrot.lane.b32.xlu0 %v1570, 32
    %v1573 = vpop.permute.xlu0 %1572
    %v1575 = vadd.f32 %v1565, %v1573
    %v1576 = vtanh.pop %v1575
    %1578 = vrot.lane.b32.xlu0 %v1576, 64
    %v1579 = vpop.permute.xlu0 %1578
    %v1581 = vmul.f32 %v1563, %v1579
    %v1582 = vxor.u32 %v1544, 2147483648
    %v1583 = vmul.f32 %v1582, 1.442695
    %v1584 = vpow.pop %v1583
    %v1585 = vadd.f32 %v1584, 1.0
    %v1586 = vrcp.pop %v1585
    %v1587 = vmul.f32 %v1585, %v1586
    %v1588 = vsub.f32 1.0, %v1587
    %v1589 = vmul.f32 %v1586, %v1588
    %v1590 = vadd.f32 %v1586, %v1589
    %vm1591 = vweird.f32 %v1585
    %vm1592 = vweird.f32 %v1586
    %vm1593 = vmor %vm1591, %vm1592
    %v1594 = vsel %vm1593, %v1586, %v1590
    %v1595 = vand.u32 2147483647, %v1585
    %vm1596 = vcmp.eq.f32.partialorder %v1595, 8.507059e+37
    %v1597 = vand.u32 %v1585, 2147483648
    %v1598 = vor.u32 1.1754944e-38, %v1597
    %v1599 = vsel %vm1596, %v1598, %v1594
    %v1600 = vmul.f32 1.0, %v1599
    %v1601 = vtanh.pop %v1544
    %v1602 = vmul.f32 %v1600, %v1466
    %1604 = vrot.lane.b32.xlu0 %v1601, 64
    %v1605 = vpop.permute.xlu0 %1604
    %v1607 = vmul.f32 %v1600, %v1605
    %1609 = vrot.lane.b32.xlu0 %v1607, 32
    %v1610 = vpop.permute.xlu0 %1609
    %v1612 = vadd.f32 %v1602, %v1610
    %v1613 = vtanh.pop %v1612
    %1615 = vrot.lane.b32.xlu0 %v1613, 64
    %v1616 = vpop.permute.xlu0 %1615
    %v1618 = vmul.f32 %v1600, %v1616
    %v1619 = vld [vmem:[%s446] sm:$0xff]
    %vm1620 = vcmp.gt.f32.partialorder %v1619, 0.0
    %v1621 = vld [vmem:[%s1] sm:$0xff]
    %vm1622 = vcmp.gt.f32.partialorder %v1621, 0.0
    %v1623 = vsel %vm1620, 1, 0
    %1624 = vset.pattern.permute.xlu0 0
    %1625 = vperm.xlu0 %1624, %v1623
    %v1626 = vpop.permute.xlu0 %1625
    %vm1627 = vcmp.eq.s32.totalorder %v1626, 1
    %v1628 = vsel %vm1627, %v1581, 0.0
    %1630 = vrot.lane.b32.xlu0 %v1628, 32
    %v1631 = vpop.permute.xlu0 %1630
    %s1633 = scalar_lea.vmem [#allocation3], 56
    %1634 = vst.msk [vmem:[%s1633] sm:$0xff] %vm176, %v1631
    %v1635 = vsel %vm1622, 1, 0
    %1636 = vset.pattern.permute.xlu0 0
    %1637 = vperm.xlu0 %1636, %v1635
    %v1638 = vpop.permute.xlu0 %1637
    %vm1639 = vcmp.eq.s32.totalorder %v1638, 1
    %v1640 = vsel %vm1639, %v1618, 0.0
    %1642 = vrot.lane.b32.xlu0 %v1640, 32
    %v1643 = vpop.permute.xlu0 %1642
    %1645 = vst.msk [vmem:[#allocation4] sm:$0xff] %vm176, %v1643
    %v1646 = vld [vmem:[#allocation3] sm:$0xff]
    %v1647 = vld [vmem:[#allocation3 + $0x8] sm:$0xff]
    %v1648 = vld [vmem:[#allocation3 + $0x10] sm:$0xff]
    %v1649 = vld [vmem:[#allocation3 + $0x18] sm:$0xff]
    %v1650 = vld [vmem:[#allocation3 + $0x20] sm:$0xff]
    %v1651 = vld [vmem:[#allocation3 + $0x28] sm:$0xff]
    %v1652 = vld [vmem:[#allocation3 + $0x30] sm:$0xff]
    %v1653 = vld [vmem:[#allocation3 + $0x38] sm:$0xff]
    %v1654 = vld [vmem:[#allocation4] sm:$0xff]
    %v1655 = vld [vmem:[#allocation4 + $0x8] sm:$0xff]
    %v1656 = vld [vmem:[#allocation4 + $0x10] sm:$0xff]
    %v1657 = vld [vmem:[#allocation4 + $0x18] sm:$0xff]
    %v1658 = vld [vmem:[#allocation4 + $0x20] sm:$0xff]
    %v1659 = vld [vmem:[#allocation4 + $0x28] sm:$0xff]
    %v1660 = vld [vmem:[#allocation4 + $0x30] sm:$0xff]
    %v1661 = vld [vmem:[#allocation4 + $0x38] sm:$0xff]
    %v1662 = vld [vmem:[#allocation10] sm:$0xff]
    %v1663 = vld [vmem:[#allocation10 + $0x8] sm:$0xff]
    %v1664 = vld [vmem:[#allocation10 + $0x10] sm:$0xff]
    %v1665 = vld [vmem:[#allocation10 + $0x18] sm:$0xff]
    %v1666 = vld [vmem:[#allocation11] sm:$0xff]
    %v1667 = vld [vmem:[#allocation11 + $0x8] sm:$0xff]
    %v1668 = vld [vmem:[#allocation11 + $0x10] sm:$0xff]
    %v1669 = vld [vmem:[#allocation11 + $0x18] sm:$0xff]
    %v1671 = vsel %vm176, %v1654, 0
    %v1674 = vsel %vm176, %v1655, 0
    %v1677 = vsel %vm176, %v1656, 0
    %v1680 = vsel %vm176, %v1657, 0
    %v1683 = vsel %vm176, %v1658, 0
    %v1686 = vsel %vm176, %v1659, 0
    %v1689 = vsel %vm176, %v1660, 0
    %v1692 = vsel %vm176, %v1661, 0
    %1694 = vmatpush.msra.mxu0 0.0
    %1695 = vmatpush.msra.mxu0 0.0
    %1696 = vmatpush.msra.mxu0 0.0
    %1697 = vmatpush.msra.mxu0 0.0
    %1698 = vmatpush.msra.mxu0 0.0
    %1699 = vmatpush.msra.mxu0 0.0
    %1700 = vmatpush.msra.mxu0 0.0
    %1701 = vmatpush.msra.mxu0 0.0
    %1702 = vmatpush.msra.mxu0 0.0
    %1703 = vmatpush.msra.mxu0 0.0
    %1704 = vmatpush.msra.mxu0 0.0
    %1705 = vmatpush.msra.mxu0 0.0
    %1706 = vmatpush.msra.mxu0 %v1669
    %1707 = vmatpush.msra.mxu0 %v1668
    %1708 = vmatpush.msra.mxu0 %v1667
    %1709 = vmatpush.msra.mxu0 %v1666
    %1710 = vmatmul.f32.gmra.mxu0 %v1671
    %v1711 = vpop.f32.mrf.mxu0
    %v1712 = vadd.f32 0.0, %v1711
    %1713 = vmatmul.f32.gmra.mxu0 %v1674
    %v1714 = vpop.f32.mrf.mxu0
    %v1715 = vadd.f32 0.0, %v1714
    %1716 = vmatmul.f32.gmra.mxu0 %v1677
    %v1717 = vpop.f32.mrf.mxu0
    %v1718 = vadd.f32 0.0, %v1717
    %1719 = vmatmul.f32.gmra.mxu0 %v1680
    %v1720 = vpop.f32.mrf.mxu0
    %v1721 = vadd.f32 0.0, %v1720
    %1722 = vmatmul.f32.gmra.mxu0 %v1683
    %v1723 = vpop.f32.mrf.mxu0
    %v1724 = vadd.f32 0.0, %v1723
    %1725 = vmatmul.f32.gmra.mxu0 %v1686
    %v1726 = vpop.f32.mrf.mxu0
    %v1727 = vadd.f32 0.0, %v1726
    %1728 = vmatmul.f32.gmra.mxu0 %v1689
    %v1729 = vpop.f32.mrf.mxu0
    %v1730 = vadd.f32 0.0, %v1729
    %1731 = vmatmul.f32.gmra.mxu0 %v1692
    %v1732 = vpop.f32.mrf.mxu0
    %v1733 = vadd.f32 0.0, %v1732
    %1734 = vdwg.mxu0
    %v1736 = vsel %vm176, %v1646, 0
    %v1739 = vsel %vm176, %v1647, 0
    %v1742 = vsel %vm176, %v1648, 0
    %v1745 = vsel %vm176, %v1649, 0
    %v1748 = vsel %vm176, %v1650, 0
    %v1751 = vsel %vm176, %v1651, 0
    %v1754 = vsel %vm176, %v1652, 0
    %v1757 = vsel %vm176, %v1653, 0
    %1759 = vmatpush.msra.mxu0 0.0
    %1760 = vmatpush.msra.mxu0 0.0
    %1761 = vmatpush.msra.mxu0 0.0
    %1762 = vmatpush.msra.mxu0 0.0
    %1763 = vmatpush.msra.mxu0 0.0
    %1764 = vmatpush.msra.mxu0 0.0
    %1765 = vmatpush.msra.mxu0 0.0
    %1766 = vmatpush.msra.mxu0 0.0
    %1767 = vmatpush.msra.mxu0 0.0
    %1768 = vmatpush.msra.mxu0 0.0
    %1769 = vmatpush.msra.mxu0 0.0
    %1770 = vmatpush.msra.mxu0 0.0
    %1771 = vmatpush.msra.mxu0 %v1665
    %1772 = vmatpush.msra.mxu0 %v1664
    %1773 = vmatpush.msra.mxu0 %v1663
    %1774 = vmatpush.msra.mxu0 %v1662
    %1775 = vmatmul.f32.gmra.mxu0 %v1736
    %v1776 = vpop.f32.mrf.mxu0
    %v1777 = vadd.f32 %v1712, %v1776
    %1778 = vmatmul.f32.gmra.mxu0 %v1739
    %v1779 = vpop.f32.mrf.mxu0
    %v1780 = vadd.f32 %v1715, %v1779
    %1781 = vmatmul.f32.gmra.mxu0 %v1742
    %v1782 = vpop.f32.mrf.mxu0
    %v1783 = vadd.f32 %v1718, %v1782
    %1784 = vmatmul.f32.gmra.mxu0 %v1745
    %v1785 = vpop.f32.mrf.mxu0
    %v1786 = vadd.f32 %v1721, %v1785
    %1787 = vmatmul.f32.gmra.mxu0 %v1748
    %v1788 = vpop.f32.mrf.mxu0
    %v1789 = vadd.f32 %v1724, %v1788
    %1790 = vmatmul.f32.gmra.mxu0 %v1751
    %v1791 = vpop.f32.mrf.mxu0
    %v1792 = vadd.f32 %v1727, %v1791
    %1793 = vmatmul.f32.gmra.mxu0 %v1754
    %v1794 = vpop.f32.mrf.mxu0
    %v1795 = vadd.f32 %v1730, %v1794
    %1796 = vmatmul.f32.gmra.mxu0 %v1757
    %v1797 = vpop.f32.mrf.mxu0
    %v1798 = vadd.f32 %v1733, %v1797
    %1799 = vdwg.mxu0
    %v1800 = vld [vmem:[%s7] sm:$0x1]
    %v1802 = vperm.slane %v1800, 0
    %v1804 = vadd.f32 %v1777, %v1802
    %v1805 = vadd.f32 %v1780, %v1802
    %v1806 = vadd.f32 %v1783, %v1802
    %v1807 = vadd.f32 %v1786, %v1802
    %v1808 = vadd.f32 %v1789, %v1802
    %v1809 = vadd.f32 %v1792, %v1802
    %v1810 = vadd.f32 %v1795, %v1802
    %v1811 = vadd.f32 %v1798, %v1802
    %v1812 = vtanh.pop %v1804
    %v1813 = vtanh.pop %v1805
    %v1814 = vtanh.pop %v1806
    %v1815 = vtanh.pop %v1807
    %v1816 = vtanh.pop %v1808
    %v1817 = vtanh.pop %v1809
    %v1818 = vtanh.pop %v1810
    %v1819 = vtanh.pop %v1811
    %v1820 = vld [vmem:[%s8] sm:$0x1]
    %v1822 = vperm.slane %v1820, 0
    %v1824 = vmul.f32 %v1812, %v1822
    %v1825 = vmul.f32 %v1813, %v1822
    %v1826 = vmul.f32 %v1814, %v1822
    %v1827 = vmul.f32 %v1815, %v1822
    %v1828 = vmul.f32 %v1816, %v1822
    %v1829 = vmul.f32 %v1817, %v1822
    %v1830 = vmul.f32 %v1818, %v1822
    %v1831 = vmul.f32 %v1819, %v1822
    %v1832 = vsel %vm176, %v1824, 0.0
    %1833 = vadd.xlane.f32.xlu0 %v1832
    %v1834 = vpop.xlane.xlu0 %1833
    %v1835 = vsel %vm176, %v1825, 0.0
    %1836 = vadd.xlane.f32.xlu0 %v1835
    %v1837 = vpop.xlane.xlu0 %1836
    %v1838 = vsel %vm176, %v1826, 0.0
    %1839 = vadd.xlane.f32.xlu0 %v1838
    %v1840 = vpop.xlane.xlu0 %1839
    %v1841 = vsel %vm176, %v1827, 0.0
    %1842 = vadd.xlane.f32.xlu0 %v1841
    %v1843 = vpop.xlane.xlu0 %1842
    %v1844 = vsel %vm176, %v1828, 0.0
    %1845 = vadd.xlane.f32.xlu0 %v1844
    %v1846 = vpop.xlane.xlu0 %1845
    %v1847 = vsel %vm176, %v1829, 0.0
    %1848 = vadd.xlane.f32.xlu0 %v1847
    %v1849 = vpop.xlane.xlu0 %1848
    %v1850 = vsel %vm176, %v1830, 0.0
    %1851 = vadd.xlane.f32.xlu0 %v1850
    %v1852 = vpop.xlane.xlu0 %1851
    %v1853 = vsel %vm176, %v1831, 0.0
    %1854 = vadd.xlane.f32.xlu0 %v1853
    %v1855 = vpop.xlane.xlu0 %1854
    %v1856 = vld [vmem:[%s1] sm:$0xff]
    %v1857 = vld [vmem:[%s1 + $0x8] sm:$0xff]
    %v1858 = vld [vmem:[%s1 + $0x10] sm:$0xff]
    %v1859 = vld [vmem:[%s1 + $0x18] sm:$0xff]
    %v1860 = vld [vmem:[%s1 + $0x20] sm:$0xff]
    %v1861 = vld [vmem:[%s1 + $0x28] sm:$0xff]
    %v1862 = vld [vmem:[%s1 + $0x30] sm:$0xff]
    %v1863 = vld [vmem:[%s1 + $0x38] sm:$0xff]
    %vm1864 = vcmp.gt.f32.partialorder %v1856, 0.0
    %vm1865 = vcmp.gt.f32.partialorder %v1857, 0.0
    %vm1866 = vcmp.gt.f32.partialorder %v1858, 0.0
    %vm1867 = vcmp.gt.f32.partialorder %v1859, 0.0
    %vm1868 = vcmp.gt.f32.partialorder %v1860, 0.0
    %vm1869 = vcmp.gt.f32.partialorder %v1861, 0.0
    %vm1870 = vcmp.gt.f32.partialorder %v1862, 0.0
    %vm1871 = vcmp.gt.f32.partialorder %v1863, 0.0
    %v1872 = vsel %vm1864, %v1834, -1e+30
    %v1873 = vsel %vm1865, %v1837, -1e+30
    %v1874 = vsel %vm1866, %v1840, -1e+30
    %v1875 = vsel %vm1867, %v1843, -1e+30
    %v1876 = vsel %vm1868, %v1846, -1e+30
    %v1877 = vsel %vm1869, %v1849, -1e+30
    %v1878 = vsel %vm1870, %v1852, -1e+30
    %v1879 = vsel %vm1871, %v1855, -1e+30
    %vm1880 = vcmask 7168
    %v1881 = vsel %vm1880, %v1872, -inf
    %v1882 = vsel %vm1880, %v1873, -inf
    %v1883 = vsel %vm1880, %v1874, -inf
    %v1884 = vsel %vm1880, %v1875, -inf
    %v1885 = vsel %vm1880, %v1876, -inf
    %v1886 = vmax.f32 %v1881, %v1885
    %v1887 = vsel %vm1880, %v1877, -inf
    %v1888 = vmax.f32 %v1882, %v1887
    %v1889 = vsel %vm1880, %v1878, -inf
    %v1890 = vmax.f32 %v1883, %v1889
    %v1891 = vsel %vm1880, %v1879, -inf
    %v1892 = vmax.f32 %v1884, %v1891
    %v1893 = vmax.f32 %v1886, %v1888
    %v1894 = vmax.f32 %v1890, %v1892
    %v1895 = vmax.f32 %v1893, %v1894
    %v1896 = vsub.f32 %v1872, %v1895
    %v1897 = vsub.f32 %v1873, %v1895
    %v1898 = vsub.f32 %v1874, %v1895
    %v1899 = vsub.f32 %v1875, %v1895
    %v1900 = vsub.f32 %v1876, %v1895
    %v1901 = vsub.f32 %v1877, %v1895
    %v1902 = vsub.f32 %v1878, %v1895
    %v1903 = vsub.f32 %v1879, %v1895
    %v1904 = vmul.f32 %v1896, 1.442695
    %v1905 = vpow.pop %v1904
    %v1906 = vmul.f32 %v1897, 1.442695
    %v1907 = vpow.pop %v1906
    %v1908 = vmul.f32 %v1898, 1.442695
    %v1909 = vpow.pop %v1908
    %v1910 = vmul.f32 %v1899, 1.442695
    %v1911 = vpow.pop %v1910
    %v1912 = vmul.f32 %v1900, 1.442695
    %v1913 = vpow.pop %v1912
    %v1914 = vmul.f32 %v1901, 1.442695
    %v1915 = vpow.pop %v1914
    %v1916 = vmul.f32 %v1902, 1.442695
    %v1917 = vpow.pop %v1916
    %v1918 = vmul.f32 %v1903, 1.442695
    %v1919 = vpow.pop %v1918
    %v1920 = vsel %vm1880, %v1905, 0.0
    %v1921 = vsel %vm1880, %v1907, 0.0
    %v1922 = vadd.f32 %v1920, %v1921
    %v1923 = vsel %vm1880, %v1909, 0.0
    %v1924 = vadd.f32 %v1922, %v1923
    %v1925 = vsel %vm1880, %v1911, 0.0
    %v1926 = vadd.f32 %v1924, %v1925
    %v1927 = vsel %vm1880, %v1913, 0.0
    %v1928 = vadd.f32 %v1926, %v1927
    %v1929 = vsel %vm1880, %v1915, 0.0
    %v1930 = vadd.f32 %v1928, %v1929
    %v1931 = vsel %vm1880, %v1917, 0.0
    %v1932 = vadd.f32 %v1930, %v1931
    %v1933 = vsel %vm1880, %v1919, 0.0
    %v1934 = vadd.f32 %v1932, %v1933
    %v1935 = vrcp.pop %v1934
    %v1936 = vmul.f32 %v1934, %v1935
    %v1937 = vsub.f32 1.0, %v1936
    %v1938 = vmul.f32 %v1935, %v1937
    %v1939 = vadd.f32 %v1935, %v1938
    %vm1940 = vweird.f32 %v1934
    %vm1941 = vweird.f32 %v1935
    %vm1942 = vmor %vm1940, %vm1941
    %v1943 = vsel %vm1942, %v1935, %v1939
    %v1944 = vand.u32 2147483647, %v1934
    %vm1945 = vcmp.eq.f32.partialorder %v1944, 8.507059e+37
    %v1946 = vand.u32 %v1934, 2147483648
    %v1947 = vor.u32 1.1754944e-38, %v1946
    %v1948 = vsel %vm1945, %v1947, %v1943
    %v1949 = vmul.f32 %v1905, %v1948
    %v1950 = vmul.f32 %v1907, %v1948
    %v1951 = vmul.f32 %v1909, %v1948
    %v1952 = vmul.f32 %v1911, %v1948
    %v1953 = vmul.f32 %v1913, %v1948
    %v1954 = vmul.f32 %v1915, %v1948
    %v1955 = vmul.f32 %v1917, %v1948
    %v1956 = vmul.f32 %v1919, %v1948
    %1965 = vset.pattern.permute.xlu0 0
    %1966 = vperm.xlu0 %1965, %v1949
    %v1967 = vpop.permute.xlu0 %1966
    %1968 = vset.pattern.permute.xlu0 0
    %1969 = vperm.xlu0 %1968, %v1950
    %v1970 = vpop.permute.xlu0 %1969
    %1971 = vset.pattern.permute.xlu0 0
    %1972 = vperm.xlu0 %1971, %v1951
    %v1973 = vpop.permute.xlu0 %1972
    %1974 = vset.pattern.permute.xlu0 0
    %1975 = vperm.xlu0 %1974, %v1952
    %v1976 = vpop.permute.xlu0 %1975
    %1977 = vset.pattern.permute.xlu0 0
    %1978 = vperm.xlu0 %1977, %v1953
    %v1979 = vpop.permute.xlu0 %1978
    %1980 = vset.pattern.permute.xlu0 0
    %1981 = vperm.xlu0 %1980, %v1954
    %v1982 = vpop.permute.xlu0 %1981
    %1983 = vset.pattern.permute.xlu0 0
    %1984 = vperm.xlu0 %1983, %v1955
    %v1985 = vpop.permute.xlu0 %1984
    %1986 = vset.pattern.permute.xlu0 0
    %1987 = vperm.xlu0 %1986, %v1956
    %v1988 = vpop.permute.xlu0 %1987
    %v1989 = vlaneseq
    %v1990 = vand.u32 %v1989, 127
    %v1991 = vperm.slane %v1967, %v1990
    %v1992 = vperm.slane %v1970, %v1990
    %v1993 = vperm.slane %v1973, %v1990
    %v1994 = vperm.slane %v1976, %v1990
    %v1995 = vperm.slane %v1979, %v1990
    %v1996 = vperm.slane %v1982, %v1990
    %v1997 = vperm.slane %v1985, %v1990
    %v1998 = vperm.slane %v1988, %v1990
    %vm1999 = vcmask 1041409
    %v2000 = vsel %vm1999, %v1992, %v1991
    %vm2001 = vcmask 1042434
    %v2002 = vsel %vm2001, %v1993, %v2000
    %vm2003 = vcmask 1043459
    %v2004 = vsel %vm2003, %v1994, %v2002
    %vm2005 = vcmask 1044484
    %v2006 = vsel %vm2005, %v1995, %v2004
    %vm2007 = vcmask 1045509
    %v2008 = vsel %vm2007, %v1996, %v2006
    %vm2009 = vcmask 1046534
    %v2010 = vsel %vm2009, %v1997, %v2008
    %vm2011 = vcmask 1047559
    %v2012 = vsel %vm2011, %v1998, %v2010
    %2014 = vxpose.xlu0.b32.start [1/16] %v2012, 128
    %2015 = vxpose.xlu0.b32.cont [2/16] 0.0, 128
    %2016 = vxpose.xlu0.b32.cont [3/16] 0.0, 128
    %2017 = vxpose.xlu0.b32.cont [4/16] 0.0, 128
    %2018 = vxpose.xlu0.b32.cont [5/16] 0.0, 128
    %2019 = vxpose.xlu0.b32.cont [6/16] 0.0, 128
    %2020 = vxpose.xlu0.b32.cont [7/16] 0.0, 128
    %2021 = vxpose.xlu0.b32.cont [8/16] 0.0, 128
    %2022 = vxpose.xlu0.b32.cont [9/16] 0.0, 128
    %2023 = vxpose.xlu0.b32.cont [10/16] 0.0, 128
    %2024 = vxpose.xlu0.b32.cont [11/16] 0.0, 128
    %2025 = vxpose.xlu0.b32.cont [12/16] 0.0, 128
    %2026 = vxpose.xlu0.b32.cont [13/16] 0.0, 128
    %2027 = vxpose.xlu0.b32.cont [14/16] 0.0, 128
    %2028 = vxpose.xlu0.b32.cont [15/16] 0.0, 128
    %2029 = vxpose.xlu0.b32.end [16/16] 0.0, 128
    %v2030 = vpop.trf.xlu0
    %v2031 = vpop.trf.xlu0
    %v2032 = vpop.trf.xlu0
    %v2033 = vpop.trf.xlu0
    %v2034 = vpop.trf.xlu0
    %v2035 = vpop.trf.xlu0
    %v2036 = vpop.trf.xlu0
    %v2037 = vpop.trf.xlu0
    %v2038 = vpop.trf.xlu0
    %v2039 = vpop.trf.xlu0
    %v2040 = vpop.trf.xlu0
    %v2041 = vpop.trf.xlu0
    %v2042 = vpop.trf.xlu0
    %v2043 = vpop.trf.xlu0
    %v2044 = vpop.trf.xlu0
    %v2045 = vpop.trf.xlu0
    %vm2046 = vcmask 64512
    %2047 = vst.msk [vmem:[#allocation18] sm:$0xff] %vm2046, %v2030
    %v2056 = vmul.f32 %v1967, %v1646
    %v2057 = vmul.f32 %v1970, %v1647
    %v2058 = vmul.f32 %v1973, %v1648
    %v2059 = vmul.f32 %v1976, %v1649
    %v2060 = vmul.f32 %v1979, %v1650
    %v2061 = vmul.f32 %v1982, %v1651
    %v2062 = vmul.f32 %v1985, %v1652
    %v2063 = vmul.f32 %v1988, %v1653
    %v2064 = vsel %vm176, %v2056, 0.0
    %v2065 = vsel %vm176, %v2057, 0.0
    %v2066 = vadd.f32 %v2064, %v2065
    %v2067 = vsel %vm176, %v2058, 0.0
    %v2068 = vadd.f32 %v2066, %v2067
    %v2069 = vsel %vm176, %v2059, 0.0
    %v2070 = vadd.f32 %v2068, %v2069
    %v2071 = vsel %vm176, %v2060, 0.0
    %v2072 = vadd.f32 %v2070, %v2071
    %v2073 = vsel %vm176, %v2061, 0.0
    %v2074 = vadd.f32 %v2072, %v2073
    %v2075 = vsel %vm176, %v2062, 0.0
    %v2076 = vadd.f32 %v2074, %v2075
    %v2077 = vsel %vm176, %v2063, 0.0
    %v2078 = vadd.f32 %v2076, %v2077
    %v2079 = vmul.f32 %v1967, %v1654
    %v2080 = vmul.f32 %v1970, %v1655
    %v2081 = vmul.f32 %v1973, %v1656
    %v2082 = vmul.f32 %v1976, %v1657
    %v2083 = vmul.f32 %v1979, %v1658
    %v2084 = vmul.f32 %v1982, %v1659
    %v2085 = vmul.f32 %v1985, %v1660
    %v2086 = vmul.f32 %v1988, %v1661
    %v2087 = vsel %vm176, %v2079, 0.0
    %v2088 = vsel %vm176, %v2080, 0.0
    %v2089 = vadd.f32 %v2087, %v2088
    %v2090 = vsel %vm176, %v2081, 0.0
    %v2091 = vadd.f32 %v2089, %v2090
    %v2092 = vsel %vm176, %v2082, 0.0
    %v2093 = vadd.f32 %v2091, %v2092
    %v2094 = vsel %vm176, %v2083, 0.0
    %v2095 = vadd.f32 %v2093, %v2094
    %v2096 = vsel %vm176, %v2084, 0.0
    %v2097 = vadd.f32 %v2095, %v2096
    %v2098 = vsel %vm176, %v2085, 0.0
    %v2099 = vadd.f32 %v2097, %v2098
    %v2100 = vsel %vm176, %v2086, 0.0
    %v2101 = vadd.f32 %v2099, %v2100
    %v2102 = vld [vmem:[#allocation13] sm:$0xff]
    %v2103 = vld [vmem:[#allocation13 + $0x8] sm:$0xff]
    %v2104 = vld [vmem:[#allocation13 + $0x10] sm:$0xff]
    %v2105 = vld [vmem:[#allocation13 + $0x18] sm:$0xff]
    %v2106 = vld [vmem:[#allocation14] sm:$0xff]
    %v2107 = vld [vmem:[#allocation14 + $0x8] sm:$0xff]
    %v2108 = vld [vmem:[#allocation14 + $0x10] sm:$0xff]
    %v2109 = vld [vmem:[#allocation14 + $0x18] sm:$0xff]
    %v2111 = vsel %vm176, %v2101, 0
    %2113 = vmatpush.msra.mxu0 0.0
    %2114 = vmatpush.msra.mxu0 0.0
    %2115 = vmatpush.msra.mxu0 0.0
    %2116 = vmatpush.msra.mxu0 0.0
    %2117 = vmatpush.msra.mxu0 0.0
    %2118 = vmatpush.msra.mxu0 0.0
    %2119 = vmatpush.msra.mxu0 0.0
    %2120 = vmatpush.msra.mxu0 0.0
    %2121 = vmatpush.msra.mxu0 0.0
    %2122 = vmatpush.msra.mxu0 0.0
    %2123 = vmatpush.msra.mxu0 0.0
    %2124 = vmatpush.msra.mxu0 0.0
    %2125 = vmatpush.msra.mxu0 %v2109
    %2126 = vmatpush.msra.mxu0 %v2108
    %2127 = vmatpush.msra.mxu0 %v2107
    %2128 = vmatpush.msra.mxu0 %v2106
    %2129 = vmatmul.f32.gmra.mxu0 %v2111
    %v2130 = vpop.f32.mrf.mxu0
    %v2131 = vadd.f32 0.0, %v2130
    %2132 = vdwg.mxu0
    %v2134 = vsel %vm176, %v2078, 0
    %2136 = vmatpush.msra.mxu0 0.0
    %2137 = vmatpush.msra.mxu0 0.0
    %2138 = vmatpush.msra.mxu0 0.0
    %2139 = vmatpush.msra.mxu0 0.0
    %2140 = vmatpush.msra.mxu0 0.0
    %2141 = vmatpush.msra.mxu0 0.0
    %2142 = vmatpush.msra.mxu0 0.0
    %2143 = vmatpush.msra.mxu0 0.0
    %2144 = vmatpush.msra.mxu0 0.0
    %2145 = vmatpush.msra.mxu0 0.0
    %2146 = vmatpush.msra.mxu0 0.0
    %2147 = vmatpush.msra.mxu0 0.0
    %2148 = vmatpush.msra.mxu0 %v2105
    %2149 = vmatpush.msra.mxu0 %v2104
    %2150 = vmatpush.msra.mxu0 %v2103
    %2151 = vmatpush.msra.mxu0 %v2102
    %2152 = vmatmul.f32.gmra.mxu0 %v2134
    %v2153 = vpop.f32.mrf.mxu0
    %v2154 = vadd.f32 %v2131, %v2153
    %2155 = vdwg.mxu0
    %v2156 = vld [vmem:[%s11] sm:$0x1]
    %v2158 = vperm.slane %v2156, 0
    %v2160 = vadd.f32 %v2154, %v2158
    %v2161 = vld [vmem:[#allocation16] sm:$0xff]
    %v2162 = vld [vmem:[#allocation16 + $0x8] sm:$0xff]
    %v2163 = vld [vmem:[#allocation16 + $0x10] sm:$0xff]
    %v2164 = vld [vmem:[#allocation16 + $0x18] sm:$0xff]
    %v2165 = vld [vmem:[%s13] sm:$0x1]
    %v2167 = vperm.slane %v2165, 0
    %v2170 = vsel %vm176, %v2160, 0
    %2172 = vmatpush.msra.mxu0 0.0
    %2173 = vmatpush.msra.mxu0 0.0
    %2174 = vmatpush.msra.mxu0 0.0
    %2175 = vmatpush.msra.mxu0 0.0
    %2176 = vmatpush.msra.mxu0 0.0
    %2177 = vmatpush.msra.mxu0 0.0
    %2178 = vmatpush.msra.mxu0 0.0
    %2179 = vmatpush.msra.mxu0 0.0
    %2180 = vmatpush.msra.mxu0 0.0
    %2181 = vmatpush.msra.mxu0 0.0
    %2182 = vmatpush.msra.mxu0 0.0
    %2183 = vmatpush.msra.mxu0 0.0
    %2184 = vmatpush.msra.mxu0 %v2164
    %2185 = vmatpush.msra.mxu0 %v2163
    %2186 = vmatpush.msra.mxu0 %v2162
    %2187 = vmatpush.msra.mxu0 %v2161
    %2188 = vmatmul.f32.gmra.mxu0 %v2170
    %v2189 = vpop.f32.mrf.mxu0
    %v2190 = vadd.f32 %v2167, %v2189
    %2191 = vdwg.mxu0
    %2192 = vst [vmem:[#allocation17] sm:$0xff] %v2190
    // Predicated region
    $region86: #{tpu_custom_call.1} parent=1 // pred_check
      _
    $region87: #{tpu_custom_call.1} parent=1 // pred_check_branch
      %2194 = sbr.rel (0) target = $region89
    $region88: #{tpu_custom_call.1} parent=1 // pred_region
      %2196 = vsyncadd [#allocation7], 0
      %s2198 = sshll.u32 [#allocation17], 4
      %s2199 = int_to_ptr.vmem [resolvable:$true] %s2198
      %s2200 = sshll.u32 %s14, 4
      %s2201 = int_to_ptr.hbm [resolvable:$true] %s2200
      %2203 = dma.vmem_to_hbm [thread:$0]  %s2199, 128, %s2201, [#allocation7]
    $region89: #{tpu_custom_call.1} parent=1 // pred_fallthru
      _
    // Predicated region
    $region90: #{tpu_custom_call.1} parent=1 // pred_check
      _
    $region91: #{tpu_custom_call.1} parent=1 // pred_check_branch
      %2205 = sbr.rel (0) target = $region93
    $region92: #{tpu_custom_call.1} parent=1 // pred_region
      %2207 = vsyncadd [#allocation19], 0
      %s2209 = sshll.u32 [#allocation18], 4
      %s2210 = int_to_ptr.vmem [resolvable:$true] %s2209
      %s2211 = sshll.u32 %s15, 4
      %s2212 = int_to_ptr.hbm [resolvable:$true] %s2211
      %2214 = dma.vmem_to_hbm [thread:$0]  %s2210, 128, %s2212, [#allocation19]
    $region93: #{tpu_custom_call.1} parent=1 // pred_fallthru
      _
    // Predicated region
    $region94: #{tpu_custom_call.1} parent=1 // pred_check
      _
    $region95: #{tpu_custom_call.1} parent=1 // pred_check_branch
      %2216 = sbr.rel (0) target = $region97
    $region96: #{tpu_custom_call.1} parent=1 // pred_region
      %2218 = dma.done [#allocation7], 128
    $region97: #{tpu_custom_call.1} parent=1 // pred_fallthru
      _
    // Predicated region
    $region98: #{tpu_custom_call.1} parent=1 // pred_check
      _
    $region99: #{tpu_custom_call.1} parent=1 // pred_check_branch
      %2220 = sbr.rel (0) target = $region101
    $region100: #{tpu_custom_call.1} parent=1 // pred_region
      %2222 = dma.done [#allocation19], 128
    $region101: #{tpu_custom_call.1} parent=1 // pred_fallthru
      _
    %2223 = vsyncpa [#allocation6], 1
    %2224 = vsyncpa [#allocation9], 1
    %2225 = vsyncpa [#allocation12], 1
    %2226 = vsyncpa [#allocation15], 1
    %2227 = vsyncpa [#allocation7], 1
    %2228 = vsyncpa [#allocation19], 1

</llo_original>
